<compile_context>
chip_gen: v7x
topology: tpu7x:2x2x1
jax: 0.10.0
libtpu: 0.0.40
codegen_flags: <defaults>
</compile_context>

<pallas_src>
import functools

import numpy as np
import jax
import jax.numpy as jnp
from jax.experimental import pallas as pl
from jax.experimental.pallas import tpu as pltpu


LANE = 128
# MXU dtype for the plain MLP layers; the embedding one-hot matmul and the
# interaction / first-top-layer matmul stay f32 (accuracy, per review).
MXU_DTYPE = jnp.bfloat16


def _round_up(n, m=LANE):
    return ((n + m - 1) // m) * m


# ----------------------------------------------------------------------------
# Fused DLRM forward kernel (one batch tile per grid step)
# ----------------------------------------------------------------------------
def _dlrm_fused_kernel(*refs, m_pad, num_sparse, n_bot, n_top, l_total, n_emb_pad):
    it = iter(refs)
    dense_ref = next(it)                                # (tile_b, d_in_pad) f32
    idx_ref = next(it)                                  # (tile_b, ns*bag_len) int32
    emb_ref = next(it)                                  # (n_emb_pad, ns*m_pad) f32, resident
    bot_w = [next(it) for _ in range(n_bot)]            # (in_pad, out_pad) bf16, resident
    bot_b = [next(it) for _ in range(n_bot)]            # (1, out_pad) f32, resident
    w1c_ref = next(it)                                  # ((1+P)*m_pad, n1_pad) f32, resident
    b1_ref = next(it)                                   # (1, n1_pad) f32, resident
    top_w = [next(it) for _ in range(n_top - 1)]        # bf16, resident
    top_b = [next(it) for _ in range(n_top - 1)]        # f32, resident
    out_ref = next(it)                                  # (tile_b, out_pad) f32

    tile_b = dense_ref.shape[0]

    # ---------------- bottom MLP (pre-transposed, lane-padded weights) ----------
    x = dense_ref[...]
    for li in range(n_bot):
        y = jnp.dot(x.astype(MXU_DTYPE), bot_w[li][...],
                    preferred_element_type=jnp.float32) + bot_b[li][...]
        x = jnp.maximum(y, 0.0)
    # x: (tile_b, m_pad); lanes >= M are exactly zero (zero-padded weights/bias).

    # ---------------- embedding bags (mode='sum') via one-hot counts @ table -----
    # counts[b, n] = number of occurrences of global row n among ALL of row b's bag
    # indices (features occupy disjoint offset ranges, and the table is block
    # diagonal per feature, so one matmul yields every ly_k side by side on lanes).
    # Out-of-range indices never match the iota -> contribute zero (no stale reads).
    idx = idx_ref[...]
    iota = jax.lax.broadcasted_iota(jnp.int32, (tile_b, n_emb_pad), 1)
    counts = jnp.zeros((tile_b, n_emb_pad), jnp.float32)
    for l in range(l_total):                             # short static loop (ns*bag_len)
        counts = counts + (iota == idx[:, l:l + 1]).astype(jnp.float32)
    emb_out = jnp.dot(counts, emb_ref[...],
                      preferred_element_type=jnp.float32)  # (tile_b, ns*m_pad)

    # ---------------- interaction + first top layer, fused on the MXU ------------
    # Zflat[b,p] = sum_d feats_i[b,d]*feats_j[b,d]; its contribution to top layer 1
    # is folded into one matmul: concat([x, feats_i*feats_j ...]) @ W1_combined,
    # where W1_combined repeats W1[:, M+p] across the M embedding lanes of pair p.
    feats = [x] + [emb_out[:, k * m_pad:(k + 1) * m_pad] for k in range(num_sparse)]
    nf = len(feats)
    cols = [x]
    for i in range(nf):
        for j in range(i):                               # same order as torch li/lj
            cols.append(feats[i] * feats[j])
    full = jnp.concatenate(cols, axis=1)                 # (tile_b, (1+P)*m_pad), lane-dense
    z = jnp.dot(full, w1c_ref[...],
                preferred_element_type=jnp.float32) + b1_ref[...]
    z = jax.nn.sigmoid(z) if n_top == 1 else jnp.maximum(z, 0.0)

    # ---------------- remaining top layers (last one: sigmoid) -------------------
    for li in range(1, n_top):
        y = jnp.dot(z.astype(MXU_DTYPE), top_w[li - 1][...],
                    preferred_element_type=jnp.float32) + top_b[li - 1][...]
        z = jax.nn.sigmoid(y) if li == n_top - 1 else jnp.maximum(y, 0.0)

    out_ref[...] = z.astype(out_ref.dtype)


# ----------------------------------------------------------------------------
# Wrapper: padding / weight pre-processing / BlockSpecs
# ----------------------------------------------------------------------------
def dlrm_forward(dense_x, lS_i, bot_params, top_params, emb_tables, *, tile_b=None):
    dense_x = jnp.asarray(dense_x, jnp.float32)
    B, d_in = dense_x.shape
    ns = len(emb_tables)
    bag_len = int(lS_i[0].shape[1])
    n_bot = len(bot_params)
    n_top = len(top_params)
    m = int(emb_tables[0].shape[1])
    nf = 1 + ns
    n_pairs = nf * (nf - 1) // 2
    out_dim = int(top_params[-1][0].shape[0])

    assert int(bot_params[-1][0].shape[0]) == m, "bottom MLP must end at embedding dim"
    assert int(top_params[0][0].shape[1]) == m + n_pairs, "top MLP input dim mismatch"

    # Batch tile: big (low per-step overhead, big MXU M) but keep >=2 tiles so the
    # 'parallel' grid axis can shard across both v7x TensorCores.
    if tile_b is None:
        tile_b = min(512, B)
        if B // tile_b < 2 and B >= 16:
            tile_b = B // 2
    assert B % tile_b == 0, "batch must be divisible by the batch tile"
    assert tile_b % 8 == 0 or tile_b == B
    grid = (B // tile_b,)

    m_pad = _round_up(m)
    d_in_pad = _round_up(d_in)

    # ---- dense input, zero-padded on lanes ----
    dense_pad = jnp.pad(dense_x, ((0, 0), (0, d_in_pad - d_in)))

    # ---- bag indices: one (B, ns*bag_len) int32 slab with per-feature offsets ----
    offsets, off = [], 0
    for t in emb_tables:
        offsets.append(off)
        off += int(t.shape[0])
    n_emb_total = off
    n_emb_pad = _round_up(n_emb_total)
    idx_cat = jnp.concatenate(
        [jnp.asarray(lS_i[k], jnp.int32) + offsets[k] for k in range(ns)], axis=1)
    l_total = ns * bag_len

    # ---- block-diagonal concatenated embedding table (small tables only) ----
    # TODO(synk): tables > 1e6 rows (the Eff_TTEmbedding branch) do not fit VMEM and
    # need an HBM DMA-gather pipeline (pl.ANY + pltpu.make_async_copy) instead.
    big_emb = jnp.zeros((n_emb_pad, ns * m_pad), jnp.float32)
    for k, t in enumerate(emb_tables):
        t = jnp.asarray(t, jnp.float32)
        big_emb = big_emb.at[offsets[k]:offsets[k] + t.shape[0],
                             k * m_pad:k * m_pad + m].set(t)

    # ---- MLP weights: pre-transposed to (in, out), zero-padded to 128 multiples ----
    def pad_w(w):  # torch layout (out, in) -> (in_pad, out_pad)
        w = jnp.asarray(w, jnp.float32).T
        return jnp.pad(w, ((0, _round_up(w.shape[0]) - w.shape[0]),
                           (0, _round_up(w.shape[1]) - w.shape[1])))

    def pad_b(b):
        b = jnp.asarray(b, jnp.float32).reshape(1, -1)
        return jnp.pad(b, ((0, 0), (0, _round_up(b.shape[1]) - b.shape[1])))

    bot_wt = [pad_w(w).astype(MXU_DTYPE) for w, _ in bot_params]
    bot_bs = [pad_b(b) for _, b in bot_params]

    # ---- first top layer folded with the strict-lower-triangle selection ----
    w1 = jnp.asarray(top_params[0][0], jnp.float32)       # (n1, m + n_pairs)
    n1 = int(w1.shape[0])
    n1_pad = _round_up(n1)
    blocks = [jnp.pad(w1[:, :m].T, ((0, m_pad - m), (0, n1_pad - n1)))]
    for p in range(n_pairs):
        blk = jnp.zeros((m_pad, n1_pad), jnp.float32)
        blk = blk.at[:m, :n1].set(jnp.broadcast_to(w1[:, m + p][None, :], (m, n1)))
        blocks.append(blk)
    w1_comb = jnp.concatenate(blocks, axis=0)             # ((1+P)*m_pad, n1_pad) f32
    b1 = pad_b(top_params[0][1])

    top_wt = [pad_w(w).astype(MXU_DTYPE) for w, _ in top_params[1:]]
    top_bs = [pad_b(b) for _, b in top_params[1:]]

    out_pad = _round_up(out_dim)

    resident_arrays = [big_emb] + bot_wt + bot_bs + [w1_comb, b1] + top_wt + top_bs
    operands = (dense_pad, idx_cat, *resident_arrays)

    # VMEM budget: resident params + streaming double buffers + headroom.
    def nbytes(a):
        return int(a.size) * a.dtype.itemsize
    resident_bytes = sum(nbytes(a) for a in resident_arrays)
    stream_bytes = (tile_b * d_in_pad + tile_b * max(l_total, LANE) + tile_b * out_pad) * 4
    vmem_limit = int(min(64 * 1024 * 1024,
                         max(32 * 1024 * 1024,
                             2 * resident_bytes + 4 * stream_bytes + (8 << 20))))

    kern = functools.partial(
        _dlrm_fused_kernel, m_pad=m_pad, num_sparse=ns, n_bot=n_bot, n_top=n_top,
        l_total=l_total, n_emb_pad=n_emb_pad)

    stream_specs = [
        pl.BlockSpec((tile_b, d_in_pad), lambda i: (i, 0)),
        pl.BlockSpec((tile_b, l_total), lambda i: (i, 0)),
    ]

    def make_resident_spec(shape, single_buffer):
        zeros = (0,) * len(shape)
        if single_buffer:
            # Constant block index -> no benefit from double buffering; halve VMEM.
            return pl.BlockSpec(shape, lambda i, _z=zeros: _z,
                                pipeline_mode=pl.Buffered(1))
        return pl.BlockSpec(shape, lambda i, _z=zeros: _z)

    def run(single_buffer):
        in_specs = stream_specs + [
            make_resident_spec(tuple(a.shape), single_buffer) for a in resident_arrays]
        out = pl.pallas_call(
            kern,
            out_shape=jax.ShapeDtypeStruct((B, out_pad), jnp.float32),
            grid=grid,
            in_specs=in_specs,
            out_specs=pl.BlockSpec((tile_b, out_pad), lambda i: (i, 0)),
            compiler_params=pltpu.CompilerParams(
                dimension_semantics=("parallel",),
                vmem_limit_bytes=vmem_limit,
            ),
        )(*operands)
        return out[:, :out_dim]

    try:
        return run(True)
    except Exception:
        # pipeline_mode=pl.Buffered(1) unsupported in this JAX build -> default buffering.
        return run(False)


# ----------------------------------------------------------------------------
# Deterministic parameter initialization (mirrors the PyTorch __init__ shapes)
# ----------------------------------------------------------------------------
def init_mlp(key, ln):
    params = []
    for i in range(len(ln) - 1):
        n, m = int(ln[i]), int(ln[i + 1])
        key, kw, kb = jax.random.split(key, 3)
        W = jax.random.normal(kw, (m, n), jnp.float32) * np.sqrt(2.0 / (m + n))
        b = jax.random.normal(kb, (m,), jnp.float32) * np.sqrt(1.0 / m)
        params.append((W, b))
    return params


def init_emb(key, m, ln_emb):
    # All table sizes here are <= 1e6, i.e. the plain nn.EmbeddingBag(mode='sum') branch.
    # TODO(synk): the Eff_TTEmbedding (TT-decomposed) branch for n > 1e6 is not implemented.
    tables = []
    for n in ln_emb:
        key, kt = jax.random.split(key)
        bound = np.sqrt(1.0 / n)
        W = jax.random.uniform(kt, (int(n), m), jnp.float32, -bound, bound)
        tables.append(W)
    return tables


# ----------------------------------------------------------------------------
# Plain-JAX reference (mirrors sequential_forward) for correctness checking
# ----------------------------------------------------------------------------
def dlrm_reference(dense_x, lS_i, bot_params, top_params, emb_tables):
    x = dense_x
    for (W, b) in bot_params:
        x = jnp.maximum(x @ W.T + b, 0.0)
    ly = [emb_tables[k][lS_i[k]].sum(axis=1) for k in range(len(emb_tables))]
    B, d = x.shape
    T = jnp.concatenate([x] + ly, axis=1).reshape(B, -1, d)
    Z = jnp.einsum("bid,bjd->bij", T, T)
    nfeat = T.shape[1]
    li = np.array([i for i in range(nfeat) for j in range(i)], dtype=np.int32)
    lj = np.array([j for i in range(nfeat) for j in range(i)], dtype=np.int32)
    zflat = Z[:, li, lj]
    z = jnp.concatenate([x, zflat], axis=1)
    for t, (W, b) in enumerate(top_params):
        y = z @ W.T + b
        z = jax.nn.sigmoid(y) if t == len(top_params) - 1 else jnp.maximum(y, 0.0)
    return z


# ----------------------------------------------------------------------------
if __name__ == "__main__":
    # Small synthetic DLRM config.
    feature_size = 16                          # embedding dim m (and bottom-MLP output)
    ln_bot = [8, 16, feature_size]             # bottom MLP
    ln_emb = [60, 100, 200]                    # 3 sparse features (all small tables)
    num_sparse = len(ln_emb)
    num_feat = 1 + num_sparse                  # F = dense + sparse
    num_int = num_feat * (num_feat - 1) // 2
    ln_top = [feature_size + num_int, 64, 32, 1]   # top MLP, ends in sigmoid

    B = 16        # batch size
    L = 2         # bag size per sparse feature

    key = jax.random.PRNGKey(0)
    k_bot, k_top, k_emb, k_x, k_idx = jax.random.split(key, 5)

    bot_params = init_mlp(k_bot, ln_bot)
    top_params = init_mlp(k_top, ln_top)
    emb_tables = init_emb(k_emb, feature_size, ln_emb)

    dense_x = jax.random.normal(k_x, (B, ln_bot[0]), jnp.float32)
    idx_keys = jax.random.split(k_idx, num_sparse)
    lS_i = [
        jax.random.randint(idx_keys[k], (B, L), 0, ln_emb[k], dtype=jnp.int32)
        for k in range(num_sparse)
    ]

    out = dlrm_forward(dense_x, lS_i, bot_params, top_params, emb_tables)
    out = jax.block_until_ready(out)

    ref = jax.block_until_ready(
        dlrm_reference(dense_x, lS_i, bot_params, top_params, emb_tables))

    assert out.shape == (B, 1)
    assert bool(jnp.all((out >= 0.0) & (out <= 1.0)))
    max_err = float(jnp.max(jnp.abs(out - ref)))
    assert max_err < 5e-2, f"kernel vs reference mismatch: {max_err}"
    print("KERNEL_OK")
</pallas_src>

<mosaic_0001>
module attributes {stable_mosaic.version = 11 : i64} {
  func.func @_dlrm_fused_kernel(%arg0: i32, %arg1: memref<8x128xf32, #tpu.memory_space<vmem>>, %arg2: memref<8x6xi32, #tpu.memory_space<vmem>>, %arg3: memref<384x384xf32, #tpu.memory_space<vmem>>, %arg4: memref<128x128xbf16, #tpu.memory_space<vmem>>, %arg5: memref<128x128xbf16, #tpu.memory_space<vmem>>, %arg6: memref<1x128xf32, #tpu.memory_space<vmem>>, %arg7: memref<1x128xf32, #tpu.memory_space<vmem>>, %arg8: memref<896x128xf32, #tpu.memory_space<vmem>>, %arg9: memref<1x128xf32, #tpu.memory_space<vmem>>, %arg10: memref<128x128xbf16, #tpu.memory_space<vmem>>, %arg11: memref<128x128xbf16, #tpu.memory_space<vmem>>, %arg12: memref<1x128xf32, #tpu.memory_space<vmem>>, %arg13: memref<1x128xf32, #tpu.memory_space<vmem>>, %arg14: memref<8x128xf32, #tpu.memory_space<vmem>>) attributes {dimension_semantics = [#tpu.dimension_semantics<parallel>], iteration_bounds = array<i64: 2>, scalar_prefetch = 0 : i64, scratch_operands = 0 : i64, tpu.core_type = #tpu.core_type<tc>, window_params = [{transform_indices = @transform_0, window_bounds = array<i64: 8, 128>}, {transform_indices = @transform_1, window_bounds = array<i64: 8, 6>}, {pipeline_mode = #tpu.pipeline_mode<synchronous>, transform_indices = @transform_2, window_bounds = array<i64: 384, 384>}, {pipeline_mode = #tpu.pipeline_mode<synchronous>, transform_indices = @transform_3, window_bounds = array<i64: 128, 128>}, {pipeline_mode = #tpu.pipeline_mode<synchronous>, transform_indices = @transform_4, window_bounds = array<i64: 128, 128>}, {pipeline_mode = #tpu.pipeline_mode<synchronous>, transform_indices = @transform_5, window_bounds = array<i64: 1, 128>}, {pipeline_mode = #tpu.pipeline_mode<synchronous>, transform_indices = @transform_6, window_bounds = array<i64: 1, 128>}, {pipeline_mode = #tpu.pipeline_mode<synchronous>, transform_indices = @transform_7, window_bounds = array<i64: 896, 128>}, {pipeline_mode = #tpu.pipeline_mode<synchronous>, transform_indices = @transform_8, window_bounds = array<i64: 1, 128>}, {pipeline_mode = #tpu.pipeline_mode<synchronous>, transform_indices = @transform_9, window_bounds = array<i64: 128, 128>}, {pipeline_mode = #tpu.pipeline_mode<synchronous>, transform_indices = @transform_10, window_bounds = array<i64: 128, 128>}, {pipeline_mode = #tpu.pipeline_mode<synchronous>, transform_indices = @transform_11, window_bounds = array<i64: 1, 128>}, {pipeline_mode = #tpu.pipeline_mode<synchronous>, transform_indices = @transform_12, window_bounds = array<i64: 1, 128>}, {transform_indices = @transform_13, window_bounds = array<i64: 8, 128>}]} {
    %c0 = arith.constant 0 : index
    %c0_0 = arith.constant 0 : index
    %0 = vector.load %arg1[%c0, %c0_0] : memref<8x128xf32, #tpu.memory_space<vmem>>, vector<8x128xf32>
    %1 = arith.truncf %0 : vector<8x128xf32> to vector<8x128xbf16>
    %c0_1 = arith.constant 0 : index
    %c0_2 = arith.constant 0 : index
    %2 = vector.load %arg4[%c0_1, %c0_2] : memref<128x128xbf16, #tpu.memory_space<vmem>>, vector<128x128xbf16>
    %cst = arith.constant dense<0.000000e+00> : vector<8x128xf32>
    %3 = tpu.matmul %1, %2, %cst {dimension_numbers = #tpu.dot_dimension_numbers<[1], [0], [0], [1], [0, 0, 1, 1], [], []>} : vector<8x128xbf16>, vector<128x128xbf16>, vector<8x128xf32> -> vector<8x128xf32>
    %c0_3 = arith.constant 0 : index
    %c0_4 = arith.constant 0 : index
    %4 = vector.load %arg6[%c0_3, %c0_4] : memref<1x128xf32, #tpu.memory_space<vmem>>, vector<1x128xf32>
    %5 = vector.broadcast %4 : vector<1x128xf32> to vector<8x128xf32>
    %6 = arith.addf %3, %5 : vector<8x128xf32>
    %cst_5 = arith.constant 0.000000e+00 : f32
    %7 = vector.broadcast %cst_5 : f32 to vector<8x128xf32>
    %8 = arith.maximumf %6, %7 : vector<8x128xf32>
    %9 = arith.truncf %8 : vector<8x128xf32> to vector<8x128xbf16>
    %c0_6 = arith.constant 0 : index
    %c0_7 = arith.constant 0 : index
    %10 = vector.load %arg5[%c0_6, %c0_7] : memref<128x128xbf16, #tpu.memory_space<vmem>>, vector<128x128xbf16>
    %cst_8 = arith.constant dense<0.000000e+00> : vector<8x128xf32>
    %11 = tpu.matmul %9, %10, %cst_8 {dimension_numbers = #tpu.dot_dimension_numbers<[1], [0], [0], [1], [0, 0, 1, 1], [], []>} : vector<8x128xbf16>, vector<128x128xbf16>, vector<8x128xf32> -> vector<8x128xf32>
    %c0_9 = arith.constant 0 : index
    %c0_10 = arith.constant 0 : index
    %12 = vector.load %arg7[%c0_9, %c0_10] : memref<1x128xf32, #tpu.memory_space<vmem>>, vector<1x128xf32>
    %13 = vector.broadcast %12 : vector<1x128xf32> to vector<8x128xf32>
    %14 = arith.addf %11, %13 : vector<8x128xf32>
    %cst_11 = arith.constant 0.000000e+00 : f32
    %15 = vector.broadcast %cst_11 : f32 to vector<8x128xf32>
    %16 = arith.maximumf %14, %15 : vector<8x128xf32>
    %c0_12 = arith.constant 0 : index
    %c0_13 = arith.constant 0 : index
    %17 = vector.load %arg2[%c0_12, %c0_13] : memref<8x6xi32, #tpu.memory_space<vmem>>, vector<8x6xi32>
    %18 = tpu.iota {dimensions = array<i32: 1>} : vector<8x384xi32>
    %cst_14 = arith.constant 0.000000e+00 : f32
    %19 = vector.broadcast %cst_14 : f32 to vector<8x384xf32>
    %20 = vector.extract_strided_slice %17 {offsets = [0, 0], sizes = [8, 1], strides = [1, 1]} : vector<8x6xi32> to vector<8x1xi32>
    %21 = vector.broadcast %20 : vector<8x1xi32> to vector<8x384xi32>
    %22 = arith.cmpi eq, %18, %21 : vector<8x384xi32>
    %23 = arith.extui %22 : vector<8x384xi1> to vector<8x384xi32>
    %24 = arith.sitofp %23 : vector<8x384xi32> to vector<8x384xf32>
    %25 = arith.addf %19, %24 : vector<8x384xf32>
    %26 = vector.extract_strided_slice %17 {offsets = [0, 1], sizes = [8, 1], strides = [1, 1]} : vector<8x6xi32> to vector<8x1xi32>
    %27 = vector.broadcast %26 : vector<8x1xi32> to vector<8x384xi32>
    %28 = arith.cmpi eq, %18, %27 : vector<8x384xi32>
    %29 = arith.extui %28 : vector<8x384xi1> to vector<8x384xi32>
    %30 = arith.sitofp %29 : vector<8x384xi32> to vector<8x384xf32>
    %31 = arith.addf %25, %30 : vector<8x384xf32>
    %32 = vector.extract_strided_slice %17 {offsets = [0, 2], sizes = [8, 1], strides = [1, 1]} : vector<8x6xi32> to vector<8x1xi32>
    %33 = vector.broadcast %32 : vector<8x1xi32> to vector<8x384xi32>
    %34 = arith.cmpi eq, %18, %33 : vector<8x384xi32>
    %35 = arith.extui %34 : vector<8x384xi1> to vector<8x384xi32>
    %36 = arith.sitofp %35 : vector<8x384xi32> to vector<8x384xf32>
    %37 = arith.addf %31, %36 : vector<8x384xf32>
    %38 = vector.extract_strided_slice %17 {offsets = [0, 3], sizes = [8, 1], strides = [1, 1]} : vector<8x6xi32> to vector<8x1xi32>
    %39 = vector.broadcast %38 : vector<8x1xi32> to vector<8x384xi32>
    %40 = arith.cmpi eq, %18, %39 : vector<8x384xi32>
    %41 = arith.extui %40 : vector<8x384xi1> to vector<8x384xi32>
    %42 = arith.sitofp %41 : vector<8x384xi32> to vector<8x384xf32>
    %43 = arith.addf %37, %42 : vector<8x384xf32>
    %44 = vector.extract_strided_slice %17 {offsets = [0, 4], sizes = [8, 1], strides = [1, 1]} : vector<8x6xi32> to vector<8x1xi32>
    %45 = vector.broadcast %44 : vector<8x1xi32> to vector<8x384xi32>
    %46 = arith.cmpi eq, %18, %45 : vector<8x384xi32>
    %47 = arith.extui %46 : vector<8x384xi1> to vector<8x384xi32>
    %48 = arith.sitofp %47 : vector<8x384xi32> to vector<8x384xf32>
    %49 = arith.addf %43, %48 : vector<8x384xf32>
    %50 = vector.extract_strided_slice %17 {offsets = [0, 5], sizes = [8, 1], strides = [1, 1]} : vector<8x6xi32> to vector<8x1xi32>
    %51 = vector.broadcast %50 : vector<8x1xi32> to vector<8x384xi32>
    %52 = arith.cmpi eq, %18, %51 : vector<8x384xi32>
    %53 = arith.extui %52 : vector<8x384xi1> to vector<8x384xi32>
    %54 = arith.sitofp %53 : vector<8x384xi32> to vector<8x384xf32>
    %55 = arith.addf %49, %54 : vector<8x384xf32>
    %c0_15 = arith.constant 0 : index
    %c0_16 = arith.constant 0 : index
    %56 = vector.load %arg3[%c0_15, %c0_16] : memref<384x384xf32, #tpu.memory_space<vmem>>, vector<384x384xf32>
    %cst_17 = arith.constant dense<0.000000e+00> : vector<8x384xf32>
    %57 = tpu.matmul %55, %56, %cst_17 {dimension_numbers = #tpu.dot_dimension_numbers<[1], [0], [0], [1], [0, 0, 1, 1], [], []>} : vector<8x384xf32>, vector<384x384xf32>, vector<8x384xf32> -> vector<8x384xf32>
    %58 = vector.extract_strided_slice %57 {offsets = [0, 0], sizes = [8, 128], strides = [1, 1]} : vector<8x384xf32> to vector<8x128xf32>
    %59 = vector.extract_strided_slice %57 {offsets = [0, 128], sizes = [8, 128], strides = [1, 1]} : vector<8x384xf32> to vector<8x128xf32>
    %60 = vector.extract_strided_slice %57 {offsets = [0, 256], sizes = [8, 128], strides = [1, 1]} : vector<8x384xf32> to vector<8x128xf32>
    %61 = arith.mulf %58, %16 : vector<8x128xf32>
    %62 = arith.mulf %59, %16 : vector<8x128xf32>
    %63 = arith.mulf %59, %58 : vector<8x128xf32>
    %64 = arith.mulf %60, %16 : vector<8x128xf32>
    %65 = arith.mulf %60, %58 : vector<8x128xf32>
    %66 = arith.mulf %60, %59 : vector<8x128xf32>
    %67 = tpu.concatenate %16, %61, %62, %63, %64, %65, %66 in 1 : vector<8x128xf32>, vector<8x128xf32>, vector<8x128xf32>, vector<8x128xf32>, vector<8x128xf32>, vector<8x128xf32>, vector<8x128xf32> -> vector<8x896xf32>
    %c0_18 = arith.constant 0 : index
    %c0_19 = arith.constant 0 : index
    %68 = vector.load %arg8[%c0_18, %c0_19] : memref<896x128xf32, #tpu.memory_space<vmem>>, vector<896x128xf32>
    %cst_20 = arith.constant dense<0.000000e+00> : vector<8x128xf32>
    %69 = tpu.matmul %67, %68, %cst_20 {dimension_numbers = #tpu.dot_dimension_numbers<[1], [0], [0], [1], [0, 0, 1, 1], [], []>} : vector<8x896xf32>, vector<896x128xf32>, vector<8x128xf32> -> vector<8x128xf32>
    %c0_21 = arith.constant 0 : index
    %c0_22 = arith.constant 0 : index
    %70 = vector.load %arg9[%c0_21, %c0_22] : memref<1x128xf32, #tpu.memory_space<vmem>>, vector<1x128xf32>
    %71 = vector.broadcast %70 : vector<1x128xf32> to vector<8x128xf32>
    %72 = arith.addf %69, %71 : vector<8x128xf32>
    %cst_23 = arith.constant 0.000000e+00 : f32
    %73 = vector.broadcast %cst_23 : f32 to vector<8x128xf32>
    %74 = arith.maximumf %72, %73 : vector<8x128xf32>
    %75 = arith.truncf %74 : vector<8x128xf32> to vector<8x128xbf16>
    %c0_24 = arith.constant 0 : index
    %c0_25 = arith.constant 0 : index
    %76 = vector.load %arg10[%c0_24, %c0_25] : memref<128x128xbf16, #tpu.memory_space<vmem>>, vector<128x128xbf16>
    %cst_26 = arith.constant dense<0.000000e+00> : vector<8x128xf32>
    %77 = tpu.matmul %75, %76, %cst_26 {dimension_numbers = #tpu.dot_dimension_numbers<[1], [0], [0], [1], [0, 0, 1, 1], [], []>} : vector<8x128xbf16>, vector<128x128xbf16>, vector<8x128xf32> -> vector<8x128xf32>
    %c0_27 = arith.constant 0 : index
    %c0_28 = arith.constant 0 : index
    %78 = vector.load %arg12[%c0_27, %c0_28] : memref<1x128xf32, #tpu.memory_space<vmem>>, vector<1x128xf32>
    %79 = vector.broadcast %78 : vector<1x128xf32> to vector<8x128xf32>
    %80 = arith.addf %77, %79 : vector<8x128xf32>
    %cst_29 = arith.constant 0.000000e+00 : f32
    %81 = vector.broadcast %cst_29 : f32 to vector<8x128xf32>
    %82 = arith.maximumf %80, %81 : vector<8x128xf32>
    %83 = arith.truncf %82 : vector<8x128xf32> to vector<8x128xbf16>
    %c0_30 = arith.constant 0 : index
    %c0_31 = arith.constant 0 : index
    %84 = vector.load %arg11[%c0_30, %c0_31] : memref<128x128xbf16, #tpu.memory_space<vmem>>, vector<128x128xbf16>
    %cst_32 = arith.constant dense<0.000000e+00> : vector<8x128xf32>
    %85 = tpu.matmul %83, %84, %cst_32 {dimension_numbers = #tpu.dot_dimension_numbers<[1], [0], [0], [1], [0, 0, 1, 1], [], []>} : vector<8x128xbf16>, vector<128x128xbf16>, vector<8x128xf32> -> vector<8x128xf32>
    %c0_33 = arith.constant 0 : index
    %c0_34 = arith.constant 0 : index
    %86 = vector.load %arg13[%c0_33, %c0_34] : memref<1x128xf32, #tpu.memory_space<vmem>>, vector<1x128xf32>
    %87 = vector.broadcast %86 : vector<1x128xf32> to vector<8x128xf32>
    %88 = arith.addf %85, %87 : vector<8x128xf32>
    %89 = arith.negf %88 : vector<8x128xf32>
    %90 = math.exp %89 : vector<8x128xf32>
    %cst_35 = arith.constant 1.000000e+00 : f32
    %91 = vector.broadcast %cst_35 : f32 to vector<8x128xf32>
    %92 = arith.addf %91, %90 : vector<8x128xf32>
    %93 = arith.divf %91, %92 : vector<8x128xf32>
    %c0_36 = arith.constant 0 : index
    %c0_37 = arith.constant 0 : index
    %94 = vector.load %arg14[%c0_36, %c0_37] : memref<8x128xf32, #tpu.memory_space<vmem>>, vector<8x128xf32>
    tpu.vector_store %arg14[%c0_36, %c0_37], %93 {strides = array<i32>} : memref<8x128xf32, #tpu.memory_space<vmem>>, vector<8x128xf32>,
    return
  }
  func.func @transform_0(%arg0: i32) -> (i32, i32) {
    %c0_i32 = arith.constant 0 : i32
    %c0_i32_0 = arith.constant 0 : i32
    return %arg0, %c0_i32 : i32, i32
  }
  func.func @transform_1(%arg0: i32) -> (i32, i32) {
    %c0_i32 = arith.constant 0 : i32
    %c0_i32_0 = arith.constant 0 : i32
    return %arg0, %c0_i32 : i32, i32
  }
  func.func @transform_2(%arg0: i32) -> (i32, i32) {
    %c0_i32 = arith.constant 0 : i32
    %c0_i32_0 = arith.constant 0 : i32
    %c0_i32_1 = arith.constant 0 : i32
    return %c0_i32, %c0_i32_0 : i32, i32
  }
  func.func @transform_3(%arg0: i32) -> (i32, i32) {
    %c0_i32 = arith.constant 0 : i32
    %c0_i32_0 = arith.constant 0 : i32
    %c0_i32_1 = arith.constant 0 : i32
    return %c0_i32, %c0_i32_0 : i32, i32
  }
  func.func @transform_4(%arg0: i32) -> (i32, i32) {
    %c0_i32 = arith.constant 0 : i32
    %c0_i32_0 = arith.constant 0 : i32
    %c0_i32_1 = arith.constant 0 : i32
    return %c0_i32, %c0_i32_0 : i32, i32
  }
  func.func @transform_5(%arg0: i32) -> (i32, i32) {
    %c0_i32 = arith.constant 0 : i32
    %c0_i32_0 = arith.constant 0 : i32
    %c0_i32_1 = arith.constant 0 : i32
    return %c0_i32, %c0_i32_0 : i32, i32
  }
  func.func @transform_6(%arg0: i32) -> (i32, i32) {
    %c0_i32 = arith.constant 0 : i32
    %c0_i32_0 = arith.constant 0 : i32
    %c0_i32_1 = arith.constant 0 : i32
    return %c0_i32, %c0_i32_0 : i32, i32
  }
  func.func @transform_7(%arg0: i32) -> (i32, i32) {
    %c0_i32 = arith.constant 0 : i32
    %c0_i32_0 = arith.constant 0 : i32
    %c0_i32_1 = arith.constant 0 : i32
    return %c0_i32, %c0_i32_0 : i32, i32
  }
  func.func @transform_8(%arg0: i32) -> (i32, i32) {
    %c0_i32 = arith.constant 0 : i32
    %c0_i32_0 = arith.constant 0 : i32
    %c0_i32_1 = arith.constant 0 : i32
    return %c0_i32, %c0_i32_0 : i32, i32
  }
  func.func @transform_9(%arg0: i32) -> (i32, i32) {
    %c0_i32 = arith.constant 0 : i32
    %c0_i32_0 = arith.constant 0 : i32
    %c0_i32_1 = arith.constant 0 : i32
    return %c0_i32, %c0_i32_0 : i32, i32
  }
  func.func @transform_10(%arg0: i32) -> (i32, i32) {
    %c0_i32 = arith.constant 0 : i32
    %c0_i32_0 = arith.constant 0 : i32
    %c0_i32_1 = arith.constant 0 : i32
    return %c0_i32, %c0_i32_0 : i32, i32
  }
  func.func @transform_11(%arg0: i32) -> (i32, i32) {
    %c0_i32 = arith.constant 0 : i32
    %c0_i32_0 = arith.constant 0 : i32
    %c0_i32_1 = arith.constant 0 : i32
    return %c0_i32, %c0_i32_0 : i32, i32
  }
  func.func @transform_12(%arg0: i32) -> (i32, i32) {
    %c0_i32 = arith.constant 0 : i32
    %c0_i32_0 = arith.constant 0 : i32
    %c0_i32_1 = arith.constant 0 : i32
    return %c0_i32, %c0_i32_0 : i32, i32
  }
  func.func @transform_13(%arg0: i32) -> (i32, i32) {
    %c0_i32 = arith.constant 0 : i32
    %c0_i32_0 = arith.constant 0 : i32
    return %arg0, %c0_i32 : i32, i32
  }
}

module attributes {stable_mosaic.version = 11 : i64} {
  func.func @_dlrm_fused_kernel(%arg0: i32, %arg1: memref<8x128xf32, #tpu.memory_space<vmem>>, %arg2: memref<8x6xi32, #tpu.memory_space<vmem>>, %arg3: memref<384x384xf32, #tpu.memory_space<vmem>>, %arg4: memref<128x128xbf16, #tpu.memory_space<vmem>>, %arg5: memref<128x128xbf16, #tpu.memory_space<vmem>>, %arg6: memref<1x128xf32, #tpu.memory_space<vmem>>, %arg7: memref<1x128xf32, #tpu.memory_space<vmem>>, %arg8: memref<896x128xf32, #tpu.memory_space<vmem>>, %arg9: memref<1x128xf32, #tpu.memory_space<vmem>>, %arg10: memref<128x128xbf16, #tpu.memory_space<vmem>>, %arg11: memref<128x128xbf16, #tpu.memory_space<vmem>>, %arg12: memref<1x128xf32, #tpu.memory_space<vmem>>, %arg13: memref<1x128xf32, #tpu.memory_space<vmem>>, %arg14: memref<8x128xf32, #tpu.memory_space<vmem>>) attributes {dimension_semantics = [#tpu.dimension_semantics<parallel>], iteration_bounds = array<i64: 2>, scalar_prefetch = 0 : i64, scratch_operands = 0 : i64, tpu.core_type = #tpu.core_type<tc>, window_params = [{transform_indices = @transform_0, window_bounds = array<i64: 8, 128>}, {transform_indices = @transform_1, window_bounds = array<i64: 8, 6>}, {pipeline_mode = #tpu.pipeline_mode<synchronous>, transform_indices = @transform_2, window_bounds = array<i64: 384, 384>}, {pipeline_mode = #tpu.pipeline_mode<synchronous>, transform_indices = @transform_3, window_bounds = array<i64: 128, 128>}, {pipeline_mode = #tpu.pipeline_mode<synchronous>, transform_indices = @transform_4, window_bounds = array<i64: 128, 128>}, {pipeline_mode = #tpu.pipeline_mode<synchronous>, transform_indices = @transform_5, window_bounds = array<i64: 1, 128>}, {pipeline_mode = #tpu.pipeline_mode<synchronous>, transform_indices = @transform_6, window_bounds = array<i64: 1, 128>}, {pipeline_mode = #tpu.pipeline_mode<synchronous>, transform_indices = @transform_7, window_bounds = array<i64: 896, 128>}, {pipeline_mode = #tpu.pipeline_mode<synchronous>, transform_indices = @transform_8, window_bounds = array<i64: 1, 128>}, {pipeline_mode = #tpu.pipeline_mode<synchronous>, transform_indices = @transform_9, window_bounds = array<i64: 128, 128>}, {pipeline_mode = #tpu.pipeline_mode<synchronous>, transform_indices = @transform_10, window_bounds = array<i64: 128, 128>}, {pipeline_mode = #tpu.pipeline_mode<synchronous>, transform_indices = @transform_11, window_bounds = array<i64: 1, 128>}, {pipeline_mode = #tpu.pipeline_mode<synchronous>, transform_indices = @transform_12, window_bounds = array<i64: 1, 128>}, {transform_indices = @transform_13, window_bounds = array<i64: 8, 128>}]} {
    %c0 = arith.constant 0 : index
    %c0_0 = arith.constant 0 : index
    %0 = vector.load %arg1[%c0, %c0_0] : memref<8x128xf32, #tpu.memory_space<vmem>>, vector<8x128xf32>
    %1 = arith.truncf %0 : vector<8x128xf32> to vector<8x128xbf16>
    %c0_1 = arith.constant 0 : index
    %c0_2 = arith.constant 0 : index
    %2 = vector.load %arg4[%c0_1, %c0_2] : memref<128x128xbf16, #tpu.memory_space<vmem>>, vector<128x128xbf16>
    %cst = arith.constant dense<0.000000e+00> : vector<8x128xf32>
    %3 = tpu.matmul %1, %2, %cst {dimension_numbers = #tpu.dot_dimension_numbers<[1], [0], [0], [1], [0, 0, 1, 1], [], []>} : vector<8x128xbf16>, vector<128x128xbf16>, vector<8x128xf32> -> vector<8x128xf32>
    %c0_3 = arith.constant 0 : index
    %c0_4 = arith.constant 0 : index
    %4 = vector.load %arg6[%c0_3, %c0_4] : memref<1x128xf32, #tpu.memory_space<vmem>>, vector<1x128xf32>
    %5 = vector.broadcast %4 : vector<1x128xf32> to vector<8x128xf32>
    %6 = arith.addf %3, %5 : vector<8x128xf32>
    %cst_5 = arith.constant 0.000000e+00 : f32
    %7 = vector.broadcast %cst_5 : f32 to vector<8x128xf32>
    %8 = arith.maximumf %6, %7 : vector<8x128xf32>
    %9 = arith.truncf %8 : vector<8x128xf32> to vector<8x128xbf16>
    %c0_6 = arith.constant 0 : index
    %c0_7 = arith.constant 0 : index
    %10 = vector.load %arg5[%c0_6, %c0_7] : memref<128x128xbf16, #tpu.memory_space<vmem>>, vector<128x128xbf16>
    %cst_8 = arith.constant dense<0.000000e+00> : vector<8x128xf32>
    %11 = tpu.matmul %9, %10, %cst_8 {dimension_numbers = #tpu.dot_dimension_numbers<[1], [0], [0], [1], [0, 0, 1, 1], [], []>} : vector<8x128xbf16>, vector<128x128xbf16>, vector<8x128xf32> -> vector<8x128xf32>
    %c0_9 = arith.constant 0 : index
    %c0_10 = arith.constant 0 : index
    %12 = vector.load %arg7[%c0_9, %c0_10] : memref<1x128xf32, #tpu.memory_space<vmem>>, vector<1x128xf32>
    %13 = vector.broadcast %12 : vector<1x128xf32> to vector<8x128xf32>
    %14 = arith.addf %11, %13 : vector<8x128xf32>
    %cst_11 = arith.constant 0.000000e+00 : f32
    %15 = vector.broadcast %cst_11 : f32 to vector<8x128xf32>
    %16 = arith.maximumf %14, %15 : vector<8x128xf32>
    %c0_12 = arith.constant 0 : index
    %c0_13 = arith.constant 0 : index
    %17 = vector.load %arg2[%c0_12, %c0_13] : memref<8x6xi32, #tpu.memory_space<vmem>>, vector<8x6xi32>
    %18 = tpu.iota {dimensions = array<i32: 1>} : vector<8x384xi32>
    %cst_14 = arith.constant 0.000000e+00 : f32
    %19 = vector.broadcast %cst_14 : f32 to vector<8x384xf32>
    %20 = vector.extract_strided_slice %17 {offsets = [0, 0], sizes = [8, 1], strides = [1, 1]} : vector<8x6xi32> to vector<8x1xi32>
    %21 = vector.broadcast %20 : vector<8x1xi32> to vector<8x384xi32>
    %22 = arith.cmpi eq, %18, %21 : vector<8x384xi32>
    %23 = arith.extui %22 : vector<8x384xi1> to vector<8x384xi32>
    %24 = arith.sitofp %23 : vector<8x384xi32> to vector<8x384xf32>
    %25 = arith.addf %19, %24 : vector<8x384xf32>
    %26 = vector.extract_strided_slice %17 {offsets = [0, 1], sizes = [8, 1], strides = [1, 1]} : vector<8x6xi32> to vector<8x1xi32>
    %27 = vector.broadcast %26 : vector<8x1xi32> to vector<8x384xi32>
    %28 = arith.cmpi eq, %18, %27 : vector<8x384xi32>
    %29 = arith.extui %28 : vector<8x384xi1> to vector<8x384xi32>
    %30 = arith.sitofp %29 : vector<8x384xi32> to vector<8x384xf32>
    %31 = arith.addf %25, %30 : vector<8x384xf32>
    %32 = vector.extract_strided_slice %17 {offsets = [0, 2], sizes = [8, 1], strides = [1, 1]} : vector<8x6xi32> to vector<8x1xi32>
    %33 = vector.broadcast %32 : vector<8x1xi32> to vector<8x384xi32>
    %34 = arith.cmpi eq, %18, %33 : vector<8x384xi32>
    %35 = arith.extui %34 : vector<8x384xi1> to vector<8x384xi32>
    %36 = arith.sitofp %35 : vector<8x384xi32> to vector<8x384xf32>
    %37 = arith.addf %31, %36 : vector<8x384xf32>
    %38 = vector.extract_strided_slice %17 {offsets = [0, 3], sizes = [8, 1], strides = [1, 1]} : vector<8x6xi32> to vector<8x1xi32>
    %39 = vector.broadcast %38 : vector<8x1xi32> to vector<8x384xi32>
    %40 = arith.cmpi eq, %18, %39 : vector<8x384xi32>
    %41 = arith.extui %40 : vector<8x384xi1> to vector<8x384xi32>
    %42 = arith.sitofp %41 : vector<8x384xi32> to vector<8x384xf32>
    %43 = arith.addf %37, %42 : vector<8x384xf32>
    %44 = vector.extract_strided_slice %17 {offsets = [0, 4], sizes = [8, 1], strides = [1, 1]} : vector<8x6xi32> to vector<8x1xi32>
    %45 = vector.broadcast %44 : vector<8x1xi32> to vector<8x384xi32>
    %46 = arith.cmpi eq, %18, %45 : vector<8x384xi32>
    %47 = arith.extui %46 : vector<8x384xi1> to vector<8x384xi32>
    %48 = arith.sitofp %47 : vector<8x384xi32> to vector<8x384xf32>
    %49 = arith.addf %43, %48 : vector<8x384xf32>
    %50 = vector.extract_strided_slice %17 {offsets = [0, 5], sizes = [8, 1], strides = [1, 1]} : vector<8x6xi32> to vector<8x1xi32>
    %51 = vector.broadcast %50 : vector<8x1xi32> to vector<8x384xi32>
    %52 = arith.cmpi eq, %18, %51 : vector<8x384xi32>
    %53 = arith.extui %52 : vector<8x384xi1> to vector<8x384xi32>
    %54 = arith.sitofp %53 : vector<8x384xi32> to vector<8x384xf32>
    %55 = arith.addf %49, %54 : vector<8x384xf32>
    %c0_15 = arith.constant 0 : index
    %c0_16 = arith.constant 0 : index
    %56 = vector.load %arg3[%c0_15, %c0_16] : memref<384x384xf32, #tpu.memory_space<vmem>>, vector<384x384xf32>
    %cst_17 = arith.constant dense<0.000000e+00> : vector<8x384xf32>
    %57 = tpu.matmul %55, %56, %cst_17 {dimension_numbers = #tpu.dot_dimension_numbers<[1], [0], [0], [1], [0, 0, 1, 1], [], []>} : vector<8x384xf32>, vector<384x384xf32>, vector<8x384xf32> -> vector<8x384xf32>
    %58 = vector.extract_strided_slice %57 {offsets = [0, 0], sizes = [8, 128], strides = [1, 1]} : vector<8x384xf32> to vector<8x128xf32>
    %59 = vector.extract_strided_slice %57 {offsets = [0, 128], sizes = [8, 128], strides = [1, 1]} : vector<8x384xf32> to vector<8x128xf32>
    %60 = vector.extract_strided_slice %57 {offsets = [0, 256], sizes = [8, 128], strides = [1, 1]} : vector<8x384xf32> to vector<8x128xf32>
    %61 = arith.mulf %58, %16 : vector<8x128xf32>
    %62 = arith.mulf %59, %16 : vector<8x128xf32>
    %63 = arith.mulf %59, %58 : vector<8x128xf32>
    %64 = arith.mulf %60, %16 : vector<8x128xf32>
    %65 = arith.mulf %60, %58 : vector<8x128xf32>
    %66 = arith.mulf %60, %59 : vector<8x128xf32>
    %67 = tpu.concatenate %16, %61, %62, %63, %64, %65, %66 in 1 : vector<8x128xf32>, vector<8x128xf32>, vector<8x128xf32>, vector<8x128xf32>, vector<8x128xf32>, vector<8x128xf32>, vector<8x128xf32> -> vector<8x896xf32>
    %c0_18 = arith.constant 0 : index
    %c0_19 = arith.constant 0 : index
    %68 = vector.load %arg8[%c0_18, %c0_19] : memref<896x128xf32, #tpu.memory_space<vmem>>, vector<896x128xf32>
    %cst_20 = arith.constant dense<0.000000e+00> : vector<8x128xf32>
    %69 = tpu.matmul %67, %68, %cst_20 {dimension_numbers = #tpu.dot_dimension_numbers<[1], [0], [0], [1], [0, 0, 1, 1], [], []>} : vector<8x896xf32>, vector<896x128xf32>, vector<8x128xf32> -> vector<8x128xf32>
    %c0_21 = arith.constant 0 : index
    %c0_22 = arith.constant 0 : index
    %70 = vector.load %arg9[%c0_21, %c0_22] : memref<1x128xf32, #tpu.memory_space<vmem>>, vector<1x128xf32>
    %71 = vector.broadcast %70 : vector<1x128xf32> to vector<8x128xf32>
    %72 = arith.addf %69, %71 : vector<8x128xf32>
    %cst_23 = arith.constant 0.000000e+00 : f32
    %73 = vector.broadcast %cst_23 : f32 to vector<8x128xf32>
    %74 = arith.maximumf %72, %73 : vector<8x128xf32>
    %75 = arith.truncf %74 : vector<8x128xf32> to vector<8x128xbf16>
    %c0_24 = arith.constant 0 : index
    %c0_25 = arith.constant 0 : index
    %76 = vector.load %arg10[%c0_24, %c0_25] : memref<128x128xbf16, #tpu.memory_space<vmem>>, vector<128x128xbf16>
    %cst_26 = arith.constant dense<0.000000e+00> : vector<8x128xf32>
    %77 = tpu.matmul %75, %76, %cst_26 {dimension_numbers = #tpu.dot_dimension_numbers<[1], [0], [0], [1], [0, 0, 1, 1], [], []>} : vector<8x128xbf16>, vector<128x128xbf16>, vector<8x128xf32> -> vector<8x128xf32>
    %c0_27 = arith.constant 0 : index
    %c0_28 = arith.constant 0 : index
    %78 = vector.load %arg12[%c0_27, %c0_28] : memref<1x128xf32, #tpu.memory_space<vmem>>, vector<1x128xf32>
    %79 = vector.broadcast %78 : vector<1x128xf32> to vector<8x128xf32>
    %80 = arith.addf %77, %79 : vector<8x128xf32>
    %cst_29 = arith.constant 0.000000e+00 : f32
    %81 = vector.broadcast %cst_29 : f32 to vector<8x128xf32>
    %82 = arith.maximumf %80, %81 : vector<8x128xf32>
    %83 = arith.truncf %82 : vector<8x128xf32> to vector<8x128xbf16>
    %c0_30 = arith.constant 0 : index
    %c0_31 = arith.constant 0 : index
    %84 = vector.load %arg11[%c0_30, %c0_31] : memref<128x128xbf16, #tpu.memory_space<vmem>>, vector<128x128xbf16>
    %cst_32 = arith.constant dense<0.000000e+00> : vector<8x128xf32>
    %85 = tpu.matmul %83, %84, %cst_32 {dimension_numbers = #tpu.dot_dimension_numbers<[1], [0], [0], [1], [0, 0, 1, 1], [], []>} : vector<8x128xbf16>, vector<128x128xbf16>, vector<8x128xf32> -> vector<8x128xf32>
    %c0_33 = arith.constant 0 : index
    %c0_34 = arith.constant 0 : index
    %86 = vector.load %arg13[%c0_33, %c0_34] : memref<1x128xf32, #tpu.memory_space<vmem>>, vector<1x128xf32>
    %87 = vector.broadcast %86 : vector<1x128xf32> to vector<8x128xf32>
    %88 = arith.addf %85, %87 : vector<8x128xf32>
    %89 = arith.negf %88 : vector<8x128xf32>
    %90 = math.exp %89 : vector<8x128xf32>
    %cst_35 = arith.constant 1.000000e+00 : f32
    %91 = vector.broadcast %cst_35 : f32 to vector<8x128xf32>
    %92 = arith.addf %91, %90 : vector<8x128xf32>
    %93 = arith.divf %91, %92 : vector<8x128xf32>
    %c0_36 = arith.constant 0 : index
    %c0_37 = arith.constant 0 : index
    %94 = vector.load %arg14[%c0_36, %c0_37] : memref<8x128xf32, #tpu.memory_space<vmem>>, vector<8x128xf32>
    tpu.vector_store %arg14[%c0_36, %c0_37], %93 {strides = array<i32>} : memref<8x128xf32, #tpu.memory_space<vmem>>, vector<8x128xf32>,
    return
  }
  func.func @transform_0(%arg0: i32) -> (i32, i32) {
    %c0_i32 = arith.constant 0 : i32
    %c0_i32_0 = arith.constant 0 : i32
    return %arg0, %c0_i32 : i32, i32
  }
  func.func @transform_1(%arg0: i32) -> (i32, i32) {
    %c0_i32 = arith.constant 0 : i32
    %c0_i32_0 = arith.constant 0 : i32
    return %arg0, %c0_i32 : i32, i32
  }
  func.func @transform_2(%arg0: i32) -> (i32, i32) {
    %c0_i32 = arith.constant 0 : i32
    %c0_i32_0 = arith.constant 0 : i32
    %c0_i32_1 = arith.constant 0 : i32
    return %c0_i32, %c0_i32_0 : i32, i32
  }
  func.func @transform_3(%arg0: i32) -> (i32, i32) {
    %c0_i32 = arith.constant 0 : i32
    %c0_i32_0 = arith.constant 0 : i32
    %c0_i32_1 = arith.constant 0 : i32
    return %c0_i32, %c0_i32_0 : i32, i32
  }
  func.func @transform_4(%arg0: i32) -> (i32, i32) {
    %c0_i32 = arith.constant 0 : i32
    %c0_i32_0 = arith.constant 0 : i32
    %c0_i32_1 = arith.constant 0 : i32
    return %c0_i32, %c0_i32_0 : i32, i32
  }
  func.func @transform_5(%arg0: i32) -> (i32, i32) {
    %c0_i32 = arith.constant 0 : i32
    %c0_i32_0 = arith.constant 0 : i32
    %c0_i32_1 = arith.constant 0 : i32
    return %c0_i32, %c0_i32_0 : i32, i32
  }
  func.func @transform_6(%arg0: i32) -> (i32, i32) {
    %c0_i32 = arith.constant 0 : i32
    %c0_i32_0 = arith.constant 0 : i32
    %c0_i32_1 = arith.constant 0 : i32
    return %c0_i32, %c0_i32_0 : i32, i32
  }
  func.func @transform_7(%arg0: i32) -> (i32, i32) {
    %c0_i32 = arith.constant 0 : i32
    %c0_i32_0 = arith.constant 0 : i32
    %c0_i32_1 = arith.constant 0 : i32
    return %c0_i32, %c0_i32_0 : i32, i32
  }
  func.func @transform_8(%arg0: i32) -> (i32, i32) {
    %c0_i32 = arith.constant 0 : i32
    %c0_i32_0 = arith.constant 0 : i32
    %c0_i32_1 = arith.constant 0 : i32
    return %c0_i32, %c0_i32_0 : i32, i32
  }
  func.func @transform_9(%arg0: i32) -> (i32, i32) {
    %c0_i32 = arith.constant 0 : i32
    %c0_i32_0 = arith.constant 0 : i32
    %c0_i32_1 = arith.constant 0 : i32
    return %c0_i32, %c0_i32_0 : i32, i32
  }
  func.func @transform_10(%arg0: i32) -> (i32, i32) {
    %c0_i32 = arith.constant 0 : i32
    %c0_i32_0 = arith.constant 0 : i32
    %c0_i32_1 = arith.constant 0 : i32
    return %c0_i32, %c0_i32_0 : i32, i32
  }
  func.func @transform_11(%arg0: i32) -> (i32, i32) {
    %c0_i32 = arith.constant 0 : i32
    %c0_i32_0 = arith.constant 0 : i32
    %c0_i32_1 = arith.constant 0 : i32
    return %c0_i32, %c0_i32_0 : i32, i32
  }
  func.func @transform_12(%arg0: i32) -> (i32, i32) {
    %c0_i32 = arith.constant 0 : i32
    %c0_i32_0 = arith.constant 0 : i32
    %c0_i32_1 = arith.constant 0 : i32
    return %c0_i32, %c0_i32_0 : i32, i32
  }
  func.func @transform_13(%arg0: i32) -> (i32, i32) {
    %c0_i32 = arith.constant 0 : i32
    %c0_i32_0 = arith.constant 0 : i32
    return %arg0, %c0_i32 : i32, i32
  }
}

</mosaic_0001>

<llo_original>
// kernel: tpu_custom_call.1
$region0: #{tpu_custom_call.1}
  #allocation0 [shape = 'u32[]', space=smem, size = 0x4, offset = 0x4, fixed_abs, tag = 'smem constant byte address 0x4 - core index']
  #allocation1 [shape = 'u32[144,128]{1,0:T(1,128)}', space=vmem, size = 0x12000, scoped, tag = 'internal scratch']
  %s0 = inlined_call_operand.vmem [shape: f32[16,128], index: 0, kind: input, shape index: {}]
  %s1 = inlined_call_operand.vmem [shape: s32[16,6], index: 1, kind: input, shape index: {}]
  %s2 = inlined_call_operand.hbm [shape: f32[384,384], index: 2, kind: input, shape index: {}]
  %s3 = inlined_call_operand.hbm [shape: bf16[128,128], index: 3, kind: input, shape index: {}]
  %s4 = inlined_call_operand.hbm [shape: bf16[128,128], index: 4, kind: input, shape index: {}]
  %s5 = inlined_call_operand.vmem [shape: f32[1,128], index: 5, kind: input, shape index: {}]
  %s6 = inlined_call_operand.vmem [shape: f32[1,128], index: 6, kind: input, shape index: {}]
  %s7 = inlined_call_operand.hbm [shape: f32[896,128], index: 7, kind: input, shape index: {}]
  %s8 = inlined_call_operand.vmem [shape: f32[1,128], index: 8, kind: input, shape index: {}]
  %s9 = inlined_call_operand.hbm [shape: bf16[128,128], index: 9, kind: input, shape index: {}]
  %s10 = inlined_call_operand.hbm [shape: bf16[128,128], index: 10, kind: input, shape index: {}]
  %s11 = inlined_call_operand.vmem [shape: f32[1,128], index: 11, kind: input, shape index: {}]
  %s12 = inlined_call_operand.vmem [shape: f32[1,128], index: 12, kind: input, shape index: {}]
  %s13 = inlined_call_operand.hbm [shape: f32[16,128], index: 13, kind: output, shape index: {}]
  %s14 = sld [smem:[#allocation0]]
  $region109: #{tpu_custom_call.1} parent=0
    _
  %s16 = ssub.s32 1, %s14
  %s17 = scalar_select 0, %s16, %s14
  $region1: #{tpu_custom_call.1} parent=0
    #allocation2 [shape = 'u8[589824]{0}', space=vmem, size = 0x90000, scoped, tag = 'input window, operand 2, single buffered']
    #allocation3 [shape = 's32[2]{0}', space=sflag, size = 0x8, scoped, tag = 'scoped memory for tpu_custom_call.1']
    #allocation4 [shape = 's32[2]{0}', space=sflag, size = 0x8, scoped, tag = 'scoped memory for tpu_custom_call.1']
    #allocation5 [shape = 'u8[32768]{0}', space=vmem, size = 0x8000, scoped, tag = 'input window, operand 3, single buffered']
    #allocation6 [shape = 's32[1]{0}', space=sflag, size = 0x4, scoped, tag = 'scoped memory for tpu_custom_call.1']
    #allocation7 [shape = 'u8[32768]{0}', space=vmem, size = 0x8000, scoped, tag = 'input window, operand 4, single buffered']
    #allocation8 [shape = 'u8[458752]{0}', space=vmem, size = 0x70000, scoped, tag = 'input window, operand 7, single buffered']
    #allocation9 [shape = 's32[1]{0}', space=sflag, size = 0x4, scoped, tag = 'scoped memory for tpu_custom_call.1']
    #allocation10 [shape = 'u8[32768]{0}', space=vmem, size = 0x8000, scoped, tag = 'input window, operand 9, single buffered']
    #allocation11 [shape = 'u8[32768]{0}', space=vmem, size = 0x8000, scoped, tag = 'input window, operand 10, single buffered']
    #allocation12 [shape = 's32[1]{0}', space=sflag, size = 0x4, scoped, tag = 'scoped memory for tpu_custom_call.1']
    #allocation13 [shape = 'u8[8192]{0}', space=vmem, size = 0x2000, scoped, tag = 'output window, operand 0']
    %18 = vsyncpa [#allocation3], 0
    %19 = vsyncpa [#allocation6], 0
    %20 = vsyncpa [#allocation9], 0
    %21 = vsyncpa [#allocation12], 0
    %22 = vsyncpa [#allocation4], 0
    %s23 = scalar_lea.sflag [#allocation4], 1
    %24 = vsyncpa %s23, 0
    loop: start=0, step=1, limit=4
    $region2: #{tpu_custom_call.1} parent=1 // loop_pre_header
      _
    $region3: #{tpu_custom_call.1} parent=1 // loop_header
      %s26 = sphi 0, %s30
      %p27 = scmp.ge.s32.totalorder %s26, 4
      %s36 = sphi 0, %s38
      %s39 = sphi 0, %s36
      %s40 = sphi 0, %s39
      %s56 = sphi 0, %s40
      %s62 = sphi 0, %s64
      %s65 = sphi 0, %s62
      %s66 = sphi 0, %s65
      %s82 = sphi 0, %s66
      %s86 = sphi 0, %s86
      %s88 = sphi 0, %s86
      %s89 = sphi 0, %s88
      %s103 = sphi 0, %s89
      %s107 = sphi 0, %s107
      %s109 = sphi 0, %s107
      %s110 = sphi 0, %s109
      %s124 = sphi 0, %s110
      %s128 = sphi 0, %s128
      %s130 = sphi 0, %s128
      %s131 = sphi 0, %s130
      %s145 = sphi 0, %s131
      %s149 = sphi 0, %s149
      %s151 = sphi 0, %s149
      %s152 = sphi 0, %s151
      %s166 = sphi 0, %s152
      %s170 = sphi 0, %s170
      %s172 = sphi 0, %s170
      %s173 = sphi 0, %s172
      %s187 = sphi 0, %s173
      %s191 = sphi 0, %s191
      %s193 = sphi 0, %s191
      %s194 = sphi 0, %s193
      %s208 = sphi 0, %s194
      %s212 = sphi 0, %s212
      %s214 = sphi 0, %s212
      %s215 = sphi 0, %s214
      %s229 = sphi 0, %s215
      %s233 = sphi 0, %s233
      %s235 = sphi 0, %s233
      %s236 = sphi 0, %s235
      %s250 = sphi 0, %s236
      %s254 = sphi 0, %s254
      %s256 = sphi 0, %s254
      %s257 = sphi 0, %s256
      %s271 = sphi 0, %s257
      %s275 = sphi 0, %s275
      %s277 = sphi 0, %s275
      %s278 = sphi 0, %s277
      %s292 = sphi 0, %s278
      %s296 = sphi 0, %s296
      %s298 = sphi 0, %s296
      %s299 = sphi 0, %s298
      %s313 = sphi 0, %s299
      %s319 = sphi 0, %s321
      %s322 = sphi 0, %s319
      %s323 = sphi 0, %s322
      %s339 = sphi 0, %s323
    $region4: #{tpu_custom_call.1} parent=1 // loop_header_branch
      %29 = sbr.rel (%p27) target = $region8
    $region5: #{tpu_custom_call.1} parent=1 // loop_body
      %s31 = ssub.s32 %s26, 1
      %s32 = ssub.s32 %s26, 2
      %s33 = sadd.s32 %s26, 1
      %s34 = ssub.s32 %s26, %s33
      %p35 = scmp.eq.s32.totalorder %s34, 0
      %s37 = sadd.s32 %s36, 1
      %s38 = scalar_select %p35, %s36, %s37
      %p41 = pneg %p35
      %p42 = scmp.eq.s32.totalorder %s26, 1
      %p43 = por %p41, %p42
      %p44 = scmp.ne.s32.totalorder %s36, %s39
      %p45 = scmp.eq.s32.totalorder %s26, 0
      %p46 = por %p44, %p45
      %p47 = scmp.ne.s32.totalorder %s36, %s39
      %p48 = scmp.eq.s32.totalorder %s31, 1
      %p49 = por %p47, %p48
      %p50 = scmp.ne.s32.totalorder %s39, %s40
      %p51 = scmp.eq.s32.totalorder %s31, 0
      %p52 = por %p50, %p51
      %p53 = scmp.ne.s32.totalorder %s39, %s40
      %p54 = scmp.eq.s32.totalorder %s32, 1
      %p55 = por %p53, %p54
      %p57 = scmp.ne.s32.totalorder %s40, %s56
      %p58 = scmp.eq.s32.totalorder %s32, 0
      %p59 = por %p57, %p58
      %s60 = ssub.s32 %s26, %s33
      %p61 = scmp.eq.s32.totalorder %s60, 0
      %s63 = sadd.s32 %s62, 1
      %s64 = scalar_select %p61, %s62, %s63
      %p67 = pneg %p61
      %p68 = scmp.eq.s32.totalorder %s26, 1
      %p69 = por %p67, %p68
      %p70 = scmp.ne.s32.totalorder %s62, %s65
      %p71 = scmp.eq.s32.totalorder %s26, 0
      %p72 = por %p70, %p71
      %p73 = scmp.ne.s32.totalorder %s62, %s65
      %p74 = scmp.eq.s32.totalorder %s31, 1
      %p75 = por %p73, %p74
      %p76 = scmp.ne.s32.totalorder %s65, %s66
      %p77 = scmp.eq.s32.totalorder %s31, 0
      %p78 = por %p76, %p77
      %p79 = scmp.ne.s32.totalorder %s65, %s66
      %p80 = scmp.eq.s32.totalorder %s32, 1
      %p81 = por %p79, %p80
      %p83 = scmp.ne.s32.totalorder %s66, %s82
      %p84 = scmp.eq.s32.totalorder %s32, 0
      %p85 = por %p83, %p84
      %s87 = sadd.s32 %s86, 1
      %p90 = scmp.eq.s32.totalorder %s26, 1
      %p91 = scmp.ne.s32.totalorder %s86, %s88
      %p92 = scmp.eq.s32.totalorder %s26, 0
      %p93 = por %p91, %p92
      %p94 = scmp.ne.s32.totalorder %s86, %s88
      %p95 = scmp.eq.s32.totalorder %s31, 1
      %p96 = por %p94, %p95
      %p97 = scmp.ne.s32.totalorder %s88, %s89
      %p98 = scmp.eq.s32.totalorder %s31, 0
      %p99 = por %p97, %p98
      %p100 = scmp.ne.s32.totalorder %s88, %s89
      %p101 = scmp.eq.s32.totalorder %s32, 1
      %p102 = por %p100, %p101
      %p104 = scmp.ne.s32.totalorder %s89, %s103
      %p105 = scmp.eq.s32.totalorder %s32, 0
      %p106 = por %p104, %p105
      %s108 = sadd.s32 %s107, 1
      %p111 = scmp.eq.s32.totalorder %s26, 1
      %p112 = scmp.ne.s32.totalorder %s107, %s109
      %p113 = scmp.eq.s32.totalorder %s26, 0
      %p114 = por %p112, %p113
      %p115 = scmp.ne.s32.totalorder %s107, %s109
      %p116 = scmp.eq.s32.totalorder %s31, 1
      %p117 = por %p115, %p116
      %p118 = scmp.ne.s32.totalorder %s109, %s110
      %p119 = scmp.eq.s32.totalorder %s31, 0
      %p120 = por %p118, %p119
      %p121 = scmp.ne.s32.totalorder %s109, %s110
      %p122 = scmp.eq.s32.totalorder %s32, 1
      %p123 = por %p121, %p122
      %p125 = scmp.ne.s32.totalorder %s110, %s124
      %p126 = scmp.eq.s32.totalorder %s32, 0
      %p127 = por %p125, %p126
      %s129 = sadd.s32 %s128, 1
      %p132 = scmp.eq.s32.totalorder %s26, 1
      %p133 = scmp.ne.s32.totalorder %s128, %s130
      %p134 = scmp.eq.s32.totalorder %s26, 0
      %p135 = por %p133, %p134
      %p136 = scmp.ne.s32.totalorder %s128, %s130
      %p137 = scmp.eq.s32.totalorder %s31, 1
      %p138 = por %p136, %p137
      %p139 = scmp.ne.s32.totalorder %s130, %s131
      %p140 = scmp.eq.s32.totalorder %s31, 0
      %p141 = por %p139, %p140
      %p142 = scmp.ne.s32.totalorder %s130, %s131
      %p143 = scmp.eq.s32.totalorder %s32, 1
      %p144 = por %p142, %p143
      %p146 = scmp.ne.s32.totalorder %s131, %s145
      %p147 = scmp.eq.s32.totalorder %s32, 0
      %p148 = por %p146, %p147
      %s150 = sadd.s32 %s149, 1
      %p153 = scmp.eq.s32.totalorder %s26, 1
      %p154 = scmp.ne.s32.totalorder %s149, %s151
      %p155 = scmp.eq.s32.totalorder %s26, 0
      %p156 = por %p154, %p155
      %p157 = scmp.ne.s32.totalorder %s149, %s151
      %p158 = scmp.eq.s32.totalorder %s31, 1
      %p159 = por %p157, %p158
      %p160 = scmp.ne.s32.totalorder %s151, %s152
      %p161 = scmp.eq.s32.totalorder %s31, 0
      %p162 = por %p160, %p161
      %p163 = scmp.ne.s32.totalorder %s151, %s152
      %p164 = scmp.eq.s32.totalorder %s32, 1
      %p165 = por %p163, %p164
      %p167 = scmp.ne.s32.totalorder %s152, %s166
      %p168 = scmp.eq.s32.totalorder %s32, 0
      %p169 = por %p167, %p168
      %s171 = sadd.s32 %s170, 1
      %p174 = scmp.eq.s32.totalorder %s26, 1
      %p175 = scmp.ne.s32.totalorder %s170, %s172
      %p176 = scmp.eq.s32.totalorder %s26, 0
      %p177 = por %p175, %p176
      %p178 = scmp.ne.s32.totalorder %s170, %s172
      %p179 = scmp.eq.s32.totalorder %s31, 1
      %p180 = por %p178, %p179
      %p181 = scmp.ne.s32.totalorder %s172, %s173
      %p182 = scmp.eq.s32.totalorder %s31, 0
      %p183 = por %p181, %p182
      %p184 = scmp.ne.s32.totalorder %s172, %s173
      %p185 = scmp.eq.s32.totalorder %s32, 1
      %p186 = por %p184, %p185
      %p188 = scmp.ne.s32.totalorder %s173, %s187
      %p189 = scmp.eq.s32.totalorder %s32, 0
      %p190 = por %p188, %p189
      %s192 = sadd.s32 %s191, 1
      %p195 = scmp.eq.s32.totalorder %s26, 1
      %p196 = scmp.ne.s32.totalorder %s191, %s193
      %p197 = scmp.eq.s32.totalorder %s26, 0
      %p198 = por %p196, %p197
      %p199 = scmp.ne.s32.totalorder %s191, %s193
      %p200 = scmp.eq.s32.totalorder %s31, 1
      %p201 = por %p199, %p200
      %p202 = scmp.ne.s32.totalorder %s193, %s194
      %p203 = scmp.eq.s32.totalorder %s31, 0
      %p204 = por %p202, %p203
      %p205 = scmp.ne.s32.totalorder %s193, %s194
      %p206 = scmp.eq.s32.totalorder %s32, 1
      %p207 = por %p205, %p206
      %p209 = scmp.ne.s32.totalorder %s194, %s208
      %p210 = scmp.eq.s32.totalorder %s32, 0
      %p211 = por %p209, %p210
      %s213 = sadd.s32 %s212, 1
      %p216 = scmp.eq.s32.totalorder %s26, 1
      %p217 = scmp.ne.s32.totalorder %s212, %s214
      %p218 = scmp.eq.s32.totalorder %s26, 0
      %p219 = por %p217, %p218
      %p220 = scmp.ne.s32.totalorder %s212, %s214
      %p221 = scmp.eq.s32.totalorder %s31, 1
      %p222 = por %p220, %p221
      %p223 = scmp.ne.s32.totalorder %s214, %s215
      %p224 = scmp.eq.s32.totalorder %s31, 0
      %p225 = por %p223, %p224
      %p226 = scmp.ne.s32.totalorder %s214, %s215
      %p227 = scmp.eq.s32.totalorder %s32, 1
      %p228 = por %p226, %p227
      %p230 = scmp.ne.s32.totalorder %s215, %s229
      %p231 = scmp.eq.s32.totalorder %s32, 0
      %p232 = por %p230, %p231
      %s234 = sadd.s32 %s233, 1
      %p237 = scmp.eq.s32.totalorder %s26, 1
      %p238 = scmp.ne.s32.totalorder %s233, %s235
      %p239 = scmp.eq.s32.totalorder %s26, 0
      %p240 = por %p238, %p239
      %p241 = scmp.ne.s32.totalorder %s233, %s235
      %p242 = scmp.eq.s32.totalorder %s31, 1
      %p243 = por %p241, %p242
      %p244 = scmp.ne.s32.totalorder %s235, %s236
      %p245 = scmp.eq.s32.totalorder %s31, 0
      %p246 = por %p244, %p245
      %p247 = scmp.ne.s32.totalorder %s235, %s236
      %p248 = scmp.eq.s32.totalorder %s32, 1
      %p249 = por %p247, %p248
      %p251 = scmp.ne.s32.totalorder %s236, %s250
      %p252 = scmp.eq.s32.totalorder %s32, 0
      %p253 = por %p251, %p252
      %s255 = sadd.s32 %s254, 1
      %p258 = scmp.eq.s32.totalorder %s26, 1
      %p259 = scmp.ne.s32.totalorder %s254, %s256
      %p260 = scmp.eq.s32.totalorder %s26, 0
      %p261 = por %p259, %p260
      %p262 = scmp.ne.s32.totalorder %s254, %s256
      %p263 = scmp.eq.s32.totalorder %s31, 1
      %p264 = por %p262, %p263
      %p265 = scmp.ne.s32.totalorder %s256, %s257
      %p266 = scmp.eq.s32.totalorder %s31, 0
      %p267 = por %p265, %p266
      %p268 = scmp.ne.s32.totalorder %s256, %s257
      %p269 = scmp.eq.s32.totalorder %s32, 1
      %p270 = por %p268, %p269
      %p272 = scmp.ne.s32.totalorder %s257, %s271
      %p273 = scmp.eq.s32.totalorder %s32, 0
      %p274 = por %p272, %p273
      %s276 = sadd.s32 %s275, 1
      %p279 = scmp.eq.s32.totalorder %s26, 1
      %p280 = scmp.ne.s32.totalorder %s275, %s277
      %p281 = scmp.eq.s32.totalorder %s26, 0
      %p282 = por %p280, %p281
      %p283 = scmp.ne.s32.totalorder %s275, %s277
      %p284 = scmp.eq.s32.totalorder %s31, 1
      %p285 = por %p283, %p284
      %p286 = scmp.ne.s32.totalorder %s277, %s278
      %p287 = scmp.eq.s32.totalorder %s31, 0
      %p288 = por %p286, %p287
      %p289 = scmp.ne.s32.totalorder %s277, %s278
      %p290 = scmp.eq.s32.totalorder %s32, 1
      %p291 = por %p289, %p290
      %p293 = scmp.ne.s32.totalorder %s278, %s292
      %p294 = scmp.eq.s32.totalorder %s32, 0
      %p295 = por %p293, %p294
      %s297 = sadd.s32 %s296, 1
      %p300 = scmp.eq.s32.totalorder %s26, 1
      %p301 = scmp.ne.s32.totalorder %s296, %s298
      %p302 = scmp.eq.s32.totalorder %s26, 0
      %p303 = por %p301, %p302
      %p304 = scmp.ne.s32.totalorder %s296, %s298
      %p305 = scmp.eq.s32.totalorder %s31, 1
      %p306 = por %p304, %p305
      %p307 = scmp.ne.s32.totalorder %s298, %s299
      %p308 = scmp.eq.s32.totalorder %s31, 0
      %p309 = por %p307, %p308
      %p310 = scmp.ne.s32.totalorder %s298, %s299
      %p311 = scmp.eq.s32.totalorder %s32, 1
      %p312 = por %p310, %p311
      %p314 = scmp.ne.s32.totalorder %s299, %s313
      %p315 = scmp.eq.s32.totalorder %s32, 0
      %p316 = por %p314, %p315
      %s317 = ssub.s32 %s26, %s33
      %p318 = scmp.eq.s32.totalorder %s317, 0
      %s320 = sadd.s32 %s319, 1
      %s321 = scalar_select %p318, %s319, %s320
      %p324 = pneg %p318
      %p325 = scmp.eq.s32.totalorder %s26, 1
      %p326 = por %p324, %p325
      %p327 = scmp.ne.s32.totalorder %s319, %s322
      %p328 = scmp.eq.s32.totalorder %s26, 0
      %p329 = por %p327, %p328
      %p330 = scmp.ne.s32.totalorder %s319, %s322
      %p331 = scmp.eq.s32.totalorder %s31, 1
      %p332 = por %p330, %p331
      %p333 = scmp.ne.s32.totalorder %s322, %s323
      %p334 = scmp.eq.s32.totalorder %s31, 0
      %p335 = por %p333, %p334
      %p336 = scmp.ne.s32.totalorder %s322, %s323
      %p337 = scmp.eq.s32.totalorder %s32, 1
      %p338 = por %p336, %p337
      %p340 = scmp.ne.s32.totalorder %s323, %s339
      %p341 = scmp.eq.s32.totalorder %s32, 0
      %p342 = por %p340, %p341
      %p343 = scmp.le.s32.totalorder 1, %s26
      %p344 = scmp.lt.s32.totalorder %s26, 3
      %p345 = pnand %p343, %p344
      %p346 = pneg %p345
      // Predicated region
      $region9: #{tpu_custom_call.1} parent=5 // pred_check
        _
      $region10: #{tpu_custom_call.1} parent=5 // pred_check_branch
        %348 = sbr.rel (%p345) target = $region12
      $region11: #{tpu_custom_call.1} parent=5 // pred_region
        %s349 = ssub.s32 %s26, 1
        // Predicated region
        $region13: #{tpu_custom_call.1} parent=11 // pred_check
          %p350 = pneg %p99
        $region14: #{tpu_custom_call.1} parent=11 // pred_check_branch
          %352 = sbr.rel (%p350) target = $region16
        $region15: #{tpu_custom_call.1} parent=11 // pred_region
          %s354 = ssub.s32 18432, 18432
          %355 = vsyncadd [#allocation3], %s354
          %s356 = sshll.u32 [#allocation2], 4
          %s357 = int_to_ptr.vmem [resolvable:$true] %s356
          %362 = dma.hbm_to_vmem [thread:$0]  %s2, 18432, %s357, [#allocation3], 384, 384, 24
        $region16: #{tpu_custom_call.1} parent=11 // pred_fallthru
          _
        // Predicated region
        $region17: #{tpu_custom_call.1} parent=11 // pred_check
          %p363 = pneg %p120
        $region18: #{tpu_custom_call.1} parent=11 // pred_check_branch
          %365 = sbr.rel (%p363) target = $region20
        $region19: #{tpu_custom_call.1} parent=11 // pred_region
          %s367 = ssub.s32 1024, 1024
          %368 = vsyncadd [#allocation6], %s367
          %s369 = sshll.u32 [#allocation5], 4
          %s370 = int_to_ptr.vmem [resolvable:$true] %s369
          %375 = dma.hbm_to_vmem [thread:$0]  %s3, 1024, %s370, [#allocation6], 64, 64, 4
        $region20: #{tpu_custom_call.1} parent=11 // pred_fallthru
          _
        // Predicated region
        $region21: #{tpu_custom_call.1} parent=11 // pred_check
          %p376 = pneg %p141
        $region22: #{tpu_custom_call.1} parent=11 // pred_check_branch
          %378 = sbr.rel (%p376) target = $region24
        $region23: #{tpu_custom_call.1} parent=11 // pred_region
          %s380 = ssub.s32 1024, 1024
          %381 = vsyncadd [#allocation6], %s380
          %s382 = sshll.u32 [#allocation7], 4
          %s383 = int_to_ptr.vmem [resolvable:$true] %s382
          %388 = dma.hbm_to_vmem [thread:$0]  %s4, 1024, %s383, [#allocation6], 64, 64, 4
        $region24: #{tpu_custom_call.1} parent=11 // pred_fallthru
          _
        // Predicated region
        $region25: #{tpu_custom_call.1} parent=11 // pred_check
          %p389 = pneg %p162
        $region26: #{tpu_custom_call.1} parent=11 // pred_check_branch
          %391 = sbr.rel (%p389) target = $region28
        $region27: #{tpu_custom_call.1} parent=11 // pred_region
          _
        $region28: #{tpu_custom_call.1} parent=11 // pred_fallthru
          _
        // Predicated region
        $region29: #{tpu_custom_call.1} parent=11 // pred_check
          %p392 = pneg %p183
        $region30: #{tpu_custom_call.1} parent=11 // pred_check_branch
          %394 = sbr.rel (%p392) target = $region32
        $region31: #{tpu_custom_call.1} parent=11 // pred_region
          _
        $region32: #{tpu_custom_call.1} parent=11 // pred_fallthru
          _
        // Predicated region
        $region33: #{tpu_custom_call.1} parent=11 // pred_check
          %p395 = pneg %p204
        $region34: #{tpu_custom_call.1} parent=11 // pred_check_branch
          %397 = sbr.rel (%p395) target = $region36
        $region35: #{tpu_custom_call.1} parent=11 // pred_region
          %s399 = ssub.s32 14336, 14336
          %400 = vsyncadd [#allocation9], %s399
          %s401 = sshll.u32 [#allocation8], 4
          %s402 = int_to_ptr.vmem [resolvable:$true] %s401
          %407 = dma.hbm_to_vmem [thread:$0]  %s7, 14336, %s402, [#allocation9], 128, 128, 8
        $region36: #{tpu_custom_call.1} parent=11 // pred_fallthru
          _
        // Predicated region
        $region37: #{tpu_custom_call.1} parent=11 // pred_check
          %p408 = pneg %p225
        $region38: #{tpu_custom_call.1} parent=11 // pred_check_branch
          %410 = sbr.rel (%p408) target = $region40
        $region39: #{tpu_custom_call.1} parent=11 // pred_region
          _
        $region40: #{tpu_custom_call.1} parent=11 // pred_fallthru
          _
        // Predicated region
        $region41: #{tpu_custom_call.1} parent=11 // pred_check
          %p411 = pneg %p246
        $region42: #{tpu_custom_call.1} parent=11 // pred_check_branch
          %413 = sbr.rel (%p411) target = $region44
        $region43: #{tpu_custom_call.1} parent=11 // pred_region
          %s415 = ssub.s32 1024, 1024
          %416 = vsyncadd [#allocation9], %s415
          %s417 = sshll.u32 [#allocation10], 4
          %s418 = int_to_ptr.vmem [resolvable:$true] %s417
          %423 = dma.hbm_to_vmem [thread:$0]  %s9, 1024, %s418, [#allocation9], 64, 64, 4
        $region44: #{tpu_custom_call.1} parent=11 // pred_fallthru
          _
        // Predicated region
        $region45: #{tpu_custom_call.1} parent=11 // pred_check
          %p424 = pneg %p267
        $region46: #{tpu_custom_call.1} parent=11 // pred_check_branch
          %426 = sbr.rel (%p424) target = $region48
        $region47: #{tpu_custom_call.1} parent=11 // pred_region
          %s428 = ssub.s32 1024, 1024
          %429 = vsyncadd [#allocation12], %s428
          %s430 = sshll.u32 [#allocation11], 4
          %s431 = int_to_ptr.vmem [resolvable:$true] %s430
          %436 = dma.hbm_to_vmem [thread:$0]  %s10, 1024, %s431, [#allocation12], 64, 64, 4
        $region48: #{tpu_custom_call.1} parent=11 // pred_fallthru
          _
        // Predicated region
        $region49: #{tpu_custom_call.1} parent=11 // pred_check
          %p437 = pneg %p288
        $region50: #{tpu_custom_call.1} parent=11 // pred_check_branch
          %439 = sbr.rel (%p437) target = $region52
        $region51: #{tpu_custom_call.1} parent=11 // pred_region
          _
        $region52: #{tpu_custom_call.1} parent=11 // pred_fallthru
          _
        // Predicated region
        $region53: #{tpu_custom_call.1} parent=11 // pred_check
          %p440 = pneg %p309
        $region54: #{tpu_custom_call.1} parent=11 // pred_check_branch
          %442 = sbr.rel (%p440) target = $region56
        $region55: #{tpu_custom_call.1} parent=11 // pred_region
          _
        $region56: #{tpu_custom_call.1} parent=11 // pred_fallthru
          _
      $region12: #{tpu_custom_call.1} parent=5 // pred_fallthru
        _
      %p443 = scmp.lt.s32.totalorder %s26, 2
      // Predicated region
      $region57: #{tpu_custom_call.1} parent=5 // pred_check
        %p444 = pneg %p443
      $region58: #{tpu_custom_call.1} parent=5 // pred_check_branch
        %446 = sbr.rel (%p444) target = $region60
      $region59: #{tpu_custom_call.1} parent=5 // pred_region
        // Predicated region
        $region61: #{tpu_custom_call.1} parent=59 // pred_check
          %p447 = pneg %p46
        $region62: #{tpu_custom_call.1} parent=59 // pred_check_branch
          %449 = sbr.rel (%p447) target = $region64
        $region63: #{tpu_custom_call.1} parent=59 // pred_region
          %p450 = scmp.lt.s32.totalorder %s26, 1
          %s451 = scalar_select %p450, %s26, 1
          %s452 = smul.addr %s451, 8
          %s453 = scalar_lea.vmem %s0, %s452
        $region64: #{tpu_custom_call.1} parent=59 // pred_fallthru
          _
        // Predicated region
        $region65: #{tpu_custom_call.1} parent=59 // pred_check
          %p454 = pneg %p72
        $region66: #{tpu_custom_call.1} parent=59 // pred_check_branch
          %456 = sbr.rel (%p454) target = $region68
        $region67: #{tpu_custom_call.1} parent=59 // pred_region
          %p457 = scmp.lt.s32.totalorder %s26, 1
          %s458 = scalar_select %p457, %s26, 1
          %s459 = smul.addr %s458, 8
          %s460 = scalar_lea.vmem %s1, %s459
        $region68: #{tpu_custom_call.1} parent=59 // pred_fallthru
          _
      $region60: #{tpu_custom_call.1} parent=5 // pred_fallthru
        _
      %p461 = scmp.le.s32.totalorder 1, %s26
      %p462 = scmp.lt.s32.totalorder %s26, 3
      %p463 = pnand %p461, %p462
      %p464 = pneg %p463
      // Predicated region
      $region69: #{tpu_custom_call.1} parent=5 // pred_check
        _
      $region70: #{tpu_custom_call.1} parent=5 // pred_check_branch
        %466 = sbr.rel (%p463) target = $region72
      $region71: #{tpu_custom_call.1} parent=5 // pred_region
        %s467 = ssub.s32 %s26, 1
        // Predicated region
        $region73: #{tpu_custom_call.1} parent=71 // pred_check
          %p468 = pneg %p99
        $region74: #{tpu_custom_call.1} parent=71 // pred_check_branch
          %470 = sbr.rel (%p468) target = $region76
        $region75: #{tpu_custom_call.1} parent=71 // pred_region
          %471 = dma.done [#allocation3], 18432
        $region76: #{tpu_custom_call.1} parent=71 // pred_fallthru
          _
        // Predicated region
        $region77: #{tpu_custom_call.1} parent=71 // pred_check
          %p472 = pneg %p120
        $region78: #{tpu_custom_call.1} parent=71 // pred_check_branch
          %474 = sbr.rel (%p472) target = $region80
        $region79: #{tpu_custom_call.1} parent=71 // pred_region
          %475 = dma.done [#allocation6], 1024
        $region80: #{tpu_custom_call.1} parent=71 // pred_fallthru
          _
        // Predicated region
        $region81: #{tpu_custom_call.1} parent=71 // pred_check
          %p476 = pneg %p141
        $region82: #{tpu_custom_call.1} parent=71 // pred_check_branch
          %478 = sbr.rel (%p476) target = $region84
        $region83: #{tpu_custom_call.1} parent=71 // pred_region
          %479 = dma.done [#allocation6], 1024
        $region84: #{tpu_custom_call.1} parent=71 // pred_fallthru
          _
        // Predicated region
        $region85: #{tpu_custom_call.1} parent=71 // pred_check
          %p480 = pneg %p204
        $region86: #{tpu_custom_call.1} parent=71 // pred_check_branch
          %482 = sbr.rel (%p480) target = $region88
        $region87: #{tpu_custom_call.1} parent=71 // pred_region
          %483 = dma.done [#allocation9], 14336
        $region88: #{tpu_custom_call.1} parent=71 // pred_fallthru
          _
        // Predicated region
        $region89: #{tpu_custom_call.1} parent=71 // pred_check
          %p484 = pneg %p246
        $region90: #{tpu_custom_call.1} parent=71 // pred_check_branch
          %486 = sbr.rel (%p484) target = $region92
        $region91: #{tpu_custom_call.1} parent=71 // pred_region
          %487 = dma.done [#allocation9], 1024
        $region92: #{tpu_custom_call.1} parent=71 // pred_fallthru
          _
        // Predicated region
        $region93: #{tpu_custom_call.1} parent=71 // pred_check
          %p488 = pneg %p267
        $region94: #{tpu_custom_call.1} parent=71 // pred_check_branch
          %490 = sbr.rel (%p488) target = $region96
        $region95: #{tpu_custom_call.1} parent=71 // pred_region
          %491 = dma.done [#allocation12], 1024
        $region96: #{tpu_custom_call.1} parent=71 // pred_fallthru
          _
        %p492 = scmp.lt.s32.totalorder %s31, 1
        %s493 = scalar_select %p492, %s31, 1
        %s494 = smul.addr %s493, 8
        %s495 = scalar_lea.vmem %s0, %s494
        %p496 = pneg %p52
        %p497 = pneg %p49
        %p498 = scmp.lt.s32.totalorder %s31, 1
        %s499 = scalar_select %p498, %s31, 1
        %s500 = smul.addr %s499, 8
        %s501 = scalar_lea.vmem %s1, %s500
        %p502 = pneg %p78
        %p503 = pneg %p75
        %p504 = pneg %p99
        %p505 = pneg %p96
        %p506 = pneg %p120
        %p507 = pneg %p117
        %p508 = pneg %p141
        %p509 = pneg %p138
        %p510 = pneg %p162
        %p511 = pneg %p159
        %p512 = pneg %p183
        %p513 = pneg %p180
        %p514 = pneg %p204
        %p515 = pneg %p201
        %p516 = pneg %p225
        %p517 = pneg %p222
        %p518 = pneg %p246
        %p519 = pneg %p243
        %p520 = pneg %p267
        %p521 = pneg %p264
        %p522 = pneg %p288
        %p523 = pneg %p285
        %p524 = pneg %p309
        %p525 = pneg %p306
        %p526 = pneg %p335
        %p527 = pneg %p332
        %s528 = sand.u32 %s322, 1
        %s529 = scalar_lea.sflag [#allocation4], %s528
        %s530 = sand.u32 %s322, 1
        %s531 = smul.addr %s530, 8
        %s532 = scalar_lea.vmem [#allocation13], %s531
        %p533 = scmp.lt.s32.totalorder %s31, 1
        %s534 = scalar_select %p533, %s31, 1
        %s535 = smul.addr %s534, 8
        %s536 = scalar_lea.vmem %s0, %s535
        %p537 = scmp.lt.s32.totalorder %s31, 1
        %s538 = scalar_select %p537, %s31, 1
        %s539 = smul.addr %s538, 8
        %s540 = scalar_lea.vmem %s1, %s539
        %v542 = vld [vmem:[%s536] sm:$0xff]
        %v543 = vpack.c.bf16 %v542, %v542
        %v544 = vld [vmem:[#allocation5] sm:$0xf]
        %v545 = vld [vmem:[#allocation5 + $0x4] sm:$0xf]
        %v546 = vld [vmem:[#allocation5 + $0x8] sm:$0xf]
        %v547 = vld [vmem:[#allocation5 + $0xc] sm:$0xf]
        %v548 = vld [vmem:[#allocation5 + $0x10] sm:$0xf]
        %v549 = vld [vmem:[#allocation5 + $0x14] sm:$0xf]
        %v550 = vld [vmem:[#allocation5 + $0x18] sm:$0xf]
        %v551 = vld [vmem:[#allocation5 + $0x1c] sm:$0xf]
        %v552 = vld [vmem:[#allocation5 + $0x20] sm:$0xf]
        %v553 = vld [vmem:[#allocation5 + $0x24] sm:$0xf]
        %v554 = vld [vmem:[#allocation5 + $0x28] sm:$0xf]
        %v555 = vld [vmem:[#allocation5 + $0x2c] sm:$0xf]
        %v556 = vld [vmem:[#allocation5 + $0x30] sm:$0xf]
        %v557 = vld [vmem:[#allocation5 + $0x34] sm:$0xf]
        %v558 = vld [vmem:[#allocation5 + $0x38] sm:$0xf]
        %v559 = vld [vmem:[#allocation5 + $0x3c] sm:$0xf]
        %v560 = vld [vmem:[%s5] sm:$0x1]
        %v562 = vlaneseq
        %v563 = vshrl.u32 %v562, 7
        %v564 = vsub.s32 0, %v563
        %v565 = vrot.slane %v560, %v564
        %v583 = vunpack.c.l.b16 %v544
        %v584 = vunpack.c.l.b16 %v545
        %v585 = vunpack.c.l.b16 %v546
        %v586 = vunpack.c.l.b16 %v547
        %v587 = vunpack.c.l.b16 %v548
        %v588 = vunpack.c.l.b16 %v549
        %v589 = vunpack.c.l.b16 %v550
        %v590 = vunpack.c.l.b16 %v551
        %v591 = vunpack.c.l.b16 %v552
        %v592 = vunpack.c.l.b16 %v553
        %v593 = vunpack.c.l.b16 %v554
        %v594 = vunpack.c.l.b16 %v555
        %v595 = vunpack.c.l.b16 %v556
        %v596 = vunpack.c.l.b16 %v557
        %v597 = vunpack.c.l.b16 %v558
        %v598 = vunpack.c.l.b16 %v559
        %v599 = vpack.c.b16 %v584, %v583
        %v600 = vpack.c.b16 %v586, %v585
        %v601 = vpack.c.b16 %v588, %v587
        %v602 = vpack.c.b16 %v590, %v589
        %v603 = vpack.c.b16 %v592, %v591
        %v604 = vpack.c.b16 %v594, %v593
        %v605 = vpack.c.b16 %v596, %v595
        %v606 = vpack.c.b16 %v598, %v597
        %615 = vmatprep.subr.bf16.mxu0 0
        %616 = vmatpush1.bf16.msra.mxu0 %v599
        %617 = vmatprep.subr.bf16.mxu0 0
        %618 = vmatpush1.bf16.msra.mxu0 %v600
        %619 = vmatprep.subr.bf16.mxu0 0
        %620 = vmatpush1.bf16.msra.mxu0 %v601
        %621 = vmatprep.subr.bf16.mxu0 0
        %622 = vmatpush1.bf16.msra.mxu0 %v602
        %623 = vmatprep.subr.bf16.mxu0 0
        %624 = vmatpush1.bf16.msra.mxu0 %v603
        %625 = vmatprep.subr.bf16.mxu0 0
        %626 = vmatpush1.bf16.msra.mxu0 %v604
        %627 = vmatprep.subr.bf16.mxu0 0
        %628 = vmatpush1.bf16.msra.mxu0 %v605
        %629 = vmatprep.subr.bf16.mxu0 0
        %630 = vmatpush1.bf16.msra.mxu0 %v606
        %631 = vmatprep.subr.bf16.mxu0 0
        %632 = vmatpush1.bf16.msra.mxu0 0
        %633 = vmatprep.subr.bf16.mxu0 0
        %634 = vmatpush1.bf16.msra.mxu0 0
        %635 = vmatprep.subr.bf16.mxu0 0
        %636 = vmatpush1.bf16.msra.mxu0 0
        %637 = vmatprep.subr.bf16.mxu0 0
        %638 = vmatpush1.bf16.msra.mxu0 0
        %639 = vmatprep.subr.bf16.mxu0 0
        %640 = vmatpush1.bf16.msra.mxu0 0
        %641 = vmatprep.subr.bf16.mxu0 0
        %642 = vmatpush1.bf16.msra.mxu0 0
        %643 = vmatprep.subr.bf16.mxu0 0
        %644 = vmatpush1.bf16.msra.mxu0 0
        %645 = vmatprep.subr.bf16.mxu0 0
        %646 = vmatpush1.bf16.msra.mxu0 0
        %647 = vmatprep.mubr.bf16.mxu0 0
        %648 = vmatmul.mubr.bf16.gmra.mrb[0].mxu0 %v543
        %v649 = vpop.f32.mrb[0].mxu0
        %v650 = vadd.f32 %v565, %v649
        %v651 = vpop.f32.mrb[0].mxu0
        %v652 = vpop.f32.mrb[0].mxu0
        %v653 = vpop.f32.mrb[0].mxu0
        %654 = vdwg.mxu0
        %v655 = vmax.f32 %v650, 0.0
        %v656 = vpack.c.bf16 %v655, %v655
        %v657 = vld [vmem:[#allocation7] sm:$0xf]
        %v658 = vld [vmem:[#allocation7 + $0x4] sm:$0xf]
        %v659 = vld [vmem:[#allocation7 + $0x8] sm:$0xf]
        %v660 = vld [vmem:[#allocation7 + $0xc] sm:$0xf]
        %v661 = vld [vmem:[#allocation7 + $0x10] sm:$0xf]
        %v662 = vld [vmem:[#allocation7 + $0x14] sm:$0xf]
        %v663 = vld [vmem:[#allocation7 + $0x18] sm:$0xf]
        %v664 = vld [vmem:[#allocation7 + $0x1c] sm:$0xf]
        %v665 = vld [vmem:[#allocation7 + $0x20] sm:$0xf]
        %v666 = vld [vmem:[#allocation7 + $0x24] sm:$0xf]
        %v667 = vld [vmem:[#allocation7 + $0x28] sm:$0xf]
        %v668 = vld [vmem:[#allocation7 + $0x2c] sm:$0xf]
        %v669 = vld [vmem:[#allocation7 + $0x30] sm:$0xf]
        %v670 = vld [vmem:[#allocation7 + $0x34] sm:$0xf]
        %v671 = vld [vmem:[#allocation7 + $0x38] sm:$0xf]
        %v672 = vld [vmem:[#allocation7 + $0x3c] sm:$0xf]
        %v673 = vld [vmem:[%s6] sm:$0x1]
        %v675 = vlaneseq
        %v676 = vshrl.u32 %v675, 7
        %v677 = vsub.s32 0, %v676
        %v678 = vrot.slane %v673, %v677
        %v696 = vunpack.c.l.b16 %v657
        %v697 = vunpack.c.l.b16 %v658
        %v698 = vunpack.c.l.b16 %v659
        %v699 = vunpack.c.l.b16 %v660
        %v700 = vunpack.c.l.b16 %v661
        %v701 = vunpack.c.l.b16 %v662
        %v702 = vunpack.c.l.b16 %v663
        %v703 = vunpack.c.l.b16 %v664
        %v704 = vunpack.c.l.b16 %v665
        %v705 = vunpack.c.l.b16 %v666
        %v706 = vunpack.c.l.b16 %v667
        %v707 = vunpack.c.l.b16 %v668
        %v708 = vunpack.c.l.b16 %v669
        %v709 = vunpack.c.l.b16 %v670
        %v710 = vunpack.c.l.b16 %v671
        %v711 = vunpack.c.l.b16 %v672
        %v712 = vpack.c.b16 %v697, %v696
        %v713 = vpack.c.b16 %v699, %v698
        %v714 = vpack.c.b16 %v701, %v700
        %v715 = vpack.c.b16 %v703, %v702
        %v716 = vpack.c.b16 %v705, %v704
        %v717 = vpack.c.b16 %v707, %v706
        %v718 = vpack.c.b16 %v709, %v708
        %v719 = vpack.c.b16 %v711, %v710
        %728 = vmatprep.subr.bf16.mxu0 0
        %729 = vmatpush1.bf16.msra.mxu0 %v712
        %730 = vmatprep.subr.bf16.mxu0 0
        %731 = vmatpush1.bf16.msra.mxu0 %v713
        %732 = vmatprep.subr.bf16.mxu0 0
        %733 = vmatpush1.bf16.msra.mxu0 %v714
        %734 = vmatprep.subr.bf16.mxu0 0
        %735 = vmatpush1.bf16.msra.mxu0 %v715
        %736 = vmatprep.subr.bf16.mxu0 0
        %737 = vmatpush1.bf16.msra.mxu0 %v716
        %738 = vmatprep.subr.bf16.mxu0 0
        %739 = vmatpush1.bf16.msra.mxu0 %v717
        %740 = vmatprep.subr.bf16.mxu0 0
        %741 = vmatpush1.bf16.msra.mxu0 %v718
        %742 = vmatprep.subr.bf16.mxu0 0
        %743 = vmatpush1.bf16.msra.mxu0 %v719
        %744 = vmatprep.subr.bf16.mxu0 0
        %745 = vmatpush1.bf16.msra.mxu0 0
        %746 = vmatprep.subr.bf16.mxu0 0
        %747 = vmatpush1.bf16.msra.mxu0 0
        %748 = vmatprep.subr.bf16.mxu0 0
        %749 = vmatpush1.bf16.msra.mxu0 0
        %750 = vmatprep.subr.bf16.mxu0 0
        %751 = vmatpush1.bf16.msra.mxu0 0
        %752 = vmatprep.subr.bf16.mxu0 0
        %753 = vmatpush1.bf16.msra.mxu0 0
        %754 = vmatprep.subr.bf16.mxu0 0
        %755 = vmatpush1.bf16.msra.mxu0 0
        %756 = vmatprep.subr.bf16.mxu0 0
        %757 = vmatpush1.bf16.msra.mxu0 0
        %758 = vmatprep.subr.bf16.mxu0 0
        %759 = vmatpush1.bf16.msra.mxu0 0
        %760 = vmatprep.mubr.bf16.mxu0 0
        %761 = vmatmul.mubr.bf16.gmra.mrb[0].mxu0 %v656
        %v762 = vpop.f32.mrb[0].mxu0
        %v763 = vadd.f32 %v678, %v762
        %v764 = vpop.f32.mrb[0].mxu0
        %v765 = vpop.f32.mrb[0].mxu0
        %v766 = vpop.f32.mrb[0].mxu0
        %767 = vdwg.mxu0
        %v768 = vmax.f32 %v763, 0.0
        %v769 = vld [vmem:[%s540] sm:$0xff]
        %v770 = vlaneseq
        %v771 = vand.u32 %v770, 127
        %v772 = vadd.s32 %v771, 128
        %v773 = vadd.s32 %v771, 256
        %774 = vset.pattern.permute.xlu0 0
        %775 = vperm.xlu0 %774, %v769
        %v776 = vpop.permute.xlu0 %775
        %vm777 = vcmp.eq.s32.totalorder %v771, %v776
        %vm778 = vcmp.eq.s32.totalorder %v772, %v776
        %vm779 = vcmp.eq.s32.totalorder %v773, %v776
        %v780 = vsel %vm777, 1, 0
        %v781 = vsel %vm778, 1, 0
        %v782 = vsel %vm779, 1, 0
        %v783 = vcvt.s32.f32 %v780
        %v784 = vcvt.s32.f32 %v781
        %v785 = vcvt.s32.f32 %v782
        %v786 = vadd.f32 %v783, 0.0
        %v787 = vadd.f32 %v784, 0.0
        %v788 = vadd.f32 %v785, 0.0
        %789 = vset.pattern.permute.xlu0 1
        %790 = vperm.xlu0 %789, %v769
        %v791 = vpop.permute.xlu0 %790
        %vm792 = vcmp.eq.s32.totalorder %v771, %v791
        %vm793 = vcmp.eq.s32.totalorder %v772, %v791
        %vm794 = vcmp.eq.s32.totalorder %v773, %v791
        %v795 = vsel %vm792, 1, 0
        %v796 = vsel %vm793, 1, 0
        %v797 = vsel %vm794, 1, 0
        %v798 = vcvt.s32.f32 %v795
        %v799 = vcvt.s32.f32 %v796
        %v800 = vcvt.s32.f32 %v797
        %v801 = vadd.f32 %v786, %v798
        %v802 = vadd.f32 %v787, %v799
        %v803 = vadd.f32 %v788, %v800
        %804 = vset.pattern.permute.xlu0 2
        %805 = vperm.xlu0 %804, %v769
        %v806 = vpop.permute.xlu0 %805
        %vm807 = vcmp.eq.s32.totalorder %v771, %v806
        %vm808 = vcmp.eq.s32.totalorder %v772, %v806
        %vm809 = vcmp.eq.s32.totalorder %v773, %v806
        %v810 = vsel %vm807, 1, 0
        %v811 = vsel %vm808, 1, 0
        %v812 = vsel %vm809, 1, 0
        %v813 = vcvt.s32.f32 %v810
        %v814 = vcvt.s32.f32 %v811
        %v815 = vcvt.s32.f32 %v812
        %v816 = vadd.f32 %v801, %v813
        %v817 = vadd.f32 %v802, %v814
        %v818 = vadd.f32 %v803, %v815
        %819 = vset.pattern.permute.xlu0 3
        %820 = vperm.xlu0 %819, %v769
        %v821 = vpop.permute.xlu0 %820
        %vm822 = vcmp.eq.s32.totalorder %v771, %v821
        %vm823 = vcmp.eq.s32.totalorder %v772, %v821
        %vm824 = vcmp.eq.s32.totalorder %v773, %v821
        %v825 = vsel %vm822, 1, 0
        %v826 = vsel %vm823, 1, 0
        %v827 = vsel %vm824, 1, 0
        %v828 = vcvt.s32.f32 %v825
        %v829 = vcvt.s32.f32 %v826
        %v830 = vcvt.s32.f32 %v827
        %v831 = vadd.f32 %v816, %v828
        %v832 = vadd.f32 %v817, %v829
        %v833 = vadd.f32 %v818, %v830
        %834 = vset.pattern.permute.xlu0 4
        %835 = vperm.xlu0 %834, %v769
        %v836 = vpop.permute.xlu0 %835
        %vm837 = vcmp.eq.s32.totalorder %v771, %v836
        %vm838 = vcmp.eq.s32.totalorder %v772, %v836
        %vm839 = vcmp.eq.s32.totalorder %v773, %v836
        %v840 = vsel %vm837, 1, 0
        %v841 = vsel %vm838, 1, 0
        %v842 = vsel %vm839, 1, 0
        %v843 = vcvt.s32.f32 %v840
        %v844 = vcvt.s32.f32 %v841
        %v845 = vcvt.s32.f32 %v842
        %v846 = vadd.f32 %v831, %v843
        %v847 = vadd.f32 %v832, %v844
        %v848 = vadd.f32 %v833, %v845
        %849 = vset.pattern.permute.xlu0 5
        %850 = vperm.xlu0 %849, %v769
        %v851 = vpop.permute.xlu0 %850
        %vm852 = vcmp.eq.s32.totalorder %v771, %v851
        %vm853 = vcmp.eq.s32.totalorder %v772, %v851
        %vm854 = vcmp.eq.s32.totalorder %v773, %v851
        %v855 = vsel %vm852, 1, 0
        %v856 = vsel %vm853, 1, 0
        %v857 = vsel %vm854, 1, 0
        %v858 = vcvt.s32.f32 %v855
        %v859 = vcvt.s32.f32 %v856
        %v860 = vcvt.s32.f32 %v857
        %v861 = vadd.f32 %v846, %v858
        %v862 = vadd.f32 %v847, %v859
        %v863 = vadd.f32 %v848, %v860
        %v864 = vld [vmem:[#allocation2] sm:$0xff]
        %v865 = vld [vmem:[#allocation2 + $0x8] sm:$0xff]
        %v866 = vld [vmem:[#allocation2 + $0x10] sm:$0xff]
        %v867 = vld [vmem:[#allocation2 + $0x18] sm:$0xff]
        %v868 = vld [vmem:[#allocation2 + $0x20] sm:$0xff]
        %v869 = vld [vmem:[#allocation2 + $0x28] sm:$0xff]
        %v870 = vld [vmem:[#allocation2 + $0x30] sm:$0xff]
        %v871 = vld [vmem:[#allocation2 + $0x38] sm:$0xff]
        %v872 = vld [vmem:[#allocation2 + $0x40] sm:$0xff]
        %v873 = vld [vmem:[#allocation2 + $0x48] sm:$0xff]
        %v874 = vld [vmem:[#allocation2 + $0x50] sm:$0xff]
        %v875 = vld [vmem:[#allocation2 + $0x58] sm:$0xff]
        %v876 = vld [vmem:[#allocation2 + $0x60] sm:$0xff]
        %v877 = vld [vmem:[#allocation2 + $0x68] sm:$0xff]
        %v878 = vld [vmem:[#allocation2 + $0x70] sm:$0xff]
        %v879 = vld [vmem:[#allocation2 + $0x78] sm:$0xff]
        %v880 = vld [vmem:[#allocation2 + $0x80] sm:$0xff]
        %v881 = vld [vmem:[#allocation2 + $0x88] sm:$0xff]
        %v882 = vld [vmem:[#allocation2 + $0x90] sm:$0xff]
        %v883 = vld [vmem:[#allocation2 + $0x98] sm:$0xff]
        %v884 = vld [vmem:[#allocation2 + $0xa0] sm:$0xff]
        %v885 = vld [vmem:[#allocation2 + $0xa8] sm:$0xff]
        %v886 = vld [vmem:[#allocation2 + $0xb0] sm:$0xff]
        %v887 = vld [vmem:[#allocation2 + $0xb8] sm:$0xff]
        %v888 = vld [vmem:[#allocation2 + $0xc0] sm:$0xff]
        %v889 = vld [vmem:[#allocation2 + $0xc8] sm:$0xff]
        %v890 = vld [vmem:[#allocation2 + $0xd0] sm:$0xff]
        %v891 = vld [vmem:[#allocation2 + $0xd8] sm:$0xff]
        %v892 = vld [vmem:[#allocation2 + $0xe0] sm:$0xff]
        %v893 = vld [vmem:[#allocation2 + $0xe8] sm:$0xff]
        %v894 = vld [vmem:[#allocation2 + $0xf0] sm:$0xff]
        %v895 = vld [vmem:[#allocation2 + $0xf8] sm:$0xff]
        %v896 = vld [vmem:[#allocation2 + $0x100] sm:$0xff]
        %v897 = vld [vmem:[#allocation2 + $0x108] sm:$0xff]
        %v898 = vld [vmem:[#allocation2 + $0x110] sm:$0xff]
        %v899 = vld [vmem:[#allocation2 + $0x118] sm:$0xff]
        %v900 = vld [vmem:[#allocation2 + $0x120] sm:$0xff]
        %v901 = vld [vmem:[#allocation2 + $0x128] sm:$0xff]
        %v902 = vld [vmem:[#allocation2 + $0x130] sm:$0xff]
        %v903 = vld [vmem:[#allocation2 + $0x138] sm:$0xff]
        %v904 = vld [vmem:[#allocation2 + $0x140] sm:$0xff]
        %v905 = vld [vmem:[#allocation2 + $0x148] sm:$0xff]
        %v906 = vld [vmem:[#allocation2 + $0x150] sm:$0xff]
        %v907 = vld [vmem:[#allocation2 + $0x158] sm:$0xff]
        %v908 = vld [vmem:[#allocation2 + $0x160] sm:$0xff]
        %v909 = vld [vmem:[#allocation2 + $0x168] sm:$0xff]
        %v910 = vld [vmem:[#allocation2 + $0x170] sm:$0xff]
        %v911 = vld [vmem:[#allocation2 + $0x178] sm:$0xff]
        %v912 = vld [vmem:[#allocation2 + $0x180] sm:$0xff]
        %v913 = vld [vmem:[#allocation2 + $0x188] sm:$0xff]
        %v914 = vld [vmem:[#allocation2 + $0x190] sm:$0xff]
        %v915 = vld [vmem:[#allocation2 + $0x198] sm:$0xff]
        %v916 = vld [vmem:[#allocation2 + $0x1a0] sm:$0xff]
        %v917 = vld [vmem:[#allocation2 + $0x1a8] sm:$0xff]
        %v918 = vld [vmem:[#allocation2 + $0x1b0] sm:$0xff]
        %v919 = vld [vmem:[#allocation2 + $0x1b8] sm:$0xff]
        %v920 = vld [vmem:[#allocation2 + $0x1c0] sm:$0xff]
        %v921 = vld [vmem:[#allocation2 + $0x1c8] sm:$0xff]
        %v922 = vld [vmem:[#allocation2 + $0x1d0] sm:$0xff]
        %v923 = vld [vmem:[#allocation2 + $0x1d8] sm:$0xff]
        %v924 = vld [vmem:[#allocation2 + $0x1e0] sm:$0xff]
        %v925 = vld [vmem:[#allocation2 + $0x1e8] sm:$0xff]
        %v926 = vld [vmem:[#allocation2 + $0x1f0] sm:$0xff]
        %v927 = vld [vmem:[#allocation2 + $0x1f8] sm:$0xff]
        %v928 = vld [vmem:[#allocation2 + $0x200] sm:$0xff]
        %v929 = vld [vmem:[#allocation2 + $0x208] sm:$0xff]
        %v930 = vld [vmem:[#allocation2 + $0x210] sm:$0xff]
        %v931 = vld [vmem:[#allocation2 + $0x218] sm:$0xff]
        %v932 = vld [vmem:[#allocation2 + $0x220] sm:$0xff]
        %v933 = vld [vmem:[#allocation2 + $0x228] sm:$0xff]
        %v934 = vld [vmem:[#allocation2 + $0x230] sm:$0xff]
        %v935 = vld [vmem:[#allocation2 + $0x238] sm:$0xff]
        %v936 = vld [vmem:[#allocation2 + $0x240] sm:$0xff]
        %v937 = vld [vmem:[#allocation2 + $0x248] sm:$0xff]
        %v938 = vld [vmem:[#allocation2 + $0x250] sm:$0xff]
        %v939 = vld [vmem:[#allocation2 + $0x258] sm:$0xff]
        %v940 = vld [vmem:[#allocation2 + $0x260] sm:$0xff]
        %v941 = vld [vmem:[#allocation2 + $0x268] sm:$0xff]
        %v942 = vld [vmem:[#allocation2 + $0x270] sm:$0xff]
        %v943 = vld [vmem:[#allocation2 + $0x278] sm:$0xff]
        %v944 = vld [vmem:[#allocation2 + $0x280] sm:$0xff]
        %v945 = vld [vmem:[#allocation2 + $0x288] sm:$0xff]
        %v946 = vld [vmem:[#allocation2 + $0x290] sm:$0xff]
        %v947 = vld [vmem:[#allocation2 + $0x298] sm:$0xff]
        %v948 = vld [vmem:[#allocation2 + $0x2a0] sm:$0xff]
        %v949 = vld [vmem:[#allocation2 + $0x2a8] sm:$0xff]
        %v950 = vld [vmem:[#allocation2 + $0x2b0] sm:$0xff]
        %v951 = vld [vmem:[#allocation2 + $0x2b8] sm:$0xff]
        %v952 = vld [vmem:[#allocation2 + $0x2c0] sm:$0xff]
        %v953 = vld [vmem:[#allocation2 + $0x2c8] sm:$0xff]
        %v954 = vld [vmem:[#allocation2 + $0x2d0] sm:$0xff]
        %v955 = vld [vmem:[#allocation2 + $0x2d8] sm:$0xff]
        %v956 = vld [vmem:[#allocation2 + $0x2e0] sm:$0xff]
        %v957 = vld [vmem:[#allocation2 + $0x2e8] sm:$0xff]
        %v958 = vld [vmem:[#allocation2 + $0x2f0] sm:$0xff]
        %v959 = vld [vmem:[#allocation2 + $0x2f8] sm:$0xff]
        %v960 = vld [vmem:[#allocation2 + $0x300] sm:$0xff]
        %v961 = vld [vmem:[#allocation2 + $0x308] sm:$0xff]
        %v962 = vld [vmem:[#allocation2 + $0x310] sm:$0xff]
        %v963 = vld [vmem:[#allocation2 + $0x318] sm:$0xff]
        %v964 = vld [vmem:[#allocation2 + $0x320] sm:$0xff]
        %v965 = vld [vmem:[#allocation2 + $0x328] sm:$0xff]
        %v966 = vld [vmem:[#allocation2 + $0x330] sm:$0xff]
        %v967 = vld [vmem:[#allocation2 + $0x338] sm:$0xff]
        %v968 = vld [vmem:[#allocation2 + $0x340] sm:$0xff]
        %v969 = vld [vmem:[#allocation2 + $0x348] sm:$0xff]
        %v970 = vld [vmem:[#allocation2 + $0x350] sm:$0xff]
        %v971 = vld [vmem:[#allocation2 + $0x358] sm:$0xff]
        %v972 = vld [vmem:[#allocation2 + $0x360] sm:$0xff]
        %v973 = vld [vmem:[#allocation2 + $0x368] sm:$0xff]
        %v974 = vld [vmem:[#allocation2 + $0x370] sm:$0xff]
        %v975 = vld [vmem:[#allocation2 + $0x378] sm:$0xff]
        %v976 = vld [vmem:[#allocation2 + $0x380] sm:$0xff]
        %v977 = vld [vmem:[#allocation2 + $0x388] sm:$0xff]
        %v978 = vld [vmem:[#allocation2 + $0x390] sm:$0xff]
        %v979 = vld [vmem:[#allocation2 + $0x398] sm:$0xff]
        %v980 = vld [vmem:[#allocation2 + $0x3a0] sm:$0xff]
        %v981 = vld [vmem:[#allocation2 + $0x3a8] sm:$0xff]
        %v982 = vld [vmem:[#allocation2 + $0x3b0] sm:$0xff]
        %v983 = vld [vmem:[#allocation2 + $0x3b8] sm:$0xff]
        %v984 = vld [vmem:[#allocation2 + $0x3c0] sm:$0xff]
        %v985 = vld [vmem:[#allocation2 + $0x3c8] sm:$0xff]
        %v986 = vld [vmem:[#allocation2 + $0x3d0] sm:$0xff]
        %v987 = vld [vmem:[#allocation2 + $0x3d8] sm:$0xff]
        %v988 = vld [vmem:[#allocation2 + $0x3e0] sm:$0xff]
        %v989 = vld [vmem:[#allocation2 + $0x3e8] sm:$0xff]
        %v990 = vld [vmem:[#allocation2 + $0x3f0] sm:$0xff]
        %v991 = vld [vmem:[#allocation2 + $0x3f8] sm:$0xff]
        %v992 = vld [vmem:[#allocation2 + $0x400] sm:$0xff]
        %v993 = vld [vmem:[#allocation2 + $0x408] sm:$0xff]
        %v994 = vld [vmem:[#allocation2 + $0x410] sm:$0xff]
        %v995 = vld [vmem:[#allocation2 + $0x418] sm:$0xff]
        %v996 = vld [vmem:[#allocation2 + $0x420] sm:$0xff]
        %v997 = vld [vmem:[#allocation2 + $0x428] sm:$0xff]
        %v998 = vld [vmem:[#allocation2 + $0x430] sm:$0xff]
        %v999 = vld [vmem:[#allocation2 + $0x438] sm:$0xff]
        %v1000 = vld [vmem:[#allocation2 + $0x440] sm:$0xff]
        %v1001 = vld [vmem:[#allocation2 + $0x448] sm:$0xff]
        %v1002 = vld [vmem:[#allocation2 + $0x450] sm:$0xff]
        %v1003 = vld [vmem:[#allocation2 + $0x458] sm:$0xff]
        %v1004 = vld [vmem:[#allocation2 + $0x460] sm:$0xff]
        %v1005 = vld [vmem:[#allocation2 + $0x468] sm:$0xff]
        %v1006 = vld [vmem:[#allocation2 + $0x470] sm:$0xff]
        %v1007 = vld [vmem:[#allocation2 + $0x478] sm:$0xff]
        %1008 = vmatprep.subr.mxu0 %v865
        %1009 = vmatpush1.msra.mxu0 %v864
        %1010 = vmatprep.subr.mxu0 %v868
        %1011 = vmatpush1.msra.mxu0 %v867
        %1012 = vmatprep.subr.mxu0 %v871
        %1013 = vmatpush1.msra.mxu0 %v870
        %1014 = vmatprep.subr.mxu0 %v874
        %1015 = vmatpush1.msra.mxu0 %v873
        %1016 = vmatprep.subr.mxu0 %v877
        %1017 = vmatpush1.msra.mxu0 %v876
        %1018 = vmatprep.subr.mxu0 %v880
        %1019 = vmatpush1.msra.mxu0 %v879
        %1020 = vmatprep.subr.mxu0 %v883
        %1021 = vmatpush1.msra.mxu0 %v882
        %1022 = vmatprep.subr.mxu0 %v886
        %1023 = vmatpush1.msra.mxu0 %v885
        %1024 = vmatprep.subr.mxu0 %v889
        %1025 = vmatpush1.msra.mxu0 %v888
        %1026 = vmatprep.subr.mxu0 %v892
        %1027 = vmatpush1.msra.mxu0 %v891
        %1028 = vmatprep.subr.mxu0 %v895
        %1029 = vmatpush1.msra.mxu0 %v894
        %1030 = vmatprep.subr.mxu0 %v898
        %1031 = vmatpush1.msra.mxu0 %v897
        %1032 = vmatprep.subr.mxu0 %v901
        %1033 = vmatpush1.msra.mxu0 %v900
        %1034 = vmatprep.subr.mxu0 %v904
        %1035 = vmatpush1.msra.mxu0 %v903
        %1036 = vmatprep.subr.mxu0 %v907
        %1037 = vmatpush1.msra.mxu0 %v906
        %1038 = vmatprep.subr.mxu0 %v910
        %1039 = vmatpush1.msra.mxu0 %v909
        %1040 = vmatprep.subr.mxu0 %v913
        %1041 = vmatpush1.msra.mxu0 %v912
        %1042 = vmatprep.subr.mxu0 %v916
        %1043 = vmatpush1.msra.mxu0 %v915
        %1044 = vmatprep.subr.mxu0 %v919
        %1045 = vmatpush1.msra.mxu0 %v918
        %1046 = vmatprep.subr.mxu0 %v922
        %1047 = vmatpush1.msra.mxu0 %v921
        %1048 = vmatprep.subr.mxu0 %v925
        %1049 = vmatpush1.msra.mxu0 %v924
        %1050 = vmatprep.subr.mxu0 %v928
        %1051 = vmatpush1.msra.mxu0 %v927
        %1052 = vmatprep.subr.mxu0 %v931
        %1053 = vmatpush1.msra.mxu0 %v930
        %1054 = vmatprep.subr.mxu0 %v934
        %1055 = vmatpush1.msra.mxu0 %v933
        %1056 = vmatprep.subr.mxu0 %v937
        %1057 = vmatpush1.msra.mxu0 %v936
        %1058 = vmatprep.subr.mxu0 %v940
        %1059 = vmatpush1.msra.mxu0 %v939
        %1060 = vmatprep.subr.mxu0 %v943
        %1061 = vmatpush1.msra.mxu0 %v942
        %1062 = vmatprep.subr.mxu0 %v946
        %1063 = vmatpush1.msra.mxu0 %v945
        %1064 = vmatprep.subr.mxu0 %v949
        %1065 = vmatpush1.msra.mxu0 %v948
        %1066 = vmatprep.subr.mxu0 %v952
        %1067 = vmatpush1.msra.mxu0 %v951
        %1068 = vmatprep.subr.mxu0 %v955
        %1069 = vmatpush1.msra.mxu0 %v954
        %1070 = vmatprep.subr.mxu0 %v958
        %1071 = vmatpush1.msra.mxu0 %v957
        %1072 = vmatprep.mubr.f32.mxu0 %v862
        %1073 = vmatmul.mubr.f32.gmra.mrb[0].mxu0 %v861
        %v1074 = vpop.f32.mrb[0].mxu0
        %v1075 = vadd.f32 0.0, %v1074
        %v1076 = vpop.f32.mrb[0].mxu0
        %v1077 = vadd.f32 0.0, %v1076
        %1078 = vdwg.mxu0
        %1079 = vmatprep.subr.mxu0 %v961
        %1080 = vmatpush1.msra.mxu0 %v960
        %1081 = vmatprep.subr.mxu0 %v964
        %1082 = vmatpush1.msra.mxu0 %v963
        %1083 = vmatprep.subr.mxu0 %v967
        %1084 = vmatpush1.msra.mxu0 %v966
        %1085 = vmatprep.subr.mxu0 %v970
        %1086 = vmatpush1.msra.mxu0 %v969
        %1087 = vmatprep.subr.mxu0 %v973
        %1088 = vmatpush1.msra.mxu0 %v972
        %1089 = vmatprep.subr.mxu0 %v976
        %1090 = vmatpush1.msra.mxu0 %v975
        %1091 = vmatprep.subr.mxu0 %v979
        %1092 = vmatpush1.msra.mxu0 %v978
        %1093 = vmatprep.subr.mxu0 %v982
        %1094 = vmatpush1.msra.mxu0 %v981
        %1095 = vmatprep.subr.mxu0 %v985
        %1096 = vmatpush1.msra.mxu0 %v984
        %1097 = vmatprep.subr.mxu0 %v988
        %1098 = vmatpush1.msra.mxu0 %v987
        %1099 = vmatprep.subr.mxu0 %v991
        %1100 = vmatpush1.msra.mxu0 %v990
        %1101 = vmatprep.subr.mxu0 %v994
        %1102 = vmatpush1.msra.mxu0 %v993
        %1103 = vmatprep.subr.mxu0 %v997
        %1104 = vmatpush1.msra.mxu0 %v996
        %1105 = vmatprep.subr.mxu0 %v1000
        %1106 = vmatpush1.msra.mxu0 %v999
        %1107 = vmatprep.subr.mxu0 %v1003
        %1108 = vmatpush1.msra.mxu0 %v1002
        %1109 = vmatprep.subr.mxu0 %v1006
        %1110 = vmatpush1.msra.mxu0 %v1005
        %1111 = vmatprep.subr.mxu0 0.0
        %1112 = vmatpush1.msra.mxu0 0.0
        %1113 = vmatprep.subr.mxu0 0.0
        %1114 = vmatpush1.msra.mxu0 0.0
        %1115 = vmatprep.subr.mxu0 0.0
        %1116 = vmatpush1.msra.mxu0 0.0
        %1117 = vmatprep.subr.mxu0 0.0
        %1118 = vmatpush1.msra.mxu0 0.0
        %1119 = vmatprep.subr.mxu0 0.0
        %1120 = vmatpush1.msra.mxu0 0.0
        %1121 = vmatprep.subr.mxu0 0.0
        %1122 = vmatpush1.msra.mxu0 0.0
        %1123 = vmatprep.subr.mxu0 0.0
        %1124 = vmatpush1.msra.mxu0 0.0
        %1125 = vmatprep.subr.mxu0 0.0
        %1126 = vmatpush1.msra.mxu0 0.0
        %1127 = vmatprep.subr.mxu0 0.0
        %1128 = vmatpush1.msra.mxu0 0.0
        %1129 = vmatprep.subr.mxu0 0.0
        %1130 = vmatpush1.msra.mxu0 0.0
        %1131 = vmatprep.subr.mxu0 0.0
        %1132 = vmatpush1.msra.mxu0 0.0
        %1133 = vmatprep.subr.mxu0 0.0
        %1134 = vmatpush1.msra.mxu0 0.0
        %1135 = vmatprep.subr.mxu0 0.0
        %1136 = vmatpush1.msra.mxu0 0.0
        %1137 = vmatprep.subr.mxu0 0.0
        %1138 = vmatpush1.msra.mxu0 0.0
        %1139 = vmatprep.subr.mxu0 0.0
        %1140 = vmatpush1.msra.mxu0 0.0
        %1141 = vmatprep.subr.mxu0 0.0
        %1142 = vmatpush1.msra.mxu0 0.0
        %1143 = vmatprep.mubr.f32.mxu0 0.0
        %1144 = vmatmul.mubr.f32.gmra.mrb[0].mxu0 %v863
        %v1145 = vpop.f32.mrb[0].mxu0
        %v1146 = vadd.f32 %v1075, %v1145
        %v1147 = vpop.f32.mrb[0].mxu0
        %v1148 = vadd.f32 %v1077, %v1147
        %1149 = vdwg.mxu0
        %1150 = vmatprep.subr.mxu0 0.0
        %1151 = vmatpush1.msra.mxu0 %v866
        %1152 = vmatprep.subr.mxu0 0.0
        %1153 = vmatpush1.msra.mxu0 %v869
        %1154 = vmatprep.subr.mxu0 0.0
        %1155 = vmatpush1.msra.mxu0 %v872
        %1156 = vmatprep.subr.mxu0 0.0
        %1157 = vmatpush1.msra.mxu0 %v875
        %1158 = vmatprep.subr.mxu0 0.0
        %1159 = vmatpush1.msra.mxu0 %v878
        %1160 = vmatprep.subr.mxu0 0.0
        %1161 = vmatpush1.msra.mxu0 %v881
        %1162 = vmatprep.subr.mxu0 0.0
        %1163 = vmatpush1.msra.mxu0 %v884
        %1164 = vmatprep.subr.mxu0 0.0
        %1165 = vmatpush1.msra.mxu0 %v887
        %1166 = vmatprep.subr.mxu0 0.0
        %1167 = vmatpush1.msra.mxu0 %v890
        %1168 = vmatprep.subr.mxu0 0.0
        %1169 = vmatpush1.msra.mxu0 %v893
        %1170 = vmatprep.subr.mxu0 0.0
        %1171 = vmatpush1.msra.mxu0 %v896
        %1172 = vmatprep.subr.mxu0 0.0
        %1173 = vmatpush1.msra.mxu0 %v899
        %1174 = vmatprep.subr.mxu0 0.0
        %1175 = vmatpush1.msra.mxu0 %v902
        %1176 = vmatprep.subr.mxu0 0.0
        %1177 = vmatpush1.msra.mxu0 %v905
        %1178 = vmatprep.subr.mxu0 0.0
        %1179 = vmatpush1.msra.mxu0 %v908
        %1180 = vmatprep.subr.mxu0 0.0
        %1181 = vmatpush1.msra.mxu0 %v911
        %1182 = vmatprep.subr.mxu0 0.0
        %1183 = vmatpush1.msra.mxu0 %v914
        %1184 = vmatprep.subr.mxu0 0.0
        %1185 = vmatpush1.msra.mxu0 %v917
        %1186 = vmatprep.subr.mxu0 0.0
        %1187 = vmatpush1.msra.mxu0 %v920
        %1188 = vmatprep.subr.mxu0 0.0
        %1189 = vmatpush1.msra.mxu0 %v923
        %1190 = vmatprep.subr.mxu0 0.0
        %1191 = vmatpush1.msra.mxu0 %v926
        %1192 = vmatprep.subr.mxu0 0.0
        %1193 = vmatpush1.msra.mxu0 %v929
        %1194 = vmatprep.subr.mxu0 0.0
        %1195 = vmatpush1.msra.mxu0 %v932
        %1196 = vmatprep.subr.mxu0 0.0
        %1197 = vmatpush1.msra.mxu0 %v935
        %1198 = vmatprep.subr.mxu0 0.0
        %1199 = vmatpush1.msra.mxu0 %v938
        %1200 = vmatprep.subr.mxu0 0.0
        %1201 = vmatpush1.msra.mxu0 %v941
        %1202 = vmatprep.subr.mxu0 0.0
        %1203 = vmatpush1.msra.mxu0 %v944
        %1204 = vmatprep.subr.mxu0 0.0
        %1205 = vmatpush1.msra.mxu0 %v947
        %1206 = vmatprep.subr.mxu0 0.0
        %1207 = vmatpush1.msra.mxu0 %v950
        %1208 = vmatprep.subr.mxu0 0.0
        %1209 = vmatpush1.msra.mxu0 %v953
        %1210 = vmatprep.subr.mxu0 0.0
        %1211 = vmatpush1.msra.mxu0 %v956
        %1212 = vmatprep.subr.mxu0 0.0
        %1213 = vmatpush1.msra.mxu0 %v959
        %1214 = vmatprep.mubr.f32.mxu0 %v862
        %1215 = vmatmul.mubr.f32.gmra.mrb[0].mxu0 %v861
        %v1216 = vpop.f32.mrb[0].mxu0
        %v1217 = vadd.f32 0.0, %v1216
        %v1218 = vpop.f32.mrb[0].mxu0
        %1219 = vdwg.mxu0
        %1220 = vmatprep.subr.mxu0 0.0
        %1221 = vmatpush1.msra.mxu0 %v962
        %1222 = vmatprep.subr.mxu0 0.0
        %1223 = vmatpush1.msra.mxu0 %v965
        %1224 = vmatprep.subr.mxu0 0.0
        %1225 = vmatpush1.msra.mxu0 %v968
        %1226 = vmatprep.subr.mxu0 0.0
        %1227 = vmatpush1.msra.mxu0 %v971
        %1228 = vmatprep.subr.mxu0 0.0
        %1229 = vmatpush1.msra.mxu0 %v974
        %1230 = vmatprep.subr.mxu0 0.0
        %1231 = vmatpush1.msra.mxu0 %v977
        %1232 = vmatprep.subr.mxu0 0.0
        %1233 = vmatpush1.msra.mxu0 %v980
        %1234 = vmatprep.subr.mxu0 0.0
        %1235 = vmatpush1.msra.mxu0 %v983
        %1236 = vmatprep.subr.mxu0 0.0
        %1237 = vmatpush1.msra.mxu0 %v986
        %1238 = vmatprep.subr.mxu0 0.0
        %1239 = vmatpush1.msra.mxu0 %v989
        %1240 = vmatprep.subr.mxu0 0.0
        %1241 = vmatpush1.msra.mxu0 %v992
        %1242 = vmatprep.subr.mxu0 0.0
        %1243 = vmatpush1.msra.mxu0 %v995
        %1244 = vmatprep.subr.mxu0 0.0
        %1245 = vmatpush1.msra.mxu0 %v998
        %1246 = vmatprep.subr.mxu0 0.0
        %1247 = vmatpush1.msra.mxu0 %v1001
        %1248 = vmatprep.subr.mxu0 0.0
        %1249 = vmatpush1.msra.mxu0 %v1004
        %1250 = vmatprep.subr.mxu0 0.0
        %1251 = vmatpush1.msra.mxu0 %v1007
        %1252 = vmatprep.subr.mxu0 0.0
        %1253 = vmatpush1.msra.mxu0 0.0
        %1254 = vmatprep.subr.mxu0 0.0
        %1255 = vmatpush1.msra.mxu0 0.0
        %1256 = vmatprep.subr.mxu0 0.0
        %1257 = vmatpush1.msra.mxu0 0.0
        %1258 = vmatprep.subr.mxu0 0.0
        %1259 = vmatpush1.msra.mxu0 0.0
        %1260 = vmatprep.subr.mxu0 0.0
        %1261 = vmatpush1.msra.mxu0 0.0
        %1262 = vmatprep.subr.mxu0 0.0
        %1263 = vmatpush1.msra.mxu0 0.0
        %1264 = vmatprep.subr.mxu0 0.0
        %1265 = vmatpush1.msra.mxu0 0.0
        %1266 = vmatprep.subr.mxu0 0.0
        %1267 = vmatpush1.msra.mxu0 0.0
        %1268 = vmatprep.subr.mxu0 0.0
        %1269 = vmatpush1.msra.mxu0 0.0
        %1270 = vmatprep.subr.mxu0 0.0
        %1271 = vmatpush1.msra.mxu0 0.0
        %1272 = vmatprep.subr.mxu0 0.0
        %1273 = vmatpush1.msra.mxu0 0.0
        %1274 = vmatprep.subr.mxu0 0.0
        %1275 = vmatpush1.msra.mxu0 0.0
        %1276 = vmatprep.subr.mxu0 0.0
        %1277 = vmatpush1.msra.mxu0 0.0
        %1278 = vmatprep.subr.mxu0 0.0
        %1279 = vmatpush1.msra.mxu0 0.0
        %1280 = vmatprep.subr.mxu0 0.0
        %1281 = vmatpush1.msra.mxu0 0.0
        %1282 = vmatprep.subr.mxu0 0.0
        %1283 = vmatpush1.msra.mxu0 0.0
        %1284 = vmatprep.mubr.f32.mxu0 0.0
        %1285 = vmatmul.mubr.f32.gmra.mrb[0].mxu0 %v863
        %v1286 = vpop.f32.mrb[0].mxu0
        %v1287 = vadd.f32 %v1217, %v1286
        %v1288 = vpop.f32.mrb[0].mxu0
        %1289 = vdwg.mxu0
        %v1290 = vmul.f32 %v1146, %v768
        %v1291 = vmul.f32 %v1148, %v768
        %v1292 = vmul.f32 %v1148, %v1146
        %v1293 = vmul.f32 %v1287, %v768
        %v1294 = vmul.f32 %v1287, %v1146
        %v1295 = vmul.f32 %v1287, %v1148
        %v1296 = vld [vmem:[#allocation8] sm:$0xff]
        %v1297 = vld [vmem:[#allocation8 + $0x8] sm:$0xff]
        %v1298 = vld [vmem:[#allocation8 + $0x10] sm:$0xff]
        %v1299 = vld [vmem:[#allocation8 + $0x18] sm:$0xff]
        %v1300 = vld [vmem:[#allocation8 + $0x20] sm:$0xff]
        %v1301 = vld [vmem:[#allocation8 + $0x28] sm:$0xff]
        %v1302 = vld [vmem:[#allocation8 + $0x30] sm:$0xff]
        %v1303 = vld [vmem:[#allocation8 + $0x38] sm:$0xff]
        %v1304 = vld [vmem:[#allocation8 + $0x40] sm:$0xff]
        %v1305 = vld [vmem:[#allocation8 + $0x48] sm:$0xff]
        %v1306 = vld [vmem:[#allocation8 + $0x50] sm:$0xff]
        %v1307 = vld [vmem:[#allocation8 + $0x58] sm:$0xff]
        %v1308 = vld [vmem:[#allocation8 + $0x60] sm:$0xff]
        %v1309 = vld [vmem:[#allocation8 + $0x68] sm:$0xff]
        %v1310 = vld [vmem:[#allocation8 + $0x70] sm:$0xff]
        %v1311 = vld [vmem:[#allocation8 + $0x78] sm:$0xff]
        %v1312 = vld [vmem:[#allocation8 + $0x80] sm:$0xff]
        %v1313 = vld [vmem:[#allocation8 + $0x88] sm:$0xff]
        %v1314 = vld [vmem:[#allocation8 + $0x90] sm:$0xff]
        %v1315 = vld [vmem:[#allocation8 + $0x98] sm:$0xff]
        %v1316 = vld [vmem:[#allocation8 + $0xa0] sm:$0xff]
        %v1317 = vld [vmem:[#allocation8 + $0xa8] sm:$0xff]
        %v1318 = vld [vmem:[#allocation8 + $0xb0] sm:$0xff]
        %v1319 = vld [vmem:[#allocation8 + $0xb8] sm:$0xff]
        %v1320 = vld [vmem:[#allocation8 + $0xc0] sm:$0xff]
        %v1321 = vld [vmem:[#allocation8 + $0xc8] sm:$0xff]
        %v1322 = vld [vmem:[#allocation8 + $0xd0] sm:$0xff]
        %v1323 = vld [vmem:[#allocation8 + $0xd8] sm:$0xff]
        %v1324 = vld [vmem:[#allocation8 + $0xe0] sm:$0xff]
        %v1325 = vld [vmem:[#allocation8 + $0xe8] sm:$0xff]
        %v1326 = vld [vmem:[#allocation8 + $0xf0] sm:$0xff]
        %v1327 = vld [vmem:[#allocation8 + $0xf8] sm:$0xff]
        %v1328 = vld [vmem:[#allocation8 + $0x100] sm:$0xff]
        %v1329 = vld [vmem:[#allocation8 + $0x108] sm:$0xff]
        %v1330 = vld [vmem:[#allocation8 + $0x110] sm:$0xff]
        %v1331 = vld [vmem:[#allocation8 + $0x118] sm:$0xff]
        %v1332 = vld [vmem:[#allocation8 + $0x120] sm:$0xff]
        %v1333 = vld [vmem:[#allocation8 + $0x128] sm:$0xff]
        %v1334 = vld [vmem:[#allocation8 + $0x130] sm:$0xff]
        %v1335 = vld [vmem:[#allocation8 + $0x138] sm:$0xff]
        %v1336 = vld [vmem:[#allocation8 + $0x140] sm:$0xff]
        %v1337 = vld [vmem:[#allocation8 + $0x148] sm:$0xff]
        %v1338 = vld [vmem:[#allocation8 + $0x150] sm:$0xff]
        %v1339 = vld [vmem:[#allocation8 + $0x158] sm:$0xff]
        %v1340 = vld [vmem:[#allocation8 + $0x160] sm:$0xff]
        %v1341 = vld [vmem:[#allocation8 + $0x168] sm:$0xff]
        %v1342 = vld [vmem:[#allocation8 + $0x170] sm:$0xff]
        %v1343 = vld [vmem:[#allocation8 + $0x178] sm:$0xff]
        %v1344 = vld [vmem:[#allocation8 + $0x180] sm:$0xff]
        %v1345 = vld [vmem:[#allocation8 + $0x188] sm:$0xff]
        %v1346 = vld [vmem:[#allocation8 + $0x190] sm:$0xff]
        %v1347 = vld [vmem:[#allocation8 + $0x198] sm:$0xff]
        %v1348 = vld [vmem:[#allocation8 + $0x1a0] sm:$0xff]
        %v1349 = vld [vmem:[#allocation8 + $0x1a8] sm:$0xff]
        %v1350 = vld [vmem:[#allocation8 + $0x1b0] sm:$0xff]
        %v1351 = vld [vmem:[#allocation8 + $0x1b8] sm:$0xff]
        %v1352 = vld [vmem:[#allocation8 + $0x1c0] sm:$0xff]
        %v1353 = vld [vmem:[#allocation8 + $0x1c8] sm:$0xff]
        %v1354 = vld [vmem:[#allocation8 + $0x1d0] sm:$0xff]
        %v1355 = vld [vmem:[#allocation8 + $0x1d8] sm:$0xff]
        %v1356 = vld [vmem:[#allocation8 + $0x1e0] sm:$0xff]
        %v1357 = vld [vmem:[#allocation8 + $0x1e8] sm:$0xff]
        %v1358 = vld [vmem:[#allocation8 + $0x1f0] sm:$0xff]
        %v1359 = vld [vmem:[#allocation8 + $0x1f8] sm:$0xff]
        %v1360 = vld [vmem:[#allocation8 + $0x200] sm:$0xff]
        %v1361 = vld [vmem:[#allocation8 + $0x208] sm:$0xff]
        %v1362 = vld [vmem:[#allocation8 + $0x210] sm:$0xff]
        %v1363 = vld [vmem:[#allocation8 + $0x218] sm:$0xff]
        %v1364 = vld [vmem:[#allocation8 + $0x220] sm:$0xff]
        %v1365 = vld [vmem:[#allocation8 + $0x228] sm:$0xff]
        %v1366 = vld [vmem:[#allocation8 + $0x230] sm:$0xff]
        %v1367 = vld [vmem:[#allocation8 + $0x238] sm:$0xff]
        %v1368 = vld [vmem:[#allocation8 + $0x240] sm:$0xff]
        %v1369 = vld [vmem:[#allocation8 + $0x248] sm:$0xff]
        %v1370 = vld [vmem:[#allocation8 + $0x250] sm:$0xff]
        %v1371 = vld [vmem:[#allocation8 + $0x258] sm:$0xff]
        %v1372 = vld [vmem:[#allocation8 + $0x260] sm:$0xff]
        %v1373 = vld [vmem:[#allocation8 + $0x268] sm:$0xff]
        %v1374 = vld [vmem:[#allocation8 + $0x270] sm:$0xff]
        %v1375 = vld [vmem:[#allocation8 + $0x278] sm:$0xff]
        %v1376 = vld [vmem:[#allocation8 + $0x280] sm:$0xff]
        %v1377 = vld [vmem:[#allocation8 + $0x288] sm:$0xff]
        %v1378 = vld [vmem:[#allocation8 + $0x290] sm:$0xff]
        %v1379 = vld [vmem:[#allocation8 + $0x298] sm:$0xff]
        %v1380 = vld [vmem:[#allocation8 + $0x2a0] sm:$0xff]
        %v1381 = vld [vmem:[#allocation8 + $0x2a8] sm:$0xff]
        %v1382 = vld [vmem:[#allocation8 + $0x2b0] sm:$0xff]
        %v1383 = vld [vmem:[#allocation8 + $0x2b8] sm:$0xff]
        %v1384 = vld [vmem:[#allocation8 + $0x2c0] sm:$0xff]
        %v1385 = vld [vmem:[#allocation8 + $0x2c8] sm:$0xff]
        %v1386 = vld [vmem:[#allocation8 + $0x2d0] sm:$0xff]
        %v1387 = vld [vmem:[#allocation8 + $0x2d8] sm:$0xff]
        %v1388 = vld [vmem:[#allocation8 + $0x2e0] sm:$0xff]
        %v1389 = vld [vmem:[#allocation8 + $0x2e8] sm:$0xff]
        %v1390 = vld [vmem:[#allocation8 + $0x2f0] sm:$0xff]
        %v1391 = vld [vmem:[#allocation8 + $0x2f8] sm:$0xff]
        %v1392 = vld [vmem:[#allocation8 + $0x300] sm:$0xff]
        %v1393 = vld [vmem:[#allocation8 + $0x308] sm:$0xff]
        %v1394 = vld [vmem:[#allocation8 + $0x310] sm:$0xff]
        %v1395 = vld [vmem:[#allocation8 + $0x318] sm:$0xff]
        %v1396 = vld [vmem:[#allocation8 + $0x320] sm:$0xff]
        %v1397 = vld [vmem:[#allocation8 + $0x328] sm:$0xff]
        %v1398 = vld [vmem:[#allocation8 + $0x330] sm:$0xff]
        %v1399 = vld [vmem:[#allocation8 + $0x338] sm:$0xff]
        %v1400 = vld [vmem:[#allocation8 + $0x340] sm:$0xff]
        %v1401 = vld [vmem:[#allocation8 + $0x348] sm:$0xff]
        %v1402 = vld [vmem:[#allocation8 + $0x350] sm:$0xff]
        %v1403 = vld [vmem:[#allocation8 + $0x358] sm:$0xff]
        %v1404 = vld [vmem:[#allocation8 + $0x360] sm:$0xff]
        %v1405 = vld [vmem:[#allocation8 + $0x368] sm:$0xff]
        %v1406 = vld [vmem:[#allocation8 + $0x370] sm:$0xff]
        %v1407 = vld [vmem:[#allocation8 + $0x378] sm:$0xff]
        %v1408 = vld [vmem:[%s8] sm:$0x1]
        %v1410 = vlaneseq
        %v1411 = vshrl.u32 %v1410, 7
        %v1412 = vsub.s32 0, %v1411
        %v1413 = vrot.slane %v1408, %v1412
        %1415 = vmatprep.subr.mxu0 0.0
        %1416 = vmatpush1.msra.mxu0 %v1296
        %1417 = vmatprep.subr.mxu0 0.0
        %1418 = vmatpush1.msra.mxu0 %v1297
        %1419 = vmatprep.subr.mxu0 0.0
        %1420 = vmatpush1.msra.mxu0 %v1298
        %1421 = vmatprep.subr.mxu0 0.0
        %1422 = vmatpush1.msra.mxu0 %v1299
        %1423 = vmatprep.subr.mxu0 0.0
        %1424 = vmatpush1.msra.mxu0 %v1300
        %1425 = vmatprep.subr.mxu0 0.0
        %1426 = vmatpush1.msra.mxu0 %v1301
        %1427 = vmatprep.subr.mxu0 0.0
        %1428 = vmatpush1.msra.mxu0 %v1302
        %1429 = vmatprep.subr.mxu0 0.0
        %1430 = vmatpush1.msra.mxu0 %v1303
        %1431 = vmatprep.subr.mxu0 0.0
        %1432 = vmatpush1.msra.mxu0 %v1304
        %1433 = vmatprep.subr.mxu0 0.0
        %1434 = vmatpush1.msra.mxu0 %v1305
        %1435 = vmatprep.subr.mxu0 0.0
        %1436 = vmatpush1.msra.mxu0 %v1306
        %1437 = vmatprep.subr.mxu0 0.0
        %1438 = vmatpush1.msra.mxu0 %v1307
        %1439 = vmatprep.subr.mxu0 0.0
        %1440 = vmatpush1.msra.mxu0 %v1308
        %1441 = vmatprep.subr.mxu0 0.0
        %1442 = vmatpush1.msra.mxu0 %v1309
        %1443 = vmatprep.subr.mxu0 0.0
        %1444 = vmatpush1.msra.mxu0 %v1310
        %1445 = vmatprep.subr.mxu0 0.0
        %1446 = vmatpush1.msra.mxu0 %v1311
        %1447 = vmatprep.subr.mxu0 0.0
        %1448 = vmatpush1.msra.mxu0 %v1312
        %1449 = vmatprep.subr.mxu0 0.0
        %1450 = vmatpush1.msra.mxu0 %v1313
        %1451 = vmatprep.subr.mxu0 0.0
        %1452 = vmatpush1.msra.mxu0 %v1314
        %1453 = vmatprep.subr.mxu0 0.0
        %1454 = vmatpush1.msra.mxu0 %v1315
        %1455 = vmatprep.subr.mxu0 0.0
        %1456 = vmatpush1.msra.mxu0 %v1316
        %1457 = vmatprep.subr.mxu0 0.0
        %1458 = vmatpush1.msra.mxu0 %v1317
        %1459 = vmatprep.subr.mxu0 0.0
        %1460 = vmatpush1.msra.mxu0 %v1318
        %1461 = vmatprep.subr.mxu0 0.0
        %1462 = vmatpush1.msra.mxu0 %v1319
        %1463 = vmatprep.subr.mxu0 0.0
        %1464 = vmatpush1.msra.mxu0 %v1320
        %1465 = vmatprep.subr.mxu0 0.0
        %1466 = vmatpush1.msra.mxu0 %v1321
        %1467 = vmatprep.subr.mxu0 0.0
        %1468 = vmatpush1.msra.mxu0 %v1322
        %1469 = vmatprep.subr.mxu0 0.0
        %1470 = vmatpush1.msra.mxu0 %v1323
        %1471 = vmatprep.subr.mxu0 0.0
        %1472 = vmatpush1.msra.mxu0 %v1324
        %1473 = vmatprep.subr.mxu0 0.0
        %1474 = vmatpush1.msra.mxu0 %v1325
        %1475 = vmatprep.subr.mxu0 0.0
        %1476 = vmatpush1.msra.mxu0 %v1326
        %1477 = vmatprep.subr.mxu0 0.0
        %1478 = vmatpush1.msra.mxu0 %v1327
        %1479 = vmatprep.mubr.f32.mxu0 %v1290
        %1480 = vmatmul.mubr.f32.gmra.mrb[0].mxu0 %v768
        %v1481 = vpop.f32.mrb[0].mxu0
        %v1482 = vadd.f32 %v1413, %v1481
        %v1483 = vpop.f32.mrb[0].mxu0
        %1484 = vdwg.mxu0
        %1485 = vmatprep.subr.mxu0 0.0
        %1486 = vmatpush1.msra.mxu0 %v1328
        %1487 = vmatprep.subr.mxu0 0.0
        %1488 = vmatpush1.msra.mxu0 %v1329
        %1489 = vmatprep.subr.mxu0 0.0
        %1490 = vmatpush1.msra.mxu0 %v1330
        %1491 = vmatprep.subr.mxu0 0.0
        %1492 = vmatpush1.msra.mxu0 %v1331
        %1493 = vmatprep.subr.mxu0 0.0
        %1494 = vmatpush1.msra.mxu0 %v1332
        %1495 = vmatprep.subr.mxu0 0.0
        %1496 = vmatpush1.msra.mxu0 %v1333
        %1497 = vmatprep.subr.mxu0 0.0
        %1498 = vmatpush1.msra.mxu0 %v1334
        %1499 = vmatprep.subr.mxu0 0.0
        %1500 = vmatpush1.msra.mxu0 %v1335
        %1501 = vmatprep.subr.mxu0 0.0
        %1502 = vmatpush1.msra.mxu0 %v1336
        %1503 = vmatprep.subr.mxu0 0.0
        %1504 = vmatpush1.msra.mxu0 %v1337
        %1505 = vmatprep.subr.mxu0 0.0
        %1506 = vmatpush1.msra.mxu0 %v1338
        %1507 = vmatprep.subr.mxu0 0.0
        %1508 = vmatpush1.msra.mxu0 %v1339
        %1509 = vmatprep.subr.mxu0 0.0
        %1510 = vmatpush1.msra.mxu0 %v1340
        %1511 = vmatprep.subr.mxu0 0.0
        %1512 = vmatpush1.msra.mxu0 %v1341
        %1513 = vmatprep.subr.mxu0 0.0
        %1514 = vmatpush1.msra.mxu0 %v1342
        %1515 = vmatprep.subr.mxu0 0.0
        %1516 = vmatpush1.msra.mxu0 %v1343
        %1517 = vmatprep.subr.mxu0 0.0
        %1518 = vmatpush1.msra.mxu0 %v1344
        %1519 = vmatprep.subr.mxu0 0.0
        %1520 = vmatpush1.msra.mxu0 %v1345
        %1521 = vmatprep.subr.mxu0 0.0
        %1522 = vmatpush1.msra.mxu0 %v1346
        %1523 = vmatprep.subr.mxu0 0.0
        %1524 = vmatpush1.msra.mxu0 %v1347
        %1525 = vmatprep.subr.mxu0 0.0
        %1526 = vmatpush1.msra.mxu0 %v1348
        %1527 = vmatprep.subr.mxu0 0.0
        %1528 = vmatpush1.msra.mxu0 %v1349
        %1529 = vmatprep.subr.mxu0 0.0
        %1530 = vmatpush1.msra.mxu0 %v1350
        %1531 = vmatprep.subr.mxu0 0.0
        %1532 = vmatpush1.msra.mxu0 %v1351
        %1533 = vmatprep.subr.mxu0 0.0
        %1534 = vmatpush1.msra.mxu0 %v1352
        %1535 = vmatprep.subr.mxu0 0.0
        %1536 = vmatpush1.msra.mxu0 %v1353
        %1537 = vmatprep.subr.mxu0 0.0
        %1538 = vmatpush1.msra.mxu0 %v1354
        %1539 = vmatprep.subr.mxu0 0.0
        %1540 = vmatpush1.msra.mxu0 %v1355
        %1541 = vmatprep.subr.mxu0 0.0
        %1542 = vmatpush1.msra.mxu0 %v1356
        %1543 = vmatprep.subr.mxu0 0.0
        %1544 = vmatpush1.msra.mxu0 %v1357
        %1545 = vmatprep.subr.mxu0 0.0
        %1546 = vmatpush1.msra.mxu0 %v1358
        %1547 = vmatprep.subr.mxu0 0.0
        %1548 = vmatpush1.msra.mxu0 %v1359
        %1549 = vmatprep.mubr.f32.mxu0 %v1292
        %1550 = vmatmul.mubr.f32.gmra.mrb[0].mxu0 %v1291
        %v1551 = vpop.f32.mrb[0].mxu0
        %v1552 = vadd.f32 %v1482, %v1551
        %v1553 = vpop.f32.mrb[0].mxu0
        %1554 = vdwg.mxu0
        %1555 = vmatprep.subr.mxu0 0.0
        %1556 = vmatpush1.msra.mxu0 %v1360
        %1557 = vmatprep.subr.mxu0 0.0
        %1558 = vmatpush1.msra.mxu0 %v1361
        %1559 = vmatprep.subr.mxu0 0.0
        %1560 = vmatpush1.msra.mxu0 %v1362
        %1561 = vmatprep.subr.mxu0 0.0
        %1562 = vmatpush1.msra.mxu0 %v1363
        %1563 = vmatprep.subr.mxu0 0.0
        %1564 = vmatpush1.msra.mxu0 %v1364
        %1565 = vmatprep.subr.mxu0 0.0
        %1566 = vmatpush1.msra.mxu0 %v1365
        %1567 = vmatprep.subr.mxu0 0.0
        %1568 = vmatpush1.msra.mxu0 %v1366
        %1569 = vmatprep.subr.mxu0 0.0
        %1570 = vmatpush1.msra.mxu0 %v1367
        %1571 = vmatprep.subr.mxu0 0.0
        %1572 = vmatpush1.msra.mxu0 %v1368
        %1573 = vmatprep.subr.mxu0 0.0
        %1574 = vmatpush1.msra.mxu0 %v1369
        %1575 = vmatprep.subr.mxu0 0.0
        %1576 = vmatpush1.msra.mxu0 %v1370
        %1577 = vmatprep.subr.mxu0 0.0
        %1578 = vmatpush1.msra.mxu0 %v1371
        %1579 = vmatprep.subr.mxu0 0.0
        %1580 = vmatpush1.msra.mxu0 %v1372
        %1581 = vmatprep.subr.mxu0 0.0
        %1582 = vmatpush1.msra.mxu0 %v1373
        %1583 = vmatprep.subr.mxu0 0.0
        %1584 = vmatpush1.msra.mxu0 %v1374
        %1585 = vmatprep.subr.mxu0 0.0
        %1586 = vmatpush1.msra.mxu0 %v1375
        %1587 = vmatprep.subr.mxu0 0.0
        %1588 = vmatpush1.msra.mxu0 %v1376
        %1589 = vmatprep.subr.mxu0 0.0
        %1590 = vmatpush1.msra.mxu0 %v1377
        %1591 = vmatprep.subr.mxu0 0.0
        %1592 = vmatpush1.msra.mxu0 %v1378
        %1593 = vmatprep.subr.mxu0 0.0
        %1594 = vmatpush1.msra.mxu0 %v1379
        %1595 = vmatprep.subr.mxu0 0.0
        %1596 = vmatpush1.msra.mxu0 %v1380
        %1597 = vmatprep.subr.mxu0 0.0
        %1598 = vmatpush1.msra.mxu0 %v1381
        %1599 = vmatprep.subr.mxu0 0.0
        %1600 = vmatpush1.msra.mxu0 %v1382
        %1601 = vmatprep.subr.mxu0 0.0
        %1602 = vmatpush1.msra.mxu0 %v1383
        %1603 = vmatprep.subr.mxu0 0.0
        %1604 = vmatpush1.msra.mxu0 %v1384
        %1605 = vmatprep.subr.mxu0 0.0
        %1606 = vmatpush1.msra.mxu0 %v1385
        %1607 = vmatprep.subr.mxu0 0.0
        %1608 = vmatpush1.msra.mxu0 %v1386
        %1609 = vmatprep.subr.mxu0 0.0
        %1610 = vmatpush1.msra.mxu0 %v1387
        %1611 = vmatprep.subr.mxu0 0.0
        %1612 = vmatpush1.msra.mxu0 %v1388
        %1613 = vmatprep.subr.mxu0 0.0
        %1614 = vmatpush1.msra.mxu0 %v1389
        %1615 = vmatprep.subr.mxu0 0.0
        %1616 = vmatpush1.msra.mxu0 %v1390
        %1617 = vmatprep.subr.mxu0 0.0
        %1618 = vmatpush1.msra.mxu0 %v1391
        %1619 = vmatprep.mubr.f32.mxu0 %v1294
        %1620 = vmatmul.mubr.f32.gmra.mrb[0].mxu0 %v1293
        %v1621 = vpop.f32.mrb[0].mxu0
        %v1622 = vadd.f32 %v1552, %v1621
        %v1623 = vpop.f32.mrb[0].mxu0
        %1624 = vdwg.mxu0
        %1625 = vmatprep.subr.mxu0 0.0
        %1626 = vmatpush1.msra.mxu0 %v1392
        %1627 = vmatprep.subr.mxu0 0.0
        %1628 = vmatpush1.msra.mxu0 %v1393
        %1629 = vmatprep.subr.mxu0 0.0
        %1630 = vmatpush1.msra.mxu0 %v1394
        %1631 = vmatprep.subr.mxu0 0.0
        %1632 = vmatpush1.msra.mxu0 %v1395
        %1633 = vmatprep.subr.mxu0 0.0
        %1634 = vmatpush1.msra.mxu0 %v1396
        %1635 = vmatprep.subr.mxu0 0.0
        %1636 = vmatpush1.msra.mxu0 %v1397
        %1637 = vmatprep.subr.mxu0 0.0
        %1638 = vmatpush1.msra.mxu0 %v1398
        %1639 = vmatprep.subr.mxu0 0.0
        %1640 = vmatpush1.msra.mxu0 %v1399
        %1641 = vmatprep.subr.mxu0 0.0
        %1642 = vmatpush1.msra.mxu0 %v1400
        %1643 = vmatprep.subr.mxu0 0.0
        %1644 = vmatpush1.msra.mxu0 %v1401
        %1645 = vmatprep.subr.mxu0 0.0
        %1646 = vmatpush1.msra.mxu0 %v1402
        %1647 = vmatprep.subr.mxu0 0.0
        %1648 = vmatpush1.msra.mxu0 %v1403
        %1649 = vmatprep.subr.mxu0 0.0
        %1650 = vmatpush1.msra.mxu0 %v1404
        %1651 = vmatprep.subr.mxu0 0.0
        %1652 = vmatpush1.msra.mxu0 %v1405
        %1653 = vmatprep.subr.mxu0 0.0
        %1654 = vmatpush1.msra.mxu0 %v1406
        %1655 = vmatprep.subr.mxu0 0.0
        %1656 = vmatpush1.msra.mxu0 %v1407
        %1657 = vmatprep.subr.mxu0 0.0
        %1658 = vmatpush1.msra.mxu0 0.0
        %1659 = vmatprep.subr.mxu0 0.0
        %1660 = vmatpush1.msra.mxu0 0.0
        %1661 = vmatprep.subr.mxu0 0.0
        %1662 = vmatpush1.msra.mxu0 0.0
        %1663 = vmatprep.subr.mxu0 0.0
        %1664 = vmatpush1.msra.mxu0 0.0
        %1665 = vmatprep.subr.mxu0 0.0
        %1666 = vmatpush1.msra.mxu0 0.0
        %1667 = vmatprep.subr.mxu0 0.0
        %1668 = vmatpush1.msra.mxu0 0.0
        %1669 = vmatprep.subr.mxu0 0.0
        %1670 = vmatpush1.msra.mxu0 0.0
        %1671 = vmatprep.subr.mxu0 0.0
        %1672 = vmatpush1.msra.mxu0 0.0
        %1673 = vmatprep.subr.mxu0 0.0
        %1674 = vmatpush1.msra.mxu0 0.0
        %1675 = vmatprep.subr.mxu0 0.0
        %1676 = vmatpush1.msra.mxu0 0.0
        %1677 = vmatprep.subr.mxu0 0.0
        %1678 = vmatpush1.msra.mxu0 0.0
        %1679 = vmatprep.subr.mxu0 0.0
        %1680 = vmatpush1.msra.mxu0 0.0
        %1681 = vmatprep.subr.mxu0 0.0
        %1682 = vmatpush1.msra.mxu0 0.0
        %1683 = vmatprep.subr.mxu0 0.0
        %1684 = vmatpush1.msra.mxu0 0.0
        %1685 = vmatprep.subr.mxu0 0.0
        %1686 = vmatpush1.msra.mxu0 0.0
        %1687 = vmatprep.subr.mxu0 0.0
        %1688 = vmatpush1.msra.mxu0 0.0
        %1689 = vmatprep.mubr.f32.mxu0 0.0
        %1690 = vmatmul.mubr.f32.gmra.mrb[0].mxu0 %v1295
        %v1691 = vpop.f32.mrb[0].mxu0
        %v1692 = vadd.f32 %v1622, %v1691
        %v1693 = vpop.f32.mrb[0].mxu0
        %1694 = vdwg.mxu0
        %v1695 = vmax.f32 %v1692, 0.0
        %v1696 = vpack.c.bf16 %v1695, %v1695
        %v1697 = vld [vmem:[#allocation10] sm:$0xf]
        %v1698 = vld [vmem:[#allocation10 + $0x4] sm:$0xf]
        %v1699 = vld [vmem:[#allocation10 + $0x8] sm:$0xf]
        %v1700 = vld [vmem:[#allocation10 + $0xc] sm:$0xf]
        %v1701 = vld [vmem:[#allocation10 + $0x10] sm:$0xf]
        %v1702 = vld [vmem:[#allocation10 + $0x14] sm:$0xf]
        %v1703 = vld [vmem:[#allocation10 + $0x18] sm:$0xf]
        %v1704 = vld [vmem:[#allocation10 + $0x1c] sm:$0xf]
        %v1705 = vld [vmem:[#allocation10 + $0x20] sm:$0xf]
        %v1706 = vld [vmem:[#allocation10 + $0x24] sm:$0xf]
        %v1707 = vld [vmem:[#allocation10 + $0x28] sm:$0xf]
        %v1708 = vld [vmem:[#allocation10 + $0x2c] sm:$0xf]
        %v1709 = vld [vmem:[#allocation10 + $0x30] sm:$0xf]
        %v1710 = vld [vmem:[#allocation10 + $0x34] sm:$0xf]
        %v1711 = vld [vmem:[#allocation10 + $0x38] sm:$0xf]
        %v1712 = vld [vmem:[#allocation10 + $0x3c] sm:$0xf]
        %v1713 = vld [vmem:[%s11] sm:$0x1]
        %v1715 = vlaneseq
        %v1716 = vshrl.u32 %v1715, 7
        %v1717 = vsub.s32 0, %v1716
        %v1718 = vrot.slane %v1713, %v1717
        %v1736 = vunpack.c.l.b16 %v1697
        %v1737 = vunpack.c.l.b16 %v1698
        %v1738 = vunpack.c.l.b16 %v1699
        %v1739 = vunpack.c.l.b16 %v1700
        %v1740 = vunpack.c.l.b16 %v1701
        %v1741 = vunpack.c.l.b16 %v1702
        %v1742 = vunpack.c.l.b16 %v1703
        %v1743 = vunpack.c.l.b16 %v1704
        %v1744 = vunpack.c.l.b16 %v1705
        %v1745 = vunpack.c.l.b16 %v1706
        %v1746 = vunpack.c.l.b16 %v1707
        %v1747 = vunpack.c.l.b16 %v1708
        %v1748 = vunpack.c.l.b16 %v1709
        %v1749 = vunpack.c.l.b16 %v1710
        %v1750 = vunpack.c.l.b16 %v1711
        %v1751 = vunpack.c.l.b16 %v1712
        %v1752 = vpack.c.b16 %v1737, %v1736
        %v1753 = vpack.c.b16 %v1739, %v1738
        %v1754 = vpack.c.b16 %v1741, %v1740
        %v1755 = vpack.c.b16 %v1743, %v1742
        %v1756 = vpack.c.b16 %v1745, %v1744
        %v1757 = vpack.c.b16 %v1747, %v1746
        %v1758 = vpack.c.b16 %v1749, %v1748
        %v1759 = vpack.c.b16 %v1751, %v1750
        %1768 = vmatprep.subr.bf16.mxu0 0
        %1769 = vmatpush1.bf16.msra.mxu0 %v1752
        %1770 = vmatprep.subr.bf16.mxu0 0
        %1771 = vmatpush1.bf16.msra.mxu0 %v1753
        %1772 = vmatprep.subr.bf16.mxu0 0
        %1773 = vmatpush1.bf16.msra.mxu0 %v1754
        %1774 = vmatprep.subr.bf16.mxu0 0
        %1775 = vmatpush1.bf16.msra.mxu0 %v1755
        %1776 = vmatprep.subr.bf16.mxu0 0
        %1777 = vmatpush1.bf16.msra.mxu0 %v1756
        %1778 = vmatprep.subr.bf16.mxu0 0
        %1779 = vmatpush1.bf16.msra.mxu0 %v1757
        %1780 = vmatprep.subr.bf16.mxu0 0
        %1781 = vmatpush1.bf16.msra.mxu0 %v1758
        %1782 = vmatprep.subr.bf16.mxu0 0
        %1783 = vmatpush1.bf16.msra.mxu0 %v1759
        %1784 = vmatprep.subr.bf16.mxu0 0
        %1785 = vmatpush1.bf16.msra.mxu0 0
        %1786 = vmatprep.subr.bf16.mxu0 0
        %1787 = vmatpush1.bf16.msra.mxu0 0
        %1788 = vmatprep.subr.bf16.mxu0 0
        %1789 = vmatpush1.bf16.msra.mxu0 0
        %1790 = vmatprep.subr.bf16.mxu0 0
        %1791 = vmatpush1.bf16.msra.mxu0 0
        %1792 = vmatprep.subr.bf16.mxu0 0
        %1793 = vmatpush1.bf16.msra.mxu0 0
        %1794 = vmatprep.subr.bf16.mxu0 0
        %1795 = vmatpush1.bf16.msra.mxu0 0
        %1796 = vmatprep.subr.bf16.mxu0 0
        %1797 = vmatpush1.bf16.msra.mxu0 0
        %1798 = vmatprep.subr.bf16.mxu0 0
        %1799 = vmatpush1.bf16.msra.mxu0 0
        %1800 = vmatprep.mubr.bf16.mxu0 0
        %1801 = vmatmul.mubr.bf16.gmra.mrb[0].mxu0 %v1696
        %v1802 = vpop.f32.mrb[0].mxu0
        %v1803 = vadd.f32 %v1718, %v1802
        %v1804 = vpop.f32.mrb[0].mxu0
        %v1805 = vpop.f32.mrb[0].mxu0
        %v1806 = vpop.f32.mrb[0].mxu0
        %1807 = vdwg.mxu0
        %v1808 = vmax.f32 %v1803, 0.0
        %v1809 = vpack.c.bf16 %v1808, %v1808
        %v1810 = vld [vmem:[#allocation11] sm:$0xf]
        %v1811 = vld [vmem:[#allocation11 + $0x4] sm:$0xf]
        %v1812 = vld [vmem:[#allocation11 + $0x8] sm:$0xf]
        %v1813 = vld [vmem:[#allocation11 + $0xc] sm:$0xf]
        %v1814 = vld [vmem:[#allocation11 + $0x10] sm:$0xf]
        %v1815 = vld [vmem:[#allocation11 + $0x14] sm:$0xf]
        %v1816 = vld [vmem:[#allocation11 + $0x18] sm:$0xf]
        %v1817 = vld [vmem:[#allocation11 + $0x1c] sm:$0xf]
        %v1818 = vld [vmem:[#allocation11 + $0x20] sm:$0xf]
        %v1819 = vld [vmem:[#allocation11 + $0x24] sm:$0xf]
        %v1820 = vld [vmem:[#allocation11 + $0x28] sm:$0xf]
        %v1821 = vld [vmem:[#allocation11 + $0x2c] sm:$0xf]
        %v1822 = vld [vmem:[#allocation11 + $0x30] sm:$0xf]
        %v1823 = vld [vmem:[#allocation11 + $0x34] sm:$0xf]
        %v1824 = vld [vmem:[#allocation11 + $0x38] sm:$0xf]
        %v1825 = vld [vmem:[#allocation11 + $0x3c] sm:$0xf]
        %v1826 = vld [vmem:[%s12] sm:$0x1]
        %v1828 = vlaneseq
        %v1829 = vshrl.u32 %v1828, 7
        %v1830 = vsub.s32 0, %v1829
        %v1831 = vrot.slane %v1826, %v1830
        %v1849 = vunpack.c.l.b16 %v1810
        %v1850 = vunpack.c.l.b16 %v1811
        %v1851 = vunpack.c.l.b16 %v1812
        %v1852 = vunpack.c.l.b16 %v1813
        %v1853 = vunpack.c.l.b16 %v1814
        %v1854 = vunpack.c.l.b16 %v1815
        %v1855 = vunpack.c.l.b16 %v1816
        %v1856 = vunpack.c.l.b16 %v1817
        %v1857 = vunpack.c.l.b16 %v1818
        %v1858 = vunpack.c.l.b16 %v1819
        %v1859 = vunpack.c.l.b16 %v1820
        %v1860 = vunpack.c.l.b16 %v1821
        %v1861 = vunpack.c.l.b16 %v1822
        %v1862 = vunpack.c.l.b16 %v1823
        %v1863 = vunpack.c.l.b16 %v1824
        %v1864 = vunpack.c.l.b16 %v1825
        %v1865 = vpack.c.b16 %v1850, %v1849
        %v1866 = vpack.c.b16 %v1852, %v1851
        %v1867 = vpack.c.b16 %v1854, %v1853
        %v1868 = vpack.c.b16 %v1856, %v1855
        %v1869 = vpack.c.b16 %v1858, %v1857
        %v1870 = vpack.c.b16 %v1860, %v1859
        %v1871 = vpack.c.b16 %v1862, %v1861
        %v1872 = vpack.c.b16 %v1864, %v1863
        %1881 = vmatprep.subr.bf16.mxu0 0
        %1882 = vmatpush1.bf16.msra.mxu0 %v1865
        %1883 = vmatprep.subr.bf16.mxu0 0
        %1884 = vmatpush1.bf16.msra.mxu0 %v1866
        %1885 = vmatprep.subr.bf16.mxu0 0
        %1886 = vmatpush1.bf16.msra.mxu0 %v1867
        %1887 = vmatprep.subr.bf16.mxu0 0
        %1888 = vmatpush1.bf16.msra.mxu0 %v1868
        %1889 = vmatprep.subr.bf16.mxu0 0
        %1890 = vmatpush1.bf16.msra.mxu0 %v1869
        %1891 = vmatprep.subr.bf16.mxu0 0
        %1892 = vmatpush1.bf16.msra.mxu0 %v1870
        %1893 = vmatprep.subr.bf16.mxu0 0
        %1894 = vmatpush1.bf16.msra.mxu0 %v1871
        %1895 = vmatprep.subr.bf16.mxu0 0
        %1896 = vmatpush1.bf16.msra.mxu0 %v1872
        %1897 = vmatprep.subr.bf16.mxu0 0
        %1898 = vmatpush1.bf16.msra.mxu0 0
        %1899 = vmatprep.subr.bf16.mxu0 0
        %1900 = vmatpush1.bf16.msra.mxu0 0
        %1901 = vmatprep.subr.bf16.mxu0 0
        %1902 = vmatpush1.bf16.msra.mxu0 0
        %1903 = vmatprep.subr.bf16.mxu0 0
        %1904 = vmatpush1.bf16.msra.mxu0 0
        %1905 = vmatprep.subr.bf16.mxu0 0
        %1906 = vmatpush1.bf16.msra.mxu0 0
        %1907 = vmatprep.subr.bf16.mxu0 0
        %1908 = vmatpush1.bf16.msra.mxu0 0
        %1909 = vmatprep.subr.bf16.mxu0 0
        %1910 = vmatpush1.bf16.msra.mxu0 0
        %1911 = vmatprep.subr.bf16.mxu0 0
        %1912 = vmatpush1.bf16.msra.mxu0 0
        %1913 = vmatprep.mubr.bf16.mxu0 0
        %1914 = vmatmul.mubr.bf16.gmra.mrb[0].mxu0 %v1809
        %v1915 = vpop.f32.mrb[0].mxu0
        %v1916 = vadd.f32 %v1831, %v1915
        %v1917 = vpop.f32.mrb[0].mxu0
        %v1918 = vpop.f32.mrb[0].mxu0
        %v1919 = vpop.f32.mrb[0].mxu0
        %1920 = vdwg.mxu0
        %v1921 = vxor.u32 %v1916, 2147483648
        %v1922 = vmul.f32 %v1921, 1.442695
        %v1923 = vpow.pop %v1922
        %v1924 = vadd.f32 %v1923, 1.0
        %v1925 = vrcp.pop %v1924
        %v1926 = vmul.f32 1.0, %v1925
        %1927 = vst [vmem:[%s532] sm:$0xff] %v1926
        %s1928 = sand.u32 %s322, 1
        %s1929 = scalar_lea.sflag [#allocation4], %s1928
        %s1930 = sand.u32 %s322, 1
        %s1931 = smul.addr %s1930, 8
        %s1932 = scalar_lea.vmem [#allocation13], %s1931
        // Predicated region
        $region97: #{tpu_custom_call.1} parent=71 // pred_check
          %p1933 = pneg %p332
        $region98: #{tpu_custom_call.1} parent=71 // pred_check_branch
          %1935 = sbr.rel (%p1933) target = $region100
        $region99: #{tpu_custom_call.1} parent=71 // pred_region
          %s1937 = ssub.s32 128, 128
          %1938 = vsyncadd %s1929, %s1937
          %s1939 = smul.addr %s31, 128
          %s1940 = scalar_lea.hbm %s13, %s1939
          %s1942 = sshll.u32 %s1932, 4
          %s1943 = int_to_ptr.vmem [resolvable:$true] %s1942
          %1945 = dma.vmem_to_hbm [thread:$0]  %s1943, 128, %s1940, %s1929
        $region100: #{tpu_custom_call.1} parent=71 // pred_fallthru
          _
      $region72: #{tpu_custom_call.1} parent=5 // pred_fallthru
        _
      %p1946 = scmp.le.s32.totalorder 2, %s26
      // Predicated region
      $region101: #{tpu_custom_call.1} parent=5 // pred_check
        %p1947 = pneg %p1946
      $region102: #{tpu_custom_call.1} parent=5 // pred_check_branch
        %1949 = sbr.rel (%p1947) target = $region104
      $region103: #{tpu_custom_call.1} parent=5 // pred_region
        %s1950 = ssub.s32 %s26, 2
        // Predicated region
        $region105: #{tpu_custom_call.1} parent=103 // pred_check
          %p1951 = pneg %p338
        $region106: #{tpu_custom_call.1} parent=103 // pred_check_branch
          %1953 = sbr.rel (%p1951) target = $region108
        $region107: #{tpu_custom_call.1} parent=103 // pred_region
          %s1954 = sand.u32 %s323, 1
          %s1955 = scalar_lea.sflag [#allocation4], %s1954
          %s1956 = sand.u32 %s323, 1
          %s1957 = smul.addr %s1956, 8
          %s1958 = scalar_lea.vmem [#allocation13], %s1957
          %1959 = dma.done %s1955, 128
        $region108: #{tpu_custom_call.1} parent=103 // pred_fallthru
          _
      $region104: #{tpu_custom_call.1} parent=5 // pred_fallthru
        _
    $region6: #{tpu_custom_call.1} parent=1 // loop_footer
      %s30 = sadd.s32 1, %s26
    $region7: #{tpu_custom_call.1} parent=1 // loop_footer_branch
      %25 = sbr.rel target = $region3
    $region8: #{tpu_custom_call.1} parent=1 // loop_exit
      _
    %1960 = vsyncpa [#allocation3], 1
    %s1961 = scalar_lea.sflag [#allocation3], 1
    %1962 = vsyncpa %s1961, 1
    %1963 = vsyncpa [#allocation6], 1
    %1964 = vsyncpa [#allocation9], 1
    %1965 = vsyncpa [#allocation12], 1
    %1966 = vsyncpa [#allocation4], 1
    %s1967 = scalar_lea.sflag [#allocation4], 1
    %1968 = vsyncpa %s1967, 1

// kernel: tpu_custom_call.1
$region0: #{tpu_custom_call.1}
  #allocation0 [shape = 'u32[]', space=smem, size = 0x4, offset = 0x4, fixed_abs, tag = 'smem constant byte address 0x4 - core index']
  #allocation1 [shape = 'u32[144,128]{1,0:T(1,128)}', space=vmem, size = 0x12000, scoped, tag = 'internal scratch']
  %s0 = inlined_call_operand.vmem [shape: f32[16,128], index: 0, kind: input, shape index: {}]
  %s1 = inlined_call_operand.vmem [shape: s32[16,6], index: 1, kind: input, shape index: {}]
  %s2 = inlined_call_operand.hbm [shape: f32[384,384], index: 2, kind: input, shape index: {}]
  %s3 = inlined_call_operand.hbm [shape: bf16[128,128], index: 3, kind: input, shape index: {}]
  %s4 = inlined_call_operand.hbm [shape: bf16[128,128], index: 4, kind: input, shape index: {}]
  %s5 = inlined_call_operand.vmem [shape: f32[1,128], index: 5, kind: input, shape index: {}]
  %s6 = inlined_call_operand.vmem [shape: f32[1,128], index: 6, kind: input, shape index: {}]
  %s7 = inlined_call_operand.hbm [shape: f32[896,128], index: 7, kind: input, shape index: {}]
  %s8 = inlined_call_operand.vmem [shape: f32[1,128], index: 8, kind: input, shape index: {}]
  %s9 = inlined_call_operand.hbm [shape: bf16[128,128], index: 9, kind: input, shape index: {}]
  %s10 = inlined_call_operand.hbm [shape: bf16[128,128], index: 10, kind: input, shape index: {}]
  %s11 = inlined_call_operand.vmem [shape: f32[1,128], index: 11, kind: input, shape index: {}]
  %s12 = inlined_call_operand.vmem [shape: f32[1,128], index: 12, kind: input, shape index: {}]
  %s13 = inlined_call_operand.hbm [shape: f32[16,128], index: 13, kind: output, shape index: {}]
  %s14 = sld [smem:[#allocation0]]
  $region109: #{tpu_custom_call.1} parent=0
    _
  %s16 = ssub.s32 1, %s14
  %s17 = scalar_select 0, %s16, %s14
  $region1: #{tpu_custom_call.1} parent=0
    #allocation2 [shape = 'u8[589824]{0}', space=vmem, size = 0x90000, scoped, tag = 'input window, operand 2, single buffered']
    #allocation3 [shape = 's32[2]{0}', space=sflag, size = 0x8, scoped, tag = 'scoped memory for tpu_custom_call.1']
    #allocation4 [shape = 's32[2]{0}', space=sflag, size = 0x8, scoped, tag = 'scoped memory for tpu_custom_call.1']
    #allocation5 [shape = 'u8[32768]{0}', space=vmem, size = 0x8000, scoped, tag = 'input window, operand 3, single buffered']
    #allocation6 [shape = 's32[1]{0}', space=sflag, size = 0x4, scoped, tag = 'scoped memory for tpu_custom_call.1']
    #allocation7 [shape = 'u8[32768]{0}', space=vmem, size = 0x8000, scoped, tag = 'input window, operand 4, single buffered']
    #allocation8 [shape = 'u8[458752]{0}', space=vmem, size = 0x70000, scoped, tag = 'input window, operand 7, single buffered']
    #allocation9 [shape = 's32[1]{0}', space=sflag, size = 0x4, scoped, tag = 'scoped memory for tpu_custom_call.1']
    #allocation10 [shape = 'u8[32768]{0}', space=vmem, size = 0x8000, scoped, tag = 'input window, operand 9, single buffered']
    #allocation11 [shape = 'u8[32768]{0}', space=vmem, size = 0x8000, scoped, tag = 'input window, operand 10, single buffered']
    #allocation12 [shape = 's32[1]{0}', space=sflag, size = 0x4, scoped, tag = 'scoped memory for tpu_custom_call.1']
    #allocation13 [shape = 'u8[8192]{0}', space=vmem, size = 0x2000, scoped, tag = 'output window, operand 0']
    %18 = vsyncpa [#allocation3], 0
    %19 = vsyncpa [#allocation6], 0
    %20 = vsyncpa [#allocation9], 0
    %21 = vsyncpa [#allocation12], 0
    %22 = vsyncpa [#allocation4], 0
    %s23 = scalar_lea.sflag [#allocation4], 1
    %24 = vsyncpa %s23, 0
    loop: start=0, step=1, limit=4
    $region2: #{tpu_custom_call.1} parent=1 // loop_pre_header
      _
    $region3: #{tpu_custom_call.1} parent=1 // loop_header
      %s26 = sphi 0, %s30
      %p27 = scmp.ge.s32.totalorder %s26, 4
      %s36 = sphi 0, %s38
      %s39 = sphi 0, %s36
      %s40 = sphi 0, %s39
      %s56 = sphi 0, %s40
      %s62 = sphi 0, %s64
      %s65 = sphi 0, %s62
      %s66 = sphi 0, %s65
      %s82 = sphi 0, %s66
      %s86 = sphi 0, %s86
      %s88 = sphi 0, %s86
      %s89 = sphi 0, %s88
      %s103 = sphi 0, %s89
      %s107 = sphi 0, %s107
      %s109 = sphi 0, %s107
      %s110 = sphi 0, %s109
      %s124 = sphi 0, %s110
      %s128 = sphi 0, %s128
      %s130 = sphi 0, %s128
      %s131 = sphi 0, %s130
      %s145 = sphi 0, %s131
      %s149 = sphi 0, %s149
      %s151 = sphi 0, %s149
      %s152 = sphi 0, %s151
      %s166 = sphi 0, %s152
      %s170 = sphi 0, %s170
      %s172 = sphi 0, %s170
      %s173 = sphi 0, %s172
      %s187 = sphi 0, %s173
      %s191 = sphi 0, %s191
      %s193 = sphi 0, %s191
      %s194 = sphi 0, %s193
      %s208 = sphi 0, %s194
      %s212 = sphi 0, %s212
      %s214 = sphi 0, %s212
      %s215 = sphi 0, %s214
      %s229 = sphi 0, %s215
      %s233 = sphi 0, %s233
      %s235 = sphi 0, %s233
      %s236 = sphi 0, %s235
      %s250 = sphi 0, %s236
      %s254 = sphi 0, %s254
      %s256 = sphi 0, %s254
      %s257 = sphi 0, %s256
      %s271 = sphi 0, %s257
      %s275 = sphi 0, %s275
      %s277 = sphi 0, %s275
      %s278 = sphi 0, %s277
      %s292 = sphi 0, %s278
      %s296 = sphi 0, %s296
      %s298 = sphi 0, %s296
      %s299 = sphi 0, %s298
      %s313 = sphi 0, %s299
      %s319 = sphi 0, %s321
      %s322 = sphi 0, %s319
      %s323 = sphi 0, %s322
      %s339 = sphi 0, %s323
    $region4: #{tpu_custom_call.1} parent=1 // loop_header_branch
      %29 = sbr.rel (%p27) target = $region8
    $region5: #{tpu_custom_call.1} parent=1 // loop_body
      %s31 = ssub.s32 %s26, 1
      %s32 = ssub.s32 %s26, 2
      %s33 = sadd.s32 %s26, 1
      %s34 = ssub.s32 %s26, %s33
      %p35 = scmp.eq.s32.totalorder %s34, 0
      %s37 = sadd.s32 %s36, 1
      %s38 = scalar_select %p35, %s36, %s37
      %p41 = pneg %p35
      %p42 = scmp.eq.s32.totalorder %s26, 1
      %p43 = por %p41, %p42
      %p44 = scmp.ne.s32.totalorder %s36, %s39
      %p45 = scmp.eq.s32.totalorder %s26, 0
      %p46 = por %p44, %p45
      %p47 = scmp.ne.s32.totalorder %s36, %s39
      %p48 = scmp.eq.s32.totalorder %s31, 1
      %p49 = por %p47, %p48
      %p50 = scmp.ne.s32.totalorder %s39, %s40
      %p51 = scmp.eq.s32.totalorder %s31, 0
      %p52 = por %p50, %p51
      %p53 = scmp.ne.s32.totalorder %s39, %s40
      %p54 = scmp.eq.s32.totalorder %s32, 1
      %p55 = por %p53, %p54
      %p57 = scmp.ne.s32.totalorder %s40, %s56
      %p58 = scmp.eq.s32.totalorder %s32, 0
      %p59 = por %p57, %p58
      %s60 = ssub.s32 %s26, %s33
      %p61 = scmp.eq.s32.totalorder %s60, 0
      %s63 = sadd.s32 %s62, 1
      %s64 = scalar_select %p61, %s62, %s63
      %p67 = pneg %p61
      %p68 = scmp.eq.s32.totalorder %s26, 1
      %p69 = por %p67, %p68
      %p70 = scmp.ne.s32.totalorder %s62, %s65
      %p71 = scmp.eq.s32.totalorder %s26, 0
      %p72 = por %p70, %p71
      %p73 = scmp.ne.s32.totalorder %s62, %s65
      %p74 = scmp.eq.s32.totalorder %s31, 1
      %p75 = por %p73, %p74
      %p76 = scmp.ne.s32.totalorder %s65, %s66
      %p77 = scmp.eq.s32.totalorder %s31, 0
      %p78 = por %p76, %p77
      %p79 = scmp.ne.s32.totalorder %s65, %s66
      %p80 = scmp.eq.s32.totalorder %s32, 1
      %p81 = por %p79, %p80
      %p83 = scmp.ne.s32.totalorder %s66, %s82
      %p84 = scmp.eq.s32.totalorder %s32, 0
      %p85 = por %p83, %p84
      %s87 = sadd.s32 %s86, 1
      %p90 = scmp.eq.s32.totalorder %s26, 1
      %p91 = scmp.ne.s32.totalorder %s86, %s88
      %p92 = scmp.eq.s32.totalorder %s26, 0
      %p93 = por %p91, %p92
      %p94 = scmp.ne.s32.totalorder %s86, %s88
      %p95 = scmp.eq.s32.totalorder %s31, 1
      %p96 = por %p94, %p95
      %p97 = scmp.ne.s32.totalorder %s88, %s89
      %p98 = scmp.eq.s32.totalorder %s31, 0
      %p99 = por %p97, %p98
      %p100 = scmp.ne.s32.totalorder %s88, %s89
      %p101 = scmp.eq.s32.totalorder %s32, 1
      %p102 = por %p100, %p101
      %p104 = scmp.ne.s32.totalorder %s89, %s103
      %p105 = scmp.eq.s32.totalorder %s32, 0
      %p106 = por %p104, %p105
      %s108 = sadd.s32 %s107, 1
      %p111 = scmp.eq.s32.totalorder %s26, 1
      %p112 = scmp.ne.s32.totalorder %s107, %s109
      %p113 = scmp.eq.s32.totalorder %s26, 0
      %p114 = por %p112, %p113
      %p115 = scmp.ne.s32.totalorder %s107, %s109
      %p116 = scmp.eq.s32.totalorder %s31, 1
      %p117 = por %p115, %p116
      %p118 = scmp.ne.s32.totalorder %s109, %s110
      %p119 = scmp.eq.s32.totalorder %s31, 0
      %p120 = por %p118, %p119
      %p121 = scmp.ne.s32.totalorder %s109, %s110
      %p122 = scmp.eq.s32.totalorder %s32, 1
      %p123 = por %p121, %p122
      %p125 = scmp.ne.s32.totalorder %s110, %s124
      %p126 = scmp.eq.s32.totalorder %s32, 0
      %p127 = por %p125, %p126
      %s129 = sadd.s32 %s128, 1
      %p132 = scmp.eq.s32.totalorder %s26, 1
      %p133 = scmp.ne.s32.totalorder %s128, %s130
      %p134 = scmp.eq.s32.totalorder %s26, 0
      %p135 = por %p133, %p134
      %p136 = scmp.ne.s32.totalorder %s128, %s130
      %p137 = scmp.eq.s32.totalorder %s31, 1
      %p138 = por %p136, %p137
      %p139 = scmp.ne.s32.totalorder %s130, %s131
      %p140 = scmp.eq.s32.totalorder %s31, 0
      %p141 = por %p139, %p140
      %p142 = scmp.ne.s32.totalorder %s130, %s131
      %p143 = scmp.eq.s32.totalorder %s32, 1
      %p144 = por %p142, %p143
      %p146 = scmp.ne.s32.totalorder %s131, %s145
      %p147 = scmp.eq.s32.totalorder %s32, 0
      %p148 = por %p146, %p147
      %s150 = sadd.s32 %s149, 1
      %p153 = scmp.eq.s32.totalorder %s26, 1
      %p154 = scmp.ne.s32.totalorder %s149, %s151
      %p155 = scmp.eq.s32.totalorder %s26, 0
      %p156 = por %p154, %p155
      %p157 = scmp.ne.s32.totalorder %s149, %s151
      %p158 = scmp.eq.s32.totalorder %s31, 1
      %p159 = por %p157, %p158
      %p160 = scmp.ne.s32.totalorder %s151, %s152
      %p161 = scmp.eq.s32.totalorder %s31, 0
      %p162 = por %p160, %p161
      %p163 = scmp.ne.s32.totalorder %s151, %s152
      %p164 = scmp.eq.s32.totalorder %s32, 1
      %p165 = por %p163, %p164
      %p167 = scmp.ne.s32.totalorder %s152, %s166
      %p168 = scmp.eq.s32.totalorder %s32, 0
      %p169 = por %p167, %p168
      %s171 = sadd.s32 %s170, 1
      %p174 = scmp.eq.s32.totalorder %s26, 1
      %p175 = scmp.ne.s32.totalorder %s170, %s172
      %p176 = scmp.eq.s32.totalorder %s26, 0
      %p177 = por %p175, %p176
      %p178 = scmp.ne.s32.totalorder %s170, %s172
      %p179 = scmp.eq.s32.totalorder %s31, 1
      %p180 = por %p178, %p179
      %p181 = scmp.ne.s32.totalorder %s172, %s173
      %p182 = scmp.eq.s32.totalorder %s31, 0
      %p183 = por %p181, %p182
      %p184 = scmp.ne.s32.totalorder %s172, %s173
      %p185 = scmp.eq.s32.totalorder %s32, 1
      %p186 = por %p184, %p185
      %p188 = scmp.ne.s32.totalorder %s173, %s187
      %p189 = scmp.eq.s32.totalorder %s32, 0
      %p190 = por %p188, %p189
      %s192 = sadd.s32 %s191, 1
      %p195 = scmp.eq.s32.totalorder %s26, 1
      %p196 = scmp.ne.s32.totalorder %s191, %s193
      %p197 = scmp.eq.s32.totalorder %s26, 0
      %p198 = por %p196, %p197
      %p199 = scmp.ne.s32.totalorder %s191, %s193
      %p200 = scmp.eq.s32.totalorder %s31, 1
      %p201 = por %p199, %p200
      %p202 = scmp.ne.s32.totalorder %s193, %s194
      %p203 = scmp.eq.s32.totalorder %s31, 0
      %p204 = por %p202, %p203
      %p205 = scmp.ne.s32.totalorder %s193, %s194
      %p206 = scmp.eq.s32.totalorder %s32, 1
      %p207 = por %p205, %p206
      %p209 = scmp.ne.s32.totalorder %s194, %s208
      %p210 = scmp.eq.s32.totalorder %s32, 0
      %p211 = por %p209, %p210
      %s213 = sadd.s32 %s212, 1
      %p216 = scmp.eq.s32.totalorder %s26, 1
      %p217 = scmp.ne.s32.totalorder %s212, %s214
      %p218 = scmp.eq.s32.totalorder %s26, 0
      %p219 = por %p217, %p218
      %p220 = scmp.ne.s32.totalorder %s212, %s214
      %p221 = scmp.eq.s32.totalorder %s31, 1
      %p222 = por %p220, %p221
      %p223 = scmp.ne.s32.totalorder %s214, %s215
      %p224 = scmp.eq.s32.totalorder %s31, 0
      %p225 = por %p223, %p224
      %p226 = scmp.ne.s32.totalorder %s214, %s215
      %p227 = scmp.eq.s32.totalorder %s32, 1
      %p228 = por %p226, %p227
      %p230 = scmp.ne.s32.totalorder %s215, %s229
      %p231 = scmp.eq.s32.totalorder %s32, 0
      %p232 = por %p230, %p231
      %s234 = sadd.s32 %s233, 1
      %p237 = scmp.eq.s32.totalorder %s26, 1
      %p238 = scmp.ne.s32.totalorder %s233, %s235
      %p239 = scmp.eq.s32.totalorder %s26, 0
      %p240 = por %p238, %p239
      %p241 = scmp.ne.s32.totalorder %s233, %s235
      %p242 = scmp.eq.s32.totalorder %s31, 1
      %p243 = por %p241, %p242
      %p244 = scmp.ne.s32.totalorder %s235, %s236
      %p245 = scmp.eq.s32.totalorder %s31, 0
      %p246 = por %p244, %p245
      %p247 = scmp.ne.s32.totalorder %s235, %s236
      %p248 = scmp.eq.s32.totalorder %s32, 1
      %p249 = por %p247, %p248
      %p251 = scmp.ne.s32.totalorder %s236, %s250
      %p252 = scmp.eq.s32.totalorder %s32, 0
      %p253 = por %p251, %p252
      %s255 = sadd.s32 %s254, 1
      %p258 = scmp.eq.s32.totalorder %s26, 1
      %p259 = scmp.ne.s32.totalorder %s254, %s256
      %p260 = scmp.eq.s32.totalorder %s26, 0
      %p261 = por %p259, %p260
      %p262 = scmp.ne.s32.totalorder %s254, %s256
      %p263 = scmp.eq.s32.totalorder %s31, 1
      %p264 = por %p262, %p263
      %p265 = scmp.ne.s32.totalorder %s256, %s257
      %p266 = scmp.eq.s32.totalorder %s31, 0
      %p267 = por %p265, %p266
      %p268 = scmp.ne.s32.totalorder %s256, %s257
      %p269 = scmp.eq.s32.totalorder %s32, 1
      %p270 = por %p268, %p269
      %p272 = scmp.ne.s32.totalorder %s257, %s271
      %p273 = scmp.eq.s32.totalorder %s32, 0
      %p274 = por %p272, %p273
      %s276 = sadd.s32 %s275, 1
      %p279 = scmp.eq.s32.totalorder %s26, 1
      %p280 = scmp.ne.s32.totalorder %s275, %s277
      %p281 = scmp.eq.s32.totalorder %s26, 0
      %p282 = por %p280, %p281
      %p283 = scmp.ne.s32.totalorder %s275, %s277
      %p284 = scmp.eq.s32.totalorder %s31, 1
      %p285 = por %p283, %p284
      %p286 = scmp.ne.s32.totalorder %s277, %s278
      %p287 = scmp.eq.s32.totalorder %s31, 0
      %p288 = por %p286, %p287
      %p289 = scmp.ne.s32.totalorder %s277, %s278
      %p290 = scmp.eq.s32.totalorder %s32, 1
      %p291 = por %p289, %p290
      %p293 = scmp.ne.s32.totalorder %s278, %s292
      %p294 = scmp.eq.s32.totalorder %s32, 0
      %p295 = por %p293, %p294
      %s297 = sadd.s32 %s296, 1
      %p300 = scmp.eq.s32.totalorder %s26, 1
      %p301 = scmp.ne.s32.totalorder %s296, %s298
      %p302 = scmp.eq.s32.totalorder %s26, 0
      %p303 = por %p301, %p302
      %p304 = scmp.ne.s32.totalorder %s296, %s298
      %p305 = scmp.eq.s32.totalorder %s31, 1
      %p306 = por %p304, %p305
      %p307 = scmp.ne.s32.totalorder %s298, %s299
      %p308 = scmp.eq.s32.totalorder %s31, 0
      %p309 = por %p307, %p308
      %p310 = scmp.ne.s32.totalorder %s298, %s299
      %p311 = scmp.eq.s32.totalorder %s32, 1
      %p312 = por %p310, %p311
      %p314 = scmp.ne.s32.totalorder %s299, %s313
      %p315 = scmp.eq.s32.totalorder %s32, 0
      %p316 = por %p314, %p315
      %s317 = ssub.s32 %s26, %s33
      %p318 = scmp.eq.s32.totalorder %s317, 0
      %s320 = sadd.s32 %s319, 1
      %s321 = scalar_select %p318, %s319, %s320
      %p324 = pneg %p318
      %p325 = scmp.eq.s32.totalorder %s26, 1
      %p326 = por %p324, %p325
      %p327 = scmp.ne.s32.totalorder %s319, %s322
      %p328 = scmp.eq.s32.totalorder %s26, 0
      %p329 = por %p327, %p328
      %p330 = scmp.ne.s32.totalorder %s319, %s322
      %p331 = scmp.eq.s32.totalorder %s31, 1
      %p332 = por %p330, %p331
      %p333 = scmp.ne.s32.totalorder %s322, %s323
      %p334 = scmp.eq.s32.totalorder %s31, 0
      %p335 = por %p333, %p334
      %p336 = scmp.ne.s32.totalorder %s322, %s323
      %p337 = scmp.eq.s32.totalorder %s32, 1
      %p338 = por %p336, %p337
      %p340 = scmp.ne.s32.totalorder %s323, %s339
      %p341 = scmp.eq.s32.totalorder %s32, 0
      %p342 = por %p340, %p341
      %p343 = scmp.le.s32.totalorder 1, %s26
      %p344 = scmp.lt.s32.totalorder %s26, 3
      %p345 = pnand %p343, %p344
      %p346 = pneg %p345
      // Predicated region
      $region9: #{tpu_custom_call.1} parent=5 // pred_check
        _
      $region10: #{tpu_custom_call.1} parent=5 // pred_check_branch
        %348 = sbr.rel (%p345) target = $region12
      $region11: #{tpu_custom_call.1} parent=5 // pred_region
        %s349 = ssub.s32 %s26, 1
        // Predicated region
        $region13: #{tpu_custom_call.1} parent=11 // pred_check
          %p350 = pneg %p99
        $region14: #{tpu_custom_call.1} parent=11 // pred_check_branch
          %352 = sbr.rel (%p350) target = $region16
        $region15: #{tpu_custom_call.1} parent=11 // pred_region
          %s354 = ssub.s32 18432, 18432
          %355 = vsyncadd [#allocation3], %s354
          %s356 = sshll.u32 [#allocation2], 4
          %s357 = int_to_ptr.vmem [resolvable:$true] %s356
          %362 = dma.hbm_to_vmem [thread:$0]  %s2, 18432, %s357, [#allocation3], 384, 384, 24
        $region16: #{tpu_custom_call.1} parent=11 // pred_fallthru
          _
        // Predicated region
        $region17: #{tpu_custom_call.1} parent=11 // pred_check
          %p363 = pneg %p120
        $region18: #{tpu_custom_call.1} parent=11 // pred_check_branch
          %365 = sbr.rel (%p363) target = $region20
        $region19: #{tpu_custom_call.1} parent=11 // pred_region
          %s367 = ssub.s32 1024, 1024
          %368 = vsyncadd [#allocation6], %s367
          %s369 = sshll.u32 [#allocation5], 4
          %s370 = int_to_ptr.vmem [resolvable:$true] %s369
          %375 = dma.hbm_to_vmem [thread:$0]  %s3, 1024, %s370, [#allocation6], 64, 64, 4
        $region20: #{tpu_custom_call.1} parent=11 // pred_fallthru
          _
        // Predicated region
        $region21: #{tpu_custom_call.1} parent=11 // pred_check
          %p376 = pneg %p141
        $region22: #{tpu_custom_call.1} parent=11 // pred_check_branch
          %378 = sbr.rel (%p376) target = $region24
        $region23: #{tpu_custom_call.1} parent=11 // pred_region
          %s380 = ssub.s32 1024, 1024
          %381 = vsyncadd [#allocation6], %s380
          %s382 = sshll.u32 [#allocation7], 4
          %s383 = int_to_ptr.vmem [resolvable:$true] %s382
          %388 = dma.hbm_to_vmem [thread:$0]  %s4, 1024, %s383, [#allocation6], 64, 64, 4
        $region24: #{tpu_custom_call.1} parent=11 // pred_fallthru
          _
        // Predicated region
        $region25: #{tpu_custom_call.1} parent=11 // pred_check
          %p389 = pneg %p162
        $region26: #{tpu_custom_call.1} parent=11 // pred_check_branch
          %391 = sbr.rel (%p389) target = $region28
        $region27: #{tpu_custom_call.1} parent=11 // pred_region
          _
        $region28: #{tpu_custom_call.1} parent=11 // pred_fallthru
          _
        // Predicated region
        $region29: #{tpu_custom_call.1} parent=11 // pred_check
          %p392 = pneg %p183
        $region30: #{tpu_custom_call.1} parent=11 // pred_check_branch
          %394 = sbr.rel (%p392) target = $region32
        $region31: #{tpu_custom_call.1} parent=11 // pred_region
          _
        $region32: #{tpu_custom_call.1} parent=11 // pred_fallthru
          _
        // Predicated region
        $region33: #{tpu_custom_call.1} parent=11 // pred_check
          %p395 = pneg %p204
        $region34: #{tpu_custom_call.1} parent=11 // pred_check_branch
          %397 = sbr.rel (%p395) target = $region36
        $region35: #{tpu_custom_call.1} parent=11 // pred_region
          %s399 = ssub.s32 14336, 14336
          %400 = vsyncadd [#allocation9], %s399
          %s401 = sshll.u32 [#allocation8], 4
          %s402 = int_to_ptr.vmem [resolvable:$true] %s401
          %407 = dma.hbm_to_vmem [thread:$0]  %s7, 14336, %s402, [#allocation9], 128, 128, 8
        $region36: #{tpu_custom_call.1} parent=11 // pred_fallthru
          _
        // Predicated region
        $region37: #{tpu_custom_call.1} parent=11 // pred_check
          %p408 = pneg %p225
        $region38: #{tpu_custom_call.1} parent=11 // pred_check_branch
          %410 = sbr.rel (%p408) target = $region40
        $region39: #{tpu_custom_call.1} parent=11 // pred_region
          _
        $region40: #{tpu_custom_call.1} parent=11 // pred_fallthru
          _
        // Predicated region
        $region41: #{tpu_custom_call.1} parent=11 // pred_check
          %p411 = pneg %p246
        $region42: #{tpu_custom_call.1} parent=11 // pred_check_branch
          %413 = sbr.rel (%p411) target = $region44
        $region43: #{tpu_custom_call.1} parent=11 // pred_region
          %s415 = ssub.s32 1024, 1024
          %416 = vsyncadd [#allocation9], %s415
          %s417 = sshll.u32 [#allocation10], 4
          %s418 = int_to_ptr.vmem [resolvable:$true] %s417
          %423 = dma.hbm_to_vmem [thread:$0]  %s9, 1024, %s418, [#allocation9], 64, 64, 4
        $region44: #{tpu_custom_call.1} parent=11 // pred_fallthru
          _
        // Predicated region
        $region45: #{tpu_custom_call.1} parent=11 // pred_check
          %p424 = pneg %p267
        $region46: #{tpu_custom_call.1} parent=11 // pred_check_branch
          %426 = sbr.rel (%p424) target = $region48
        $region47: #{tpu_custom_call.1} parent=11 // pred_region
          %s428 = ssub.s32 1024, 1024
          %429 = vsyncadd [#allocation12], %s428
          %s430 = sshll.u32 [#allocation11], 4
          %s431 = int_to_ptr.vmem [resolvable:$true] %s430
          %436 = dma.hbm_to_vmem [thread:$0]  %s10, 1024, %s431, [#allocation12], 64, 64, 4
        $region48: #{tpu_custom_call.1} parent=11 // pred_fallthru
          _
        // Predicated region
        $region49: #{tpu_custom_call.1} parent=11 // pred_check
          %p437 = pneg %p288
        $region50: #{tpu_custom_call.1} parent=11 // pred_check_branch
          %439 = sbr.rel (%p437) target = $region52
        $region51: #{tpu_custom_call.1} parent=11 // pred_region
          _
        $region52: #{tpu_custom_call.1} parent=11 // pred_fallthru
          _
        // Predicated region
        $region53: #{tpu_custom_call.1} parent=11 // pred_check
          %p440 = pneg %p309
        $region54: #{tpu_custom_call.1} parent=11 // pred_check_branch
          %442 = sbr.rel (%p440) target = $region56
        $region55: #{tpu_custom_call.1} parent=11 // pred_region
          _
        $region56: #{tpu_custom_call.1} parent=11 // pred_fallthru
          _
      $region12: #{tpu_custom_call.1} parent=5 // pred_fallthru
        _
      %p443 = scmp.lt.s32.totalorder %s26, 2
      // Predicated region
      $region57: #{tpu_custom_call.1} parent=5 // pred_check
        %p444 = pneg %p443
      $region58: #{tpu_custom_call.1} parent=5 // pred_check_branch
        %446 = sbr.rel (%p444) target = $region60
      $region59: #{tpu_custom_call.1} parent=5 // pred_region
        // Predicated region
        $region61: #{tpu_custom_call.1} parent=59 // pred_check
          %p447 = pneg %p46
        $region62: #{tpu_custom_call.1} parent=59 // pred_check_branch
          %449 = sbr.rel (%p447) target = $region64
        $region63: #{tpu_custom_call.1} parent=59 // pred_region
          %p450 = scmp.lt.s32.totalorder %s26, 1
          %s451 = scalar_select %p450, %s26, 1
          %s452 = smul.addr %s451, 8
          %s453 = scalar_lea.vmem %s0, %s452
        $region64: #{tpu_custom_call.1} parent=59 // pred_fallthru
          _
        // Predicated region
        $region65: #{tpu_custom_call.1} parent=59 // pred_check
          %p454 = pneg %p72
        $region66: #{tpu_custom_call.1} parent=59 // pred_check_branch
          %456 = sbr.rel (%p454) target = $region68
        $region67: #{tpu_custom_call.1} parent=59 // pred_region
          %p457 = scmp.lt.s32.totalorder %s26, 1
          %s458 = scalar_select %p457, %s26, 1
          %s459 = smul.addr %s458, 8
          %s460 = scalar_lea.vmem %s1, %s459
        $region68: #{tpu_custom_call.1} parent=59 // pred_fallthru
          _
      $region60: #{tpu_custom_call.1} parent=5 // pred_fallthru
        _
      %p461 = scmp.le.s32.totalorder 1, %s26
      %p462 = scmp.lt.s32.totalorder %s26, 3
      %p463 = pnand %p461, %p462
      %p464 = pneg %p463
      // Predicated region
      $region69: #{tpu_custom_call.1} parent=5 // pred_check
        _
      $region70: #{tpu_custom_call.1} parent=5 // pred_check_branch
        %466 = sbr.rel (%p463) target = $region72
      $region71: #{tpu_custom_call.1} parent=5 // pred_region
        %s467 = ssub.s32 %s26, 1
        // Predicated region
        $region73: #{tpu_custom_call.1} parent=71 // pred_check
          %p468 = pneg %p99
        $region74: #{tpu_custom_call.1} parent=71 // pred_check_branch
          %470 = sbr.rel (%p468) target = $region76
        $region75: #{tpu_custom_call.1} parent=71 // pred_region
          %471 = dma.done [#allocation3], 18432
        $region76: #{tpu_custom_call.1} parent=71 // pred_fallthru
          _
        // Predicated region
        $region77: #{tpu_custom_call.1} parent=71 // pred_check
          %p472 = pneg %p120
        $region78: #{tpu_custom_call.1} parent=71 // pred_check_branch
          %474 = sbr.rel (%p472) target = $region80
        $region79: #{tpu_custom_call.1} parent=71 // pred_region
          %475 = dma.done [#allocation6], 1024
        $region80: #{tpu_custom_call.1} parent=71 // pred_fallthru
          _
        // Predicated region
        $region81: #{tpu_custom_call.1} parent=71 // pred_check
          %p476 = pneg %p141
        $region82: #{tpu_custom_call.1} parent=71 // pred_check_branch
          %478 = sbr.rel (%p476) target = $region84
        $region83: #{tpu_custom_call.1} parent=71 // pred_region
          %479 = dma.done [#allocation6], 1024
        $region84: #{tpu_custom_call.1} parent=71 // pred_fallthru
          _
        // Predicated region
        $region85: #{tpu_custom_call.1} parent=71 // pred_check
          %p480 = pneg %p204
        $region86: #{tpu_custom_call.1} parent=71 // pred_check_branch
          %482 = sbr.rel (%p480) target = $region88
        $region87: #{tpu_custom_call.1} parent=71 // pred_region
          %483 = dma.done [#allocation9], 14336
        $region88: #{tpu_custom_call.1} parent=71 // pred_fallthru
          _
        // Predicated region
        $region89: #{tpu_custom_call.1} parent=71 // pred_check
          %p484 = pneg %p246
        $region90: #{tpu_custom_call.1} parent=71 // pred_check_branch
          %486 = sbr.rel (%p484) target = $region92
        $region91: #{tpu_custom_call.1} parent=71 // pred_region
          %487 = dma.done [#allocation9], 1024
        $region92: #{tpu_custom_call.1} parent=71 // pred_fallthru
          _
        // Predicated region
        $region93: #{tpu_custom_call.1} parent=71 // pred_check
          %p488 = pneg %p267
        $region94: #{tpu_custom_call.1} parent=71 // pred_check_branch
          %490 = sbr.rel (%p488) target = $region96
        $region95: #{tpu_custom_call.1} parent=71 // pred_region
          %491 = dma.done [#allocation12], 1024
        $region96: #{tpu_custom_call.1} parent=71 // pred_fallthru
          _
        %p492 = scmp.lt.s32.totalorder %s31, 1
        %s493 = scalar_select %p492, %s31, 1
        %s494 = smul.addr %s493, 8
        %s495 = scalar_lea.vmem %s0, %s494
        %p496 = pneg %p52
        %p497 = pneg %p49
        %p498 = scmp.lt.s32.totalorder %s31, 1
        %s499 = scalar_select %p498, %s31, 1
        %s500 = smul.addr %s499, 8
        %s501 = scalar_lea.vmem %s1, %s500
        %p502 = pneg %p78
        %p503 = pneg %p75
        %p504 = pneg %p99
        %p505 = pneg %p96
        %p506 = pneg %p120
        %p507 = pneg %p117
        %p508 = pneg %p141
        %p509 = pneg %p138
        %p510 = pneg %p162
        %p511 = pneg %p159
        %p512 = pneg %p183
        %p513 = pneg %p180
        %p514 = pneg %p204
        %p515 = pneg %p201
        %p516 = pneg %p225
        %p517 = pneg %p222
        %p518 = pneg %p246
        %p519 = pneg %p243
        %p520 = pneg %p267
        %p521 = pneg %p264
        %p522 = pneg %p288
        %p523 = pneg %p285
        %p524 = pneg %p309
        %p525 = pneg %p306
        %p526 = pneg %p335
        %p527 = pneg %p332
        %s528 = sand.u32 %s322, 1
        %s529 = scalar_lea.sflag [#allocation4], %s528
        %s530 = sand.u32 %s322, 1
        %s531 = smul.addr %s530, 8
        %s532 = scalar_lea.vmem [#allocation13], %s531
        %p533 = scmp.lt.s32.totalorder %s31, 1
        %s534 = scalar_select %p533, %s31, 1
        %s535 = smul.addr %s534, 8
        %s536 = scalar_lea.vmem %s0, %s535
        %p537 = scmp.lt.s32.totalorder %s31, 1
        %s538 = scalar_select %p537, %s31, 1
        %s539 = smul.addr %s538, 8
        %s540 = scalar_lea.vmem %s1, %s539
        %v542 = vld [vmem:[%s536] sm:$0xff]
        %v543 = vpack.c.bf16 %v542, %v542
        %v544 = vld [vmem:[#allocation5] sm:$0xf]
        %v545 = vld [vmem:[#allocation5 + $0x4] sm:$0xf]
        %v546 = vld [vmem:[#allocation5 + $0x8] sm:$0xf]
        %v547 = vld [vmem:[#allocation5 + $0xc] sm:$0xf]
        %v548 = vld [vmem:[#allocation5 + $0x10] sm:$0xf]
        %v549 = vld [vmem:[#allocation5 + $0x14] sm:$0xf]
        %v550 = vld [vmem:[#allocation5 + $0x18] sm:$0xf]
        %v551 = vld [vmem:[#allocation5 + $0x1c] sm:$0xf]
        %v552 = vld [vmem:[#allocation5 + $0x20] sm:$0xf]
        %v553 = vld [vmem:[#allocation5 + $0x24] sm:$0xf]
        %v554 = vld [vmem:[#allocation5 + $0x28] sm:$0xf]
        %v555 = vld [vmem:[#allocation5 + $0x2c] sm:$0xf]
        %v556 = vld [vmem:[#allocation5 + $0x30] sm:$0xf]
        %v557 = vld [vmem:[#allocation5 + $0x34] sm:$0xf]
        %v558 = vld [vmem:[#allocation5 + $0x38] sm:$0xf]
        %v559 = vld [vmem:[#allocation5 + $0x3c] sm:$0xf]
        %v560 = vld [vmem:[%s5] sm:$0x1]
        %v562 = vlaneseq
        %v563 = vshrl.u32 %v562, 7
        %v564 = vsub.s32 0, %v563
        %v565 = vrot.slane %v560, %v564
        %v583 = vunpack.c.l.b16 %v544
        %v584 = vunpack.c.l.b16 %v545
        %v585 = vunpack.c.l.b16 %v546
        %v586 = vunpack.c.l.b16 %v547
        %v587 = vunpack.c.l.b16 %v548
        %v588 = vunpack.c.l.b16 %v549
        %v589 = vunpack.c.l.b16 %v550
        %v590 = vunpack.c.l.b16 %v551
        %v591 = vunpack.c.l.b16 %v552
        %v592 = vunpack.c.l.b16 %v553
        %v593 = vunpack.c.l.b16 %v554
        %v594 = vunpack.c.l.b16 %v555
        %v595 = vunpack.c.l.b16 %v556
        %v596 = vunpack.c.l.b16 %v557
        %v597 = vunpack.c.l.b16 %v558
        %v598 = vunpack.c.l.b16 %v559
        %v599 = vpack.c.b16 %v584, %v583
        %v600 = vpack.c.b16 %v586, %v585
        %v601 = vpack.c.b16 %v588, %v587
        %v602 = vpack.c.b16 %v590, %v589
        %v603 = vpack.c.b16 %v592, %v591
        %v604 = vpack.c.b16 %v594, %v593
        %v605 = vpack.c.b16 %v596, %v595
        %v606 = vpack.c.b16 %v598, %v597
        %615 = vmatprep.subr.bf16.mxu0 0
        %616 = vmatpush1.bf16.msra.mxu0 %v599
        %617 = vmatprep.subr.bf16.mxu0 0
        %618 = vmatpush1.bf16.msra.mxu0 %v600
        %619 = vmatprep.subr.bf16.mxu0 0
        %620 = vmatpush1.bf16.msra.mxu0 %v601
        %621 = vmatprep.subr.bf16.mxu0 0
        %622 = vmatpush1.bf16.msra.mxu0 %v602
        %623 = vmatprep.subr.bf16.mxu0 0
        %624 = vmatpush1.bf16.msra.mxu0 %v603
        %625 = vmatprep.subr.bf16.mxu0 0
        %626 = vmatpush1.bf16.msra.mxu0 %v604
        %627 = vmatprep.subr.bf16.mxu0 0
        %628 = vmatpush1.bf16.msra.mxu0 %v605
        %629 = vmatprep.subr.bf16.mxu0 0
        %630 = vmatpush1.bf16.msra.mxu0 %v606
        %631 = vmatprep.subr.bf16.mxu0 0
        %632 = vmatpush1.bf16.msra.mxu0 0
        %633 = vmatprep.subr.bf16.mxu0 0
        %634 = vmatpush1.bf16.msra.mxu0 0
        %635 = vmatprep.subr.bf16.mxu0 0
        %636 = vmatpush1.bf16.msra.mxu0 0
        %637 = vmatprep.subr.bf16.mxu0 0
        %638 = vmatpush1.bf16.msra.mxu0 0
        %639 = vmatprep.subr.bf16.mxu0 0
        %640 = vmatpush1.bf16.msra.mxu0 0
        %641 = vmatprep.subr.bf16.mxu0 0
        %642 = vmatpush1.bf16.msra.mxu0 0
        %643 = vmatprep.subr.bf16.mxu0 0
        %644 = vmatpush1.bf16.msra.mxu0 0
        %645 = vmatprep.subr.bf16.mxu0 0
        %646 = vmatpush1.bf16.msra.mxu0 0
        %647 = vmatprep.mubr.bf16.mxu0 0
        %648 = vmatmul.mubr.bf16.gmra.mrb[0].mxu0 %v543
        %v649 = vpop.f32.mrb[0].mxu0
        %v650 = vadd.f32 %v565, %v649
        %v651 = vpop.f32.mrb[0].mxu0
        %v652 = vpop.f32.mrb[0].mxu0
        %v653 = vpop.f32.mrb[0].mxu0
        %654 = vdwg.mxu0
        %v655 = vmax.f32 %v650, 0.0
        %v656 = vpack.c.bf16 %v655, %v655
        %v657 = vld [vmem:[#allocation7] sm:$0xf]
        %v658 = vld [vmem:[#allocation7 + $0x4] sm:$0xf]
        %v659 = vld [vmem:[#allocation7 + $0x8] sm:$0xf]
        %v660 = vld [vmem:[#allocation7 + $0xc] sm:$0xf]
        %v661 = vld [vmem:[#allocation7 + $0x10] sm:$0xf]
        %v662 = vld [vmem:[#allocation7 + $0x14] sm:$0xf]
        %v663 = vld [vmem:[#allocation7 + $0x18] sm:$0xf]
        %v664 = vld [vmem:[#allocation7 + $0x1c] sm:$0xf]
        %v665 = vld [vmem:[#allocation7 + $0x20] sm:$0xf]
        %v666 = vld [vmem:[#allocation7 + $0x24] sm:$0xf]
        %v667 = vld [vmem:[#allocation7 + $0x28] sm:$0xf]
        %v668 = vld [vmem:[#allocation7 + $0x2c] sm:$0xf]
        %v669 = vld [vmem:[#allocation7 + $0x30] sm:$0xf]
        %v670 = vld [vmem:[#allocation7 + $0x34] sm:$0xf]
        %v671 = vld [vmem:[#allocation7 + $0x38] sm:$0xf]
        %v672 = vld [vmem:[#allocation7 + $0x3c] sm:$0xf]
        %v673 = vld [vmem:[%s6] sm:$0x1]
        %v675 = vlaneseq
        %v676 = vshrl.u32 %v675, 7
        %v677 = vsub.s32 0, %v676
        %v678 = vrot.slane %v673, %v677
        %v696 = vunpack.c.l.b16 %v657
        %v697 = vunpack.c.l.b16 %v658
        %v698 = vunpack.c.l.b16 %v659
        %v699 = vunpack.c.l.b16 %v660
        %v700 = vunpack.c.l.b16 %v661
        %v701 = vunpack.c.l.b16 %v662
        %v702 = vunpack.c.l.b16 %v663
        %v703 = vunpack.c.l.b16 %v664
        %v704 = vunpack.c.l.b16 %v665
        %v705 = vunpack.c.l.b16 %v666
        %v706 = vunpack.c.l.b16 %v667
        %v707 = vunpack.c.l.b16 %v668
        %v708 = vunpack.c.l.b16 %v669
        %v709 = vunpack.c.l.b16 %v670
        %v710 = vunpack.c.l.b16 %v671
        %v711 = vunpack.c.l.b16 %v672
        %v712 = vpack.c.b16 %v697, %v696
        %v713 = vpack.c.b16 %v699, %v698
        %v714 = vpack.c.b16 %v701, %v700
        %v715 = vpack.c.b16 %v703, %v702
        %v716 = vpack.c.b16 %v705, %v704
        %v717 = vpack.c.b16 %v707, %v706
        %v718 = vpack.c.b16 %v709, %v708
        %v719 = vpack.c.b16 %v711, %v710
        %728 = vmatprep.subr.bf16.mxu0 0
        %729 = vmatpush1.bf16.msra.mxu0 %v712
        %730 = vmatprep.subr.bf16.mxu0 0
        %731 = vmatpush1.bf16.msra.mxu0 %v713
        %732 = vmatprep.subr.bf16.mxu0 0
        %733 = vmatpush1.bf16.msra.mxu0 %v714
        %734 = vmatprep.subr.bf16.mxu0 0
        %735 = vmatpush1.bf16.msra.mxu0 %v715
        %736 = vmatprep.subr.bf16.mxu0 0
        %737 = vmatpush1.bf16.msra.mxu0 %v716
        %738 = vmatprep.subr.bf16.mxu0 0
        %739 = vmatpush1.bf16.msra.mxu0 %v717
        %740 = vmatprep.subr.bf16.mxu0 0
        %741 = vmatpush1.bf16.msra.mxu0 %v718
        %742 = vmatprep.subr.bf16.mxu0 0
        %743 = vmatpush1.bf16.msra.mxu0 %v719
        %744 = vmatprep.subr.bf16.mxu0 0
        %745 = vmatpush1.bf16.msra.mxu0 0
        %746 = vmatprep.subr.bf16.mxu0 0
        %747 = vmatpush1.bf16.msra.mxu0 0
        %748 = vmatprep.subr.bf16.mxu0 0
        %749 = vmatpush1.bf16.msra.mxu0 0
        %750 = vmatprep.subr.bf16.mxu0 0
        %751 = vmatpush1.bf16.msra.mxu0 0
        %752 = vmatprep.subr.bf16.mxu0 0
        %753 = vmatpush1.bf16.msra.mxu0 0
        %754 = vmatprep.subr.bf16.mxu0 0
        %755 = vmatpush1.bf16.msra.mxu0 0
        %756 = vmatprep.subr.bf16.mxu0 0
        %757 = vmatpush1.bf16.msra.mxu0 0
        %758 = vmatprep.subr.bf16.mxu0 0
        %759 = vmatpush1.bf16.msra.mxu0 0
        %760 = vmatprep.mubr.bf16.mxu0 0
        %761 = vmatmul.mubr.bf16.gmra.mrb[0].mxu0 %v656
        %v762 = vpop.f32.mrb[0].mxu0
        %v763 = vadd.f32 %v678, %v762
        %v764 = vpop.f32.mrb[0].mxu0
        %v765 = vpop.f32.mrb[0].mxu0
        %v766 = vpop.f32.mrb[0].mxu0
        %767 = vdwg.mxu0
        %v768 = vmax.f32 %v763, 0.0
        %v769 = vld [vmem:[%s540] sm:$0xff]
        %v770 = vlaneseq
        %v771 = vand.u32 %v770, 127
        %v772 = vadd.s32 %v771, 128
        %v773 = vadd.s32 %v771, 256
        %774 = vset.pattern.permute.xlu0 0
        %775 = vperm.xlu0 %774, %v769
        %v776 = vpop.permute.xlu0 %775
        %vm777 = vcmp.eq.s32.totalorder %v771, %v776
        %vm778 = vcmp.eq.s32.totalorder %v772, %v776
        %vm779 = vcmp.eq.s32.totalorder %v773, %v776
        %v780 = vsel %vm777, 1, 0
        %v781 = vsel %vm778, 1, 0
        %v782 = vsel %vm779, 1, 0
        %v783 = vcvt.s32.f32 %v780
        %v784 = vcvt.s32.f32 %v781
        %v785 = vcvt.s32.f32 %v782
        %v786 = vadd.f32 %v783, 0.0
        %v787 = vadd.f32 %v784, 0.0
        %v788 = vadd.f32 %v785, 0.0
        %789 = vset.pattern.permute.xlu0 1
        %790 = vperm.xlu0 %789, %v769
        %v791 = vpop.permute.xlu0 %790
        %vm792 = vcmp.eq.s32.totalorder %v771, %v791
        %vm793 = vcmp.eq.s32.totalorder %v772, %v791
        %vm794 = vcmp.eq.s32.totalorder %v773, %v791
        %v795 = vsel %vm792, 1, 0
        %v796 = vsel %vm793, 1, 0
        %v797 = vsel %vm794, 1, 0
        %v798 = vcvt.s32.f32 %v795
        %v799 = vcvt.s32.f32 %v796
        %v800 = vcvt.s32.f32 %v797
        %v801 = vadd.f32 %v786, %v798
        %v802 = vadd.f32 %v787, %v799
        %v803 = vadd.f32 %v788, %v800
        %804 = vset.pattern.permute.xlu0 2
        %805 = vperm.xlu0 %804, %v769
        %v806 = vpop.permute.xlu0 %805
        %vm807 = vcmp.eq.s32.totalorder %v771, %v806
        %vm808 = vcmp.eq.s32.totalorder %v772, %v806
        %vm809 = vcmp.eq.s32.totalorder %v773, %v806
        %v810 = vsel %vm807, 1, 0
        %v811 = vsel %vm808, 1, 0
        %v812 = vsel %vm809, 1, 0
        %v813 = vcvt.s32.f32 %v810
        %v814 = vcvt.s32.f32 %v811
        %v815 = vcvt.s32.f32 %v812
        %v816 = vadd.f32 %v801, %v813
        %v817 = vadd.f32 %v802, %v814
        %v818 = vadd.f32 %v803, %v815
        %819 = vset.pattern.permute.xlu0 3
        %820 = vperm.xlu0 %819, %v769
        %v821 = vpop.permute.xlu0 %820
        %vm822 = vcmp.eq.s32.totalorder %v771, %v821
        %vm823 = vcmp.eq.s32.totalorder %v772, %v821
        %vm824 = vcmp.eq.s32.totalorder %v773, %v821
        %v825 = vsel %vm822, 1, 0
        %v826 = vsel %vm823, 1, 0
        %v827 = vsel %vm824, 1, 0
        %v828 = vcvt.s32.f32 %v825
        %v829 = vcvt.s32.f32 %v826
        %v830 = vcvt.s32.f32 %v827
        %v831 = vadd.f32 %v816, %v828
        %v832 = vadd.f32 %v817, %v829
        %v833 = vadd.f32 %v818, %v830
        %834 = vset.pattern.permute.xlu0 4
        %835 = vperm.xlu0 %834, %v769
        %v836 = vpop.permute.xlu0 %835
        %vm837 = vcmp.eq.s32.totalorder %v771, %v836
        %vm838 = vcmp.eq.s32.totalorder %v772, %v836
        %vm839 = vcmp.eq.s32.totalorder %v773, %v836
        %v840 = vsel %vm837, 1, 0
        %v841 = vsel %vm838, 1, 0
        %v842 = vsel %vm839, 1, 0
        %v843 = vcvt.s32.f32 %v840
        %v844 = vcvt.s32.f32 %v841
        %v845 = vcvt.s32.f32 %v842
        %v846 = vadd.f32 %v831, %v843
        %v847 = vadd.f32 %v832, %v844
        %v848 = vadd.f32 %v833, %v845
        %849 = vset.pattern.permute.xlu0 5
        %850 = vperm.xlu0 %849, %v769
        %v851 = vpop.permute.xlu0 %850
        %vm852 = vcmp.eq.s32.totalorder %v771, %v851
        %vm853 = vcmp.eq.s32.totalorder %v772, %v851
        %vm854 = vcmp.eq.s32.totalorder %v773, %v851
        %v855 = vsel %vm852, 1, 0
        %v856 = vsel %vm853, 1, 0
        %v857 = vsel %vm854, 1, 0
        %v858 = vcvt.s32.f32 %v855
        %v859 = vcvt.s32.f32 %v856
        %v860 = vcvt.s32.f32 %v857
        %v861 = vadd.f32 %v846, %v858
        %v862 = vadd.f32 %v847, %v859
        %v863 = vadd.f32 %v848, %v860
        %v864 = vld [vmem:[#allocation2] sm:$0xff]
        %v865 = vld [vmem:[#allocation2 + $0x8] sm:$0xff]
        %v866 = vld [vmem:[#allocation2 + $0x10] sm:$0xff]
        %v867 = vld [vmem:[#allocation2 + $0x18] sm:$0xff]
        %v868 = vld [vmem:[#allocation2 + $0x20] sm:$0xff]
        %v869 = vld [vmem:[#allocation2 + $0x28] sm:$0xff]
        %v870 = vld [vmem:[#allocation2 + $0x30] sm:$0xff]
        %v871 = vld [vmem:[#allocation2 + $0x38] sm:$0xff]
        %v872 = vld [vmem:[#allocation2 + $0x40] sm:$0xff]
        %v873 = vld [vmem:[#allocation2 + $0x48] sm:$0xff]
        %v874 = vld [vmem:[#allocation2 + $0x50] sm:$0xff]
        %v875 = vld [vmem:[#allocation2 + $0x58] sm:$0xff]
        %v876 = vld [vmem:[#allocation2 + $0x60] sm:$0xff]
        %v877 = vld [vmem:[#allocation2 + $0x68] sm:$0xff]
        %v878 = vld [vmem:[#allocation2 + $0x70] sm:$0xff]
        %v879 = vld [vmem:[#allocation2 + $0x78] sm:$0xff]
        %v880 = vld [vmem:[#allocation2 + $0x80] sm:$0xff]
        %v881 = vld [vmem:[#allocation2 + $0x88] sm:$0xff]
        %v882 = vld [vmem:[#allocation2 + $0x90] sm:$0xff]
        %v883 = vld [vmem:[#allocation2 + $0x98] sm:$0xff]
        %v884 = vld [vmem:[#allocation2 + $0xa0] sm:$0xff]
        %v885 = vld [vmem:[#allocation2 + $0xa8] sm:$0xff]
        %v886 = vld [vmem:[#allocation2 + $0xb0] sm:$0xff]
        %v887 = vld [vmem:[#allocation2 + $0xb8] sm:$0xff]
        %v888 = vld [vmem:[#allocation2 + $0xc0] sm:$0xff]
        %v889 = vld [vmem:[#allocation2 + $0xc8] sm:$0xff]
        %v890 = vld [vmem:[#allocation2 + $0xd0] sm:$0xff]
        %v891 = vld [vmem:[#allocation2 + $0xd8] sm:$0xff]
        %v892 = vld [vmem:[#allocation2 + $0xe0] sm:$0xff]
        %v893 = vld [vmem:[#allocation2 + $0xe8] sm:$0xff]
        %v894 = vld [vmem:[#allocation2 + $0xf0] sm:$0xff]
        %v895 = vld [vmem:[#allocation2 + $0xf8] sm:$0xff]
        %v896 = vld [vmem:[#allocation2 + $0x100] sm:$0xff]
        %v897 = vld [vmem:[#allocation2 + $0x108] sm:$0xff]
        %v898 = vld [vmem:[#allocation2 + $0x110] sm:$0xff]
        %v899 = vld [vmem:[#allocation2 + $0x118] sm:$0xff]
        %v900 = vld [vmem:[#allocation2 + $0x120] sm:$0xff]
        %v901 = vld [vmem:[#allocation2 + $0x128] sm:$0xff]
        %v902 = vld [vmem:[#allocation2 + $0x130] sm:$0xff]
        %v903 = vld [vmem:[#allocation2 + $0x138] sm:$0xff]
        %v904 = vld [vmem:[#allocation2 + $0x140] sm:$0xff]
        %v905 = vld [vmem:[#allocation2 + $0x148] sm:$0xff]
        %v906 = vld [vmem:[#allocation2 + $0x150] sm:$0xff]
        %v907 = vld [vmem:[#allocation2 + $0x158] sm:$0xff]
        %v908 = vld [vmem:[#allocation2 + $0x160] sm:$0xff]
        %v909 = vld [vmem:[#allocation2 + $0x168] sm:$0xff]
        %v910 = vld [vmem:[#allocation2 + $0x170] sm:$0xff]
        %v911 = vld [vmem:[#allocation2 + $0x178] sm:$0xff]
        %v912 = vld [vmem:[#allocation2 + $0x180] sm:$0xff]
        %v913 = vld [vmem:[#allocation2 + $0x188] sm:$0xff]
        %v914 = vld [vmem:[#allocation2 + $0x190] sm:$0xff]
        %v915 = vld [vmem:[#allocation2 + $0x198] sm:$0xff]
        %v916 = vld [vmem:[#allocation2 + $0x1a0] sm:$0xff]
        %v917 = vld [vmem:[#allocation2 + $0x1a8] sm:$0xff]
        %v918 = vld [vmem:[#allocation2 + $0x1b0] sm:$0xff]
        %v919 = vld [vmem:[#allocation2 + $0x1b8] sm:$0xff]
        %v920 = vld [vmem:[#allocation2 + $0x1c0] sm:$0xff]
        %v921 = vld [vmem:[#allocation2 + $0x1c8] sm:$0xff]
        %v922 = vld [vmem:[#allocation2 + $0x1d0] sm:$0xff]
        %v923 = vld [vmem:[#allocation2 + $0x1d8] sm:$0xff]
        %v924 = vld [vmem:[#allocation2 + $0x1e0] sm:$0xff]
        %v925 = vld [vmem:[#allocation2 + $0x1e8] sm:$0xff]
        %v926 = vld [vmem:[#allocation2 + $0x1f0] sm:$0xff]
        %v927 = vld [vmem:[#allocation2 + $0x1f8] sm:$0xff]
        %v928 = vld [vmem:[#allocation2 + $0x200] sm:$0xff]
        %v929 = vld [vmem:[#allocation2 + $0x208] sm:$0xff]
        %v930 = vld [vmem:[#allocation2 + $0x210] sm:$0xff]
        %v931 = vld [vmem:[#allocation2 + $0x218] sm:$0xff]
        %v932 = vld [vmem:[#allocation2 + $0x220] sm:$0xff]
        %v933 = vld [vmem:[#allocation2 + $0x228] sm:$0xff]
        %v934 = vld [vmem:[#allocation2 + $0x230] sm:$0xff]
        %v935 = vld [vmem:[#allocation2 + $0x238] sm:$0xff]
        %v936 = vld [vmem:[#allocation2 + $0x240] sm:$0xff]
        %v937 = vld [vmem:[#allocation2 + $0x248] sm:$0xff]
        %v938 = vld [vmem:[#allocation2 + $0x250] sm:$0xff]
        %v939 = vld [vmem:[#allocation2 + $0x258] sm:$0xff]
        %v940 = vld [vmem:[#allocation2 + $0x260] sm:$0xff]
        %v941 = vld [vmem:[#allocation2 + $0x268] sm:$0xff]
        %v942 = vld [vmem:[#allocation2 + $0x270] sm:$0xff]
        %v943 = vld [vmem:[#allocation2 + $0x278] sm:$0xff]
        %v944 = vld [vmem:[#allocation2 + $0x280] sm:$0xff]
        %v945 = vld [vmem:[#allocation2 + $0x288] sm:$0xff]
        %v946 = vld [vmem:[#allocation2 + $0x290] sm:$0xff]
        %v947 = vld [vmem:[#allocation2 + $0x298] sm:$0xff]
        %v948 = vld [vmem:[#allocation2 + $0x2a0] sm:$0xff]
        %v949 = vld [vmem:[#allocation2 + $0x2a8] sm:$0xff]
        %v950 = vld [vmem:[#allocation2 + $0x2b0] sm:$0xff]
        %v951 = vld [vmem:[#allocation2 + $0x2b8] sm:$0xff]
        %v952 = vld [vmem:[#allocation2 + $0x2c0] sm:$0xff]
        %v953 = vld [vmem:[#allocation2 + $0x2c8] sm:$0xff]
        %v954 = vld [vmem:[#allocation2 + $0x2d0] sm:$0xff]
        %v955 = vld [vmem:[#allocation2 + $0x2d8] sm:$0xff]
        %v956 = vld [vmem:[#allocation2 + $0x2e0] sm:$0xff]
        %v957 = vld [vmem:[#allocation2 + $0x2e8] sm:$0xff]
        %v958 = vld [vmem:[#allocation2 + $0x2f0] sm:$0xff]
        %v959 = vld [vmem:[#allocation2 + $0x2f8] sm:$0xff]
        %v960 = vld [vmem:[#allocation2 + $0x300] sm:$0xff]
        %v961 = vld [vmem:[#allocation2 + $0x308] sm:$0xff]
        %v962 = vld [vmem:[#allocation2 + $0x310] sm:$0xff]
        %v963 = vld [vmem:[#allocation2 + $0x318] sm:$0xff]
        %v964 = vld [vmem:[#allocation2 + $0x320] sm:$0xff]
        %v965 = vld [vmem:[#allocation2 + $0x328] sm:$0xff]
        %v966 = vld [vmem:[#allocation2 + $0x330] sm:$0xff]
        %v967 = vld [vmem:[#allocation2 + $0x338] sm:$0xff]
        %v968 = vld [vmem:[#allocation2 + $0x340] sm:$0xff]
        %v969 = vld [vmem:[#allocation2 + $0x348] sm:$0xff]
        %v970 = vld [vmem:[#allocation2 + $0x350] sm:$0xff]
        %v971 = vld [vmem:[#allocation2 + $0x358] sm:$0xff]
        %v972 = vld [vmem:[#allocation2 + $0x360] sm:$0xff]
        %v973 = vld [vmem:[#allocation2 + $0x368] sm:$0xff]
        %v974 = vld [vmem:[#allocation2 + $0x370] sm:$0xff]
        %v975 = vld [vmem:[#allocation2 + $0x378] sm:$0xff]
        %v976 = vld [vmem:[#allocation2 + $0x380] sm:$0xff]
        %v977 = vld [vmem:[#allocation2 + $0x388] sm:$0xff]
        %v978 = vld [vmem:[#allocation2 + $0x390] sm:$0xff]
        %v979 = vld [vmem:[#allocation2 + $0x398] sm:$0xff]
        %v980 = vld [vmem:[#allocation2 + $0x3a0] sm:$0xff]
        %v981 = vld [vmem:[#allocation2 + $0x3a8] sm:$0xff]
        %v982 = vld [vmem:[#allocation2 + $0x3b0] sm:$0xff]
        %v983 = vld [vmem:[#allocation2 + $0x3b8] sm:$0xff]
        %v984 = vld [vmem:[#allocation2 + $0x3c0] sm:$0xff]
        %v985 = vld [vmem:[#allocation2 + $0x3c8] sm:$0xff]
        %v986 = vld [vmem:[#allocation2 + $0x3d0] sm:$0xff]
        %v987 = vld [vmem:[#allocation2 + $0x3d8] sm:$0xff]
        %v988 = vld [vmem:[#allocation2 + $0x3e0] sm:$0xff]
        %v989 = vld [vmem:[#allocation2 + $0x3e8] sm:$0xff]
        %v990 = vld [vmem:[#allocation2 + $0x3f0] sm:$0xff]
        %v991 = vld [vmem:[#allocation2 + $0x3f8] sm:$0xff]
        %v992 = vld [vmem:[#allocation2 + $0x400] sm:$0xff]
        %v993 = vld [vmem:[#allocation2 + $0x408] sm:$0xff]
        %v994 = vld [vmem:[#allocation2 + $0x410] sm:$0xff]
        %v995 = vld [vmem:[#allocation2 + $0x418] sm:$0xff]
        %v996 = vld [vmem:[#allocation2 + $0x420] sm:$0xff]
        %v997 = vld [vmem:[#allocation2 + $0x428] sm:$0xff]
        %v998 = vld [vmem:[#allocation2 + $0x430] sm:$0xff]
        %v999 = vld [vmem:[#allocation2 + $0x438] sm:$0xff]
        %v1000 = vld [vmem:[#allocation2 + $0x440] sm:$0xff]
        %v1001 = vld [vmem:[#allocation2 + $0x448] sm:$0xff]
        %v1002 = vld [vmem:[#allocation2 + $0x450] sm:$0xff]
        %v1003 = vld [vmem:[#allocation2 + $0x458] sm:$0xff]
        %v1004 = vld [vmem:[#allocation2 + $0x460] sm:$0xff]
        %v1005 = vld [vmem:[#allocation2 + $0x468] sm:$0xff]
        %v1006 = vld [vmem:[#allocation2 + $0x470] sm:$0xff]
        %v1007 = vld [vmem:[#allocation2 + $0x478] sm:$0xff]
        %1008 = vmatprep.subr.mxu0 %v865
        %1009 = vmatpush1.msra.mxu0 %v864
        %1010 = vmatprep.subr.mxu0 %v868
        %1011 = vmatpush1.msra.mxu0 %v867
        %1012 = vmatprep.subr.mxu0 %v871
        %1013 = vmatpush1.msra.mxu0 %v870
        %1014 = vmatprep.subr.mxu0 %v874
        %1015 = vmatpush1.msra.mxu0 %v873
        %1016 = vmatprep.subr.mxu0 %v877
        %1017 = vmatpush1.msra.mxu0 %v876
        %1018 = vmatprep.subr.mxu0 %v880
        %1019 = vmatpush1.msra.mxu0 %v879
        %1020 = vmatprep.subr.mxu0 %v883
        %1021 = vmatpush1.msra.mxu0 %v882
        %1022 = vmatprep.subr.mxu0 %v886
        %1023 = vmatpush1.msra.mxu0 %v885
        %1024 = vmatprep.subr.mxu0 %v889
        %1025 = vmatpush1.msra.mxu0 %v888
        %1026 = vmatprep.subr.mxu0 %v892
        %1027 = vmatpush1.msra.mxu0 %v891
        %1028 = vmatprep.subr.mxu0 %v895
        %1029 = vmatpush1.msra.mxu0 %v894
        %1030 = vmatprep.subr.mxu0 %v898
        %1031 = vmatpush1.msra.mxu0 %v897
        %1032 = vmatprep.subr.mxu0 %v901
        %1033 = vmatpush1.msra.mxu0 %v900
        %1034 = vmatprep.subr.mxu0 %v904
        %1035 = vmatpush1.msra.mxu0 %v903
        %1036 = vmatprep.subr.mxu0 %v907
        %1037 = vmatpush1.msra.mxu0 %v906
        %1038 = vmatprep.subr.mxu0 %v910
        %1039 = vmatpush1.msra.mxu0 %v909
        %1040 = vmatprep.subr.mxu0 %v913
        %1041 = vmatpush1.msra.mxu0 %v912
        %1042 = vmatprep.subr.mxu0 %v916
        %1043 = vmatpush1.msra.mxu0 %v915
        %1044 = vmatprep.subr.mxu0 %v919
        %1045 = vmatpush1.msra.mxu0 %v918
        %1046 = vmatprep.subr.mxu0 %v922
        %1047 = vmatpush1.msra.mxu0 %v921
        %1048 = vmatprep.subr.mxu0 %v925
        %1049 = vmatpush1.msra.mxu0 %v924
        %1050 = vmatprep.subr.mxu0 %v928
        %1051 = vmatpush1.msra.mxu0 %v927
        %1052 = vmatprep.subr.mxu0 %v931
        %1053 = vmatpush1.msra.mxu0 %v930
        %1054 = vmatprep.subr.mxu0 %v934
        %1055 = vmatpush1.msra.mxu0 %v933
        %1056 = vmatprep.subr.mxu0 %v937
        %1057 = vmatpush1.msra.mxu0 %v936
        %1058 = vmatprep.subr.mxu0 %v940
        %1059 = vmatpush1.msra.mxu0 %v939
        %1060 = vmatprep.subr.mxu0 %v943
        %1061 = vmatpush1.msra.mxu0 %v942
        %1062 = vmatprep.subr.mxu0 %v946
        %1063 = vmatpush1.msra.mxu0 %v945
        %1064 = vmatprep.subr.mxu0 %v949
        %1065 = vmatpush1.msra.mxu0 %v948
        %1066 = vmatprep.subr.mxu0 %v952
        %1067 = vmatpush1.msra.mxu0 %v951
        %1068 = vmatprep.subr.mxu0 %v955
        %1069 = vmatpush1.msra.mxu0 %v954
        %1070 = vmatprep.subr.mxu0 %v958
        %1071 = vmatpush1.msra.mxu0 %v957
        %1072 = vmatprep.mubr.f32.mxu0 %v862
        %1073 = vmatmul.mubr.f32.gmra.mrb[0].mxu0 %v861
        %v1074 = vpop.f32.mrb[0].mxu0
        %v1075 = vadd.f32 0.0, %v1074
        %v1076 = vpop.f32.mrb[0].mxu0
        %v1077 = vadd.f32 0.0, %v1076
        %1078 = vdwg.mxu0
        %1079 = vmatprep.subr.mxu0 %v961
        %1080 = vmatpush1.msra.mxu0 %v960
        %1081 = vmatprep.subr.mxu0 %v964
        %1082 = vmatpush1.msra.mxu0 %v963
        %1083 = vmatprep.subr.mxu0 %v967
        %1084 = vmatpush1.msra.mxu0 %v966
        %1085 = vmatprep.subr.mxu0 %v970
        %1086 = vmatpush1.msra.mxu0 %v969
        %1087 = vmatprep.subr.mxu0 %v973
        %1088 = vmatpush1.msra.mxu0 %v972
        %1089 = vmatprep.subr.mxu0 %v976
        %1090 = vmatpush1.msra.mxu0 %v975
        %1091 = vmatprep.subr.mxu0 %v979
        %1092 = vmatpush1.msra.mxu0 %v978
        %1093 = vmatprep.subr.mxu0 %v982
        %1094 = vmatpush1.msra.mxu0 %v981
        %1095 = vmatprep.subr.mxu0 %v985
        %1096 = vmatpush1.msra.mxu0 %v984
        %1097 = vmatprep.subr.mxu0 %v988
        %1098 = vmatpush1.msra.mxu0 %v987
        %1099 = vmatprep.subr.mxu0 %v991
        %1100 = vmatpush1.msra.mxu0 %v990
        %1101 = vmatprep.subr.mxu0 %v994
        %1102 = vmatpush1.msra.mxu0 %v993
        %1103 = vmatprep.subr.mxu0 %v997
        %1104 = vmatpush1.msra.mxu0 %v996
        %1105 = vmatprep.subr.mxu0 %v1000
        %1106 = vmatpush1.msra.mxu0 %v999
        %1107 = vmatprep.subr.mxu0 %v1003
        %1108 = vmatpush1.msra.mxu0 %v1002
        %1109 = vmatprep.subr.mxu0 %v1006
        %1110 = vmatpush1.msra.mxu0 %v1005
        %1111 = vmatprep.subr.mxu0 0.0
        %1112 = vmatpush1.msra.mxu0 0.0
        %1113 = vmatprep.subr.mxu0 0.0
        %1114 = vmatpush1.msra.mxu0 0.0
        %1115 = vmatprep.subr.mxu0 0.0
        %1116 = vmatpush1.msra.mxu0 0.0
        %1117 = vmatprep.subr.mxu0 0.0
        %1118 = vmatpush1.msra.mxu0 0.0
        %1119 = vmatprep.subr.mxu0 0.0
        %1120 = vmatpush1.msra.mxu0 0.0
        %1121 = vmatprep.subr.mxu0 0.0
        %1122 = vmatpush1.msra.mxu0 0.0
        %1123 = vmatprep.subr.mxu0 0.0
        %1124 = vmatpush1.msra.mxu0 0.0
        %1125 = vmatprep.subr.mxu0 0.0
        %1126 = vmatpush1.msra.mxu0 0.0
        %1127 = vmatprep.subr.mxu0 0.0
        %1128 = vmatpush1.msra.mxu0 0.0
        %1129 = vmatprep.subr.mxu0 0.0
        %1130 = vmatpush1.msra.mxu0 0.0
        %1131 = vmatprep.subr.mxu0 0.0
        %1132 = vmatpush1.msra.mxu0 0.0
        %1133 = vmatprep.subr.mxu0 0.0
        %1134 = vmatpush1.msra.mxu0 0.0
        %1135 = vmatprep.subr.mxu0 0.0
        %1136 = vmatpush1.msra.mxu0 0.0
        %1137 = vmatprep.subr.mxu0 0.0
        %1138 = vmatpush1.msra.mxu0 0.0
        %1139 = vmatprep.subr.mxu0 0.0
        %1140 = vmatpush1.msra.mxu0 0.0
        %1141 = vmatprep.subr.mxu0 0.0
        %1142 = vmatpush1.msra.mxu0 0.0
        %1143 = vmatprep.mubr.f32.mxu0 0.0
        %1144 = vmatmul.mubr.f32.gmra.mrb[0].mxu0 %v863
        %v1145 = vpop.f32.mrb[0].mxu0
        %v1146 = vadd.f32 %v1075, %v1145
        %v1147 = vpop.f32.mrb[0].mxu0
        %v1148 = vadd.f32 %v1077, %v1147
        %1149 = vdwg.mxu0
        %1150 = vmatprep.subr.mxu0 0.0
        %1151 = vmatpush1.msra.mxu0 %v866
        %1152 = vmatprep.subr.mxu0 0.0
        %1153 = vmatpush1.msra.mxu0 %v869
        %1154 = vmatprep.subr.mxu0 0.0
        %1155 = vmatpush1.msra.mxu0 %v872
        %1156 = vmatprep.subr.mxu0 0.0
        %1157 = vmatpush1.msra.mxu0 %v875
        %1158 = vmatprep.subr.mxu0 0.0
        %1159 = vmatpush1.msra.mxu0 %v878
        %1160 = vmatprep.subr.mxu0 0.0
        %1161 = vmatpush1.msra.mxu0 %v881
        %1162 = vmatprep.subr.mxu0 0.0
        %1163 = vmatpush1.msra.mxu0 %v884
        %1164 = vmatprep.subr.mxu0 0.0
        %1165 = vmatpush1.msra.mxu0 %v887
        %1166 = vmatprep.subr.mxu0 0.0
        %1167 = vmatpush1.msra.mxu0 %v890
        %1168 = vmatprep.subr.mxu0 0.0
        %1169 = vmatpush1.msra.mxu0 %v893
        %1170 = vmatprep.subr.mxu0 0.0
        %1171 = vmatpush1.msra.mxu0 %v896
        %1172 = vmatprep.subr.mxu0 0.0
        %1173 = vmatpush1.msra.mxu0 %v899
        %1174 = vmatprep.subr.mxu0 0.0
        %1175 = vmatpush1.msra.mxu0 %v902
        %1176 = vmatprep.subr.mxu0 0.0
        %1177 = vmatpush1.msra.mxu0 %v905
        %1178 = vmatprep.subr.mxu0 0.0
        %1179 = vmatpush1.msra.mxu0 %v908
        %1180 = vmatprep.subr.mxu0 0.0
        %1181 = vmatpush1.msra.mxu0 %v911
        %1182 = vmatprep.subr.mxu0 0.0
        %1183 = vmatpush1.msra.mxu0 %v914
        %1184 = vmatprep.subr.mxu0 0.0
        %1185 = vmatpush1.msra.mxu0 %v917
        %1186 = vmatprep.subr.mxu0 0.0
        %1187 = vmatpush1.msra.mxu0 %v920
        %1188 = vmatprep.subr.mxu0 0.0
        %1189 = vmatpush1.msra.mxu0 %v923
        %1190 = vmatprep.subr.mxu0 0.0
        %1191 = vmatpush1.msra.mxu0 %v926
        %1192 = vmatprep.subr.mxu0 0.0
        %1193 = vmatpush1.msra.mxu0 %v929
        %1194 = vmatprep.subr.mxu0 0.0
        %1195 = vmatpush1.msra.mxu0 %v932
        %1196 = vmatprep.subr.mxu0 0.0
        %1197 = vmatpush1.msra.mxu0 %v935
        %1198 = vmatprep.subr.mxu0 0.0
        %1199 = vmatpush1.msra.mxu0 %v938
        %1200 = vmatprep.subr.mxu0 0.0
        %1201 = vmatpush1.msra.mxu0 %v941
        %1202 = vmatprep.subr.mxu0 0.0
        %1203 = vmatpush1.msra.mxu0 %v944
        %1204 = vmatprep.subr.mxu0 0.0
        %1205 = vmatpush1.msra.mxu0 %v947
        %1206 = vmatprep.subr.mxu0 0.0
        %1207 = vmatpush1.msra.mxu0 %v950
        %1208 = vmatprep.subr.mxu0 0.0
        %1209 = vmatpush1.msra.mxu0 %v953
        %1210 = vmatprep.subr.mxu0 0.0
        %1211 = vmatpush1.msra.mxu0 %v956
        %1212 = vmatprep.subr.mxu0 0.0
        %1213 = vmatpush1.msra.mxu0 %v959
        %1214 = vmatprep.mubr.f32.mxu0 %v862
        %1215 = vmatmul.mubr.f32.gmra.mrb[0].mxu0 %v861
        %v1216 = vpop.f32.mrb[0].mxu0
        %v1217 = vadd.f32 0.0, %v1216
        %v1218 = vpop.f32.mrb[0].mxu0
        %1219 = vdwg.mxu0
        %1220 = vmatprep.subr.mxu0 0.0
        %1221 = vmatpush1.msra.mxu0 %v962
        %1222 = vmatprep.subr.mxu0 0.0
        %1223 = vmatpush1.msra.mxu0 %v965
        %1224 = vmatprep.subr.mxu0 0.0
        %1225 = vmatpush1.msra.mxu0 %v968
        %1226 = vmatprep.subr.mxu0 0.0
        %1227 = vmatpush1.msra.mxu0 %v971
        %1228 = vmatprep.subr.mxu0 0.0
        %1229 = vmatpush1.msra.mxu0 %v974
        %1230 = vmatprep.subr.mxu0 0.0
        %1231 = vmatpush1.msra.mxu0 %v977
        %1232 = vmatprep.subr.mxu0 0.0
        %1233 = vmatpush1.msra.mxu0 %v980
        %1234 = vmatprep.subr.mxu0 0.0
        %1235 = vmatpush1.msra.mxu0 %v983
        %1236 = vmatprep.subr.mxu0 0.0
        %1237 = vmatpush1.msra.mxu0 %v986
        %1238 = vmatprep.subr.mxu0 0.0
        %1239 = vmatpush1.msra.mxu0 %v989
        %1240 = vmatprep.subr.mxu0 0.0
        %1241 = vmatpush1.msra.mxu0 %v992
        %1242 = vmatprep.subr.mxu0 0.0
        %1243 = vmatpush1.msra.mxu0 %v995
        %1244 = vmatprep.subr.mxu0 0.0
        %1245 = vmatpush1.msra.mxu0 %v998
        %1246 = vmatprep.subr.mxu0 0.0
        %1247 = vmatpush1.msra.mxu0 %v1001
        %1248 = vmatprep.subr.mxu0 0.0
        %1249 = vmatpush1.msra.mxu0 %v1004
        %1250 = vmatprep.subr.mxu0 0.0
        %1251 = vmatpush1.msra.mxu0 %v1007
        %1252 = vmatprep.subr.mxu0 0.0
        %1253 = vmatpush1.msra.mxu0 0.0
        %1254 = vmatprep.subr.mxu0 0.0
        %1255 = vmatpush1.msra.mxu0 0.0
        %1256 = vmatprep.subr.mxu0 0.0
        %1257 = vmatpush1.msra.mxu0 0.0
        %1258 = vmatprep.subr.mxu0 0.0
        %1259 = vmatpush1.msra.mxu0 0.0
        %1260 = vmatprep.subr.mxu0 0.0
        %1261 = vmatpush1.msra.mxu0 0.0
        %1262 = vmatprep.subr.mxu0 0.0
        %1263 = vmatpush1.msra.mxu0 0.0
        %1264 = vmatprep.subr.mxu0 0.0
        %1265 = vmatpush1.msra.mxu0 0.0
        %1266 = vmatprep.subr.mxu0 0.0
        %1267 = vmatpush1.msra.mxu0 0.0
        %1268 = vmatprep.subr.mxu0 0.0
        %1269 = vmatpush1.msra.mxu0 0.0
        %1270 = vmatprep.subr.mxu0 0.0
        %1271 = vmatpush1.msra.mxu0 0.0
        %1272 = vmatprep.subr.mxu0 0.0
        %1273 = vmatpush1.msra.mxu0 0.0
        %1274 = vmatprep.subr.mxu0 0.0
        %1275 = vmatpush1.msra.mxu0 0.0
        %1276 = vmatprep.subr.mxu0 0.0
        %1277 = vmatpush1.msra.mxu0 0.0
        %1278 = vmatprep.subr.mxu0 0.0
        %1279 = vmatpush1.msra.mxu0 0.0
        %1280 = vmatprep.subr.mxu0 0.0
        %1281 = vmatpush1.msra.mxu0 0.0
        %1282 = vmatprep.subr.mxu0 0.0
        %1283 = vmatpush1.msra.mxu0 0.0
        %1284 = vmatprep.mubr.f32.mxu0 0.0
        %1285 = vmatmul.mubr.f32.gmra.mrb[0].mxu0 %v863
        %v1286 = vpop.f32.mrb[0].mxu0
        %v1287 = vadd.f32 %v1217, %v1286
        %v1288 = vpop.f32.mrb[0].mxu0
        %1289 = vdwg.mxu0
        %v1290 = vmul.f32 %v1146, %v768
        %v1291 = vmul.f32 %v1148, %v768
        %v1292 = vmul.f32 %v1148, %v1146
        %v1293 = vmul.f32 %v1287, %v768
        %v1294 = vmul.f32 %v1287, %v1146
        %v1295 = vmul.f32 %v1287, %v1148
        %v1296 = vld [vmem:[#allocation8] sm:$0xff]
        %v1297 = vld [vmem:[#allocation8 + $0x8] sm:$0xff]
        %v1298 = vld [vmem:[#allocation8 + $0x10] sm:$0xff]
        %v1299 = vld [vmem:[#allocation8 + $0x18] sm:$0xff]
        %v1300 = vld [vmem:[#allocation8 + $0x20] sm:$0xff]
        %v1301 = vld [vmem:[#allocation8 + $0x28] sm:$0xff]
        %v1302 = vld [vmem:[#allocation8 + $0x30] sm:$0xff]
        %v1303 = vld [vmem:[#allocation8 + $0x38] sm:$0xff]
        %v1304 = vld [vmem:[#allocation8 + $0x40] sm:$0xff]
        %v1305 = vld [vmem:[#allocation8 + $0x48] sm:$0xff]
        %v1306 = vld [vmem:[#allocation8 + $0x50] sm:$0xff]
        %v1307 = vld [vmem:[#allocation8 + $0x58] sm:$0xff]
        %v1308 = vld [vmem:[#allocation8 + $0x60] sm:$0xff]
        %v1309 = vld [vmem:[#allocation8 + $0x68] sm:$0xff]
        %v1310 = vld [vmem:[#allocation8 + $0x70] sm:$0xff]
        %v1311 = vld [vmem:[#allocation8 + $0x78] sm:$0xff]
        %v1312 = vld [vmem:[#allocation8 + $0x80] sm:$0xff]
        %v1313 = vld [vmem:[#allocation8 + $0x88] sm:$0xff]
        %v1314 = vld [vmem:[#allocation8 + $0x90] sm:$0xff]
        %v1315 = vld [vmem:[#allocation8 + $0x98] sm:$0xff]
        %v1316 = vld [vmem:[#allocation8 + $0xa0] sm:$0xff]
        %v1317 = vld [vmem:[#allocation8 + $0xa8] sm:$0xff]
        %v1318 = vld [vmem:[#allocation8 + $0xb0] sm:$0xff]
        %v1319 = vld [vmem:[#allocation8 + $0xb8] sm:$0xff]
        %v1320 = vld [vmem:[#allocation8 + $0xc0] sm:$0xff]
        %v1321 = vld [vmem:[#allocation8 + $0xc8] sm:$0xff]
        %v1322 = vld [vmem:[#allocation8 + $0xd0] sm:$0xff]
        %v1323 = vld [vmem:[#allocation8 + $0xd8] sm:$0xff]
        %v1324 = vld [vmem:[#allocation8 + $0xe0] sm:$0xff]
        %v1325 = vld [vmem:[#allocation8 + $0xe8] sm:$0xff]
        %v1326 = vld [vmem:[#allocation8 + $0xf0] sm:$0xff]
        %v1327 = vld [vmem:[#allocation8 + $0xf8] sm:$0xff]
        %v1328 = vld [vmem:[#allocation8 + $0x100] sm:$0xff]
        %v1329 = vld [vmem:[#allocation8 + $0x108] sm:$0xff]
        %v1330 = vld [vmem:[#allocation8 + $0x110] sm:$0xff]
        %v1331 = vld [vmem:[#allocation8 + $0x118] sm:$0xff]
        %v1332 = vld [vmem:[#allocation8 + $0x120] sm:$0xff]
        %v1333 = vld [vmem:[#allocation8 + $0x128] sm:$0xff]
        %v1334 = vld [vmem:[#allocation8 + $0x130] sm:$0xff]
        %v1335 = vld [vmem:[#allocation8 + $0x138] sm:$0xff]
        %v1336 = vld [vmem:[#allocation8 + $0x140] sm:$0xff]
        %v1337 = vld [vmem:[#allocation8 + $0x148] sm:$0xff]
        %v1338 = vld [vmem:[#allocation8 + $0x150] sm:$0xff]
        %v1339 = vld [vmem:[#allocation8 + $0x158] sm:$0xff]
        %v1340 = vld [vmem:[#allocation8 + $0x160] sm:$0xff]
        %v1341 = vld [vmem:[#allocation8 + $0x168] sm:$0xff]
        %v1342 = vld [vmem:[#allocation8 + $0x170] sm:$0xff]
        %v1343 = vld [vmem:[#allocation8 + $0x178] sm:$0xff]
        %v1344 = vld [vmem:[#allocation8 + $0x180] sm:$0xff]
        %v1345 = vld [vmem:[#allocation8 + $0x188] sm:$0xff]
        %v1346 = vld [vmem:[#allocation8 + $0x190] sm:$0xff]
        %v1347 = vld [vmem:[#allocation8 + $0x198] sm:$0xff]
        %v1348 = vld [vmem:[#allocation8 + $0x1a0] sm:$0xff]
        %v1349 = vld [vmem:[#allocation8 + $0x1a8] sm:$0xff]
        %v1350 = vld [vmem:[#allocation8 + $0x1b0] sm:$0xff]
        %v1351 = vld [vmem:[#allocation8 + $0x1b8] sm:$0xff]
        %v1352 = vld [vmem:[#allocation8 + $0x1c0] sm:$0xff]
        %v1353 = vld [vmem:[#allocation8 + $0x1c8] sm:$0xff]
        %v1354 = vld [vmem:[#allocation8 + $0x1d0] sm:$0xff]
        %v1355 = vld [vmem:[#allocation8 + $0x1d8] sm:$0xff]
        %v1356 = vld [vmem:[#allocation8 + $0x1e0] sm:$0xff]
        %v1357 = vld [vmem:[#allocation8 + $0x1e8] sm:$0xff]
        %v1358 = vld [vmem:[#allocation8 + $0x1f0] sm:$0xff]
        %v1359 = vld [vmem:[#allocation8 + $0x1f8] sm:$0xff]
        %v1360 = vld [vmem:[#allocation8 + $0x200] sm:$0xff]
        %v1361 = vld [vmem:[#allocation8 + $0x208] sm:$0xff]
        %v1362 = vld [vmem:[#allocation8 + $0x210] sm:$0xff]
        %v1363 = vld [vmem:[#allocation8 + $0x218] sm:$0xff]
        %v1364 = vld [vmem:[#allocation8 + $0x220] sm:$0xff]
        %v1365 = vld [vmem:[#allocation8 + $0x228] sm:$0xff]
        %v1366 = vld [vmem:[#allocation8 + $0x230] sm:$0xff]
        %v1367 = vld [vmem:[#allocation8 + $0x238] sm:$0xff]
        %v1368 = vld [vmem:[#allocation8 + $0x240] sm:$0xff]
        %v1369 = vld [vmem:[#allocation8 + $0x248] sm:$0xff]
        %v1370 = vld [vmem:[#allocation8 + $0x250] sm:$0xff]
        %v1371 = vld [vmem:[#allocation8 + $0x258] sm:$0xff]
        %v1372 = vld [vmem:[#allocation8 + $0x260] sm:$0xff]
        %v1373 = vld [vmem:[#allocation8 + $0x268] sm:$0xff]
        %v1374 = vld [vmem:[#allocation8 + $0x270] sm:$0xff]
        %v1375 = vld [vmem:[#allocation8 + $0x278] sm:$0xff]
        %v1376 = vld [vmem:[#allocation8 + $0x280] sm:$0xff]
        %v1377 = vld [vmem:[#allocation8 + $0x288] sm:$0xff]
        %v1378 = vld [vmem:[#allocation8 + $0x290] sm:$0xff]
        %v1379 = vld [vmem:[#allocation8 + $0x298] sm:$0xff]
        %v1380 = vld [vmem:[#allocation8 + $0x2a0] sm:$0xff]
        %v1381 = vld [vmem:[#allocation8 + $0x2a8] sm:$0xff]
        %v1382 = vld [vmem:[#allocation8 + $0x2b0] sm:$0xff]
        %v1383 = vld [vmem:[#allocation8 + $0x2b8] sm:$0xff]
        %v1384 = vld [vmem:[#allocation8 + $0x2c0] sm:$0xff]
        %v1385 = vld [vmem:[#allocation8 + $0x2c8] sm:$0xff]
        %v1386 = vld [vmem:[#allocation8 + $0x2d0] sm:$0xff]
        %v1387 = vld [vmem:[#allocation8 + $0x2d8] sm:$0xff]
        %v1388 = vld [vmem:[#allocation8 + $0x2e0] sm:$0xff]
        %v1389 = vld [vmem:[#allocation8 + $0x2e8] sm:$0xff]
        %v1390 = vld [vmem:[#allocation8 + $0x2f0] sm:$0xff]
        %v1391 = vld [vmem:[#allocation8 + $0x2f8] sm:$0xff]
        %v1392 = vld [vmem:[#allocation8 + $0x300] sm:$0xff]
        %v1393 = vld [vmem:[#allocation8 + $0x308] sm:$0xff]
        %v1394 = vld [vmem:[#allocation8 + $0x310] sm:$0xff]
        %v1395 = vld [vmem:[#allocation8 + $0x318] sm:$0xff]
        %v1396 = vld [vmem:[#allocation8 + $0x320] sm:$0xff]
        %v1397 = vld [vmem:[#allocation8 + $0x328] sm:$0xff]
        %v1398 = vld [vmem:[#allocation8 + $0x330] sm:$0xff]
        %v1399 = vld [vmem:[#allocation8 + $0x338] sm:$0xff]
        %v1400 = vld [vmem:[#allocation8 + $0x340] sm:$0xff]
        %v1401 = vld [vmem:[#allocation8 + $0x348] sm:$0xff]
        %v1402 = vld [vmem:[#allocation8 + $0x350] sm:$0xff]
        %v1403 = vld [vmem:[#allocation8 + $0x358] sm:$0xff]
        %v1404 = vld [vmem:[#allocation8 + $0x360] sm:$0xff]
        %v1405 = vld [vmem:[#allocation8 + $0x368] sm:$0xff]
        %v1406 = vld [vmem:[#allocation8 + $0x370] sm:$0xff]
        %v1407 = vld [vmem:[#allocation8 + $0x378] sm:$0xff]
        %v1408 = vld [vmem:[%s8] sm:$0x1]
        %v1410 = vlaneseq
        %v1411 = vshrl.u32 %v1410, 7
        %v1412 = vsub.s32 0, %v1411
        %v1413 = vrot.slane %v1408, %v1412
        %1415 = vmatprep.subr.mxu0 0.0
        %1416 = vmatpush1.msra.mxu0 %v1296
        %1417 = vmatprep.subr.mxu0 0.0
        %1418 = vmatpush1.msra.mxu0 %v1297
        %1419 = vmatprep.subr.mxu0 0.0
        %1420 = vmatpush1.msra.mxu0 %v1298
        %1421 = vmatprep.subr.mxu0 0.0
        %1422 = vmatpush1.msra.mxu0 %v1299
        %1423 = vmatprep.subr.mxu0 0.0
        %1424 = vmatpush1.msra.mxu0 %v1300
        %1425 = vmatprep.subr.mxu0 0.0
        %1426 = vmatpush1.msra.mxu0 %v1301
        %1427 = vmatprep.subr.mxu0 0.0
        %1428 = vmatpush1.msra.mxu0 %v1302
        %1429 = vmatprep.subr.mxu0 0.0
        %1430 = vmatpush1.msra.mxu0 %v1303
        %1431 = vmatprep.subr.mxu0 0.0
        %1432 = vmatpush1.msra.mxu0 %v1304
        %1433 = vmatprep.subr.mxu0 0.0
        %1434 = vmatpush1.msra.mxu0 %v1305
        %1435 = vmatprep.subr.mxu0 0.0
        %1436 = vmatpush1.msra.mxu0 %v1306
        %1437 = vmatprep.subr.mxu0 0.0
        %1438 = vmatpush1.msra.mxu0 %v1307
        %1439 = vmatprep.subr.mxu0 0.0
        %1440 = vmatpush1.msra.mxu0 %v1308
        %1441 = vmatprep.subr.mxu0 0.0
        %1442 = vmatpush1.msra.mxu0 %v1309
        %1443 = vmatprep.subr.mxu0 0.0
        %1444 = vmatpush1.msra.mxu0 %v1310
        %1445 = vmatprep.subr.mxu0 0.0
        %1446 = vmatpush1.msra.mxu0 %v1311
        %1447 = vmatprep.subr.mxu0 0.0
        %1448 = vmatpush1.msra.mxu0 %v1312
        %1449 = vmatprep.subr.mxu0 0.0
        %1450 = vmatpush1.msra.mxu0 %v1313
        %1451 = vmatprep.subr.mxu0 0.0
        %1452 = vmatpush1.msra.mxu0 %v1314
        %1453 = vmatprep.subr.mxu0 0.0
        %1454 = vmatpush1.msra.mxu0 %v1315
        %1455 = vmatprep.subr.mxu0 0.0
        %1456 = vmatpush1.msra.mxu0 %v1316
        %1457 = vmatprep.subr.mxu0 0.0
        %1458 = vmatpush1.msra.mxu0 %v1317
        %1459 = vmatprep.subr.mxu0 0.0
        %1460 = vmatpush1.msra.mxu0 %v1318
        %1461 = vmatprep.subr.mxu0 0.0
        %1462 = vmatpush1.msra.mxu0 %v1319
        %1463 = vmatprep.subr.mxu0 0.0
        %1464 = vmatpush1.msra.mxu0 %v1320
        %1465 = vmatprep.subr.mxu0 0.0
        %1466 = vmatpush1.msra.mxu0 %v1321
        %1467 = vmatprep.subr.mxu0 0.0
        %1468 = vmatpush1.msra.mxu0 %v1322
        %1469 = vmatprep.subr.mxu0 0.0
        %1470 = vmatpush1.msra.mxu0 %v1323
        %1471 = vmatprep.subr.mxu0 0.0
        %1472 = vmatpush1.msra.mxu0 %v1324
        %1473 = vmatprep.subr.mxu0 0.0
        %1474 = vmatpush1.msra.mxu0 %v1325
        %1475 = vmatprep.subr.mxu0 0.0
        %1476 = vmatpush1.msra.mxu0 %v1326
        %1477 = vmatprep.subr.mxu0 0.0
        %1478 = vmatpush1.msra.mxu0 %v1327
        %1479 = vmatprep.mubr.f32.mxu0 %v1290
        %1480 = vmatmul.mubr.f32.gmra.mrb[0].mxu0 %v768
        %v1481 = vpop.f32.mrb[0].mxu0
        %v1482 = vadd.f32 %v1413, %v1481
        %v1483 = vpop.f32.mrb[0].mxu0
        %1484 = vdwg.mxu0
        %1485 = vmatprep.subr.mxu0 0.0
        %1486 = vmatpush1.msra.mxu0 %v1328
        %1487 = vmatprep.subr.mxu0 0.0
        %1488 = vmatpush1.msra.mxu0 %v1329
        %1489 = vmatprep.subr.mxu0 0.0
        %1490 = vmatpush1.msra.mxu0 %v1330
        %1491 = vmatprep.subr.mxu0 0.0
        %1492 = vmatpush1.msra.mxu0 %v1331
        %1493 = vmatprep.subr.mxu0 0.0
        %1494 = vmatpush1.msra.mxu0 %v1332
        %1495 = vmatprep.subr.mxu0 0.0
        %1496 = vmatpush1.msra.mxu0 %v1333
        %1497 = vmatprep.subr.mxu0 0.0
        %1498 = vmatpush1.msra.mxu0 %v1334
        %1499 = vmatprep.subr.mxu0 0.0
        %1500 = vmatpush1.msra.mxu0 %v1335
        %1501 = vmatprep.subr.mxu0 0.0
        %1502 = vmatpush1.msra.mxu0 %v1336
        %1503 = vmatprep.subr.mxu0 0.0
        %1504 = vmatpush1.msra.mxu0 %v1337
        %1505 = vmatprep.subr.mxu0 0.0
        %1506 = vmatpush1.msra.mxu0 %v1338
        %1507 = vmatprep.subr.mxu0 0.0
        %1508 = vmatpush1.msra.mxu0 %v1339
        %1509 = vmatprep.subr.mxu0 0.0
        %1510 = vmatpush1.msra.mxu0 %v1340
        %1511 = vmatprep.subr.mxu0 0.0
        %1512 = vmatpush1.msra.mxu0 %v1341
        %1513 = vmatprep.subr.mxu0 0.0
        %1514 = vmatpush1.msra.mxu0 %v1342
        %1515 = vmatprep.subr.mxu0 0.0
        %1516 = vmatpush1.msra.mxu0 %v1343
        %1517 = vmatprep.subr.mxu0 0.0
        %1518 = vmatpush1.msra.mxu0 %v1344
        %1519 = vmatprep.subr.mxu0 0.0
        %1520 = vmatpush1.msra.mxu0 %v1345
        %1521 = vmatprep.subr.mxu0 0.0
        %1522 = vmatpush1.msra.mxu0 %v1346
        %1523 = vmatprep.subr.mxu0 0.0
        %1524 = vmatpush1.msra.mxu0 %v1347
        %1525 = vmatprep.subr.mxu0 0.0
        %1526 = vmatpush1.msra.mxu0 %v1348
        %1527 = vmatprep.subr.mxu0 0.0
        %1528 = vmatpush1.msra.mxu0 %v1349
        %1529 = vmatprep.subr.mxu0 0.0
        %1530 = vmatpush1.msra.mxu0 %v1350
        %1531 = vmatprep.subr.mxu0 0.0
        %1532 = vmatpush1.msra.mxu0 %v1351
        %1533 = vmatprep.subr.mxu0 0.0
        %1534 = vmatpush1.msra.mxu0 %v1352
        %1535 = vmatprep.subr.mxu0 0.0
        %1536 = vmatpush1.msra.mxu0 %v1353
        %1537 = vmatprep.subr.mxu0 0.0
        %1538 = vmatpush1.msra.mxu0 %v1354
        %1539 = vmatprep.subr.mxu0 0.0
        %1540 = vmatpush1.msra.mxu0 %v1355
        %1541 = vmatprep.subr.mxu0 0.0
        %1542 = vmatpush1.msra.mxu0 %v1356
        %1543 = vmatprep.subr.mxu0 0.0
        %1544 = vmatpush1.msra.mxu0 %v1357
        %1545 = vmatprep.subr.mxu0 0.0
        %1546 = vmatpush1.msra.mxu0 %v1358
        %1547 = vmatprep.subr.mxu0 0.0
        %1548 = vmatpush1.msra.mxu0 %v1359
        %1549 = vmatprep.mubr.f32.mxu0 %v1292
        %1550 = vmatmul.mubr.f32.gmra.mrb[0].mxu0 %v1291
        %v1551 = vpop.f32.mrb[0].mxu0
        %v1552 = vadd.f32 %v1482, %v1551
        %v1553 = vpop.f32.mrb[0].mxu0
        %1554 = vdwg.mxu0
        %1555 = vmatprep.subr.mxu0 0.0
        %1556 = vmatpush1.msra.mxu0 %v1360
        %1557 = vmatprep.subr.mxu0 0.0
        %1558 = vmatpush1.msra.mxu0 %v1361
        %1559 = vmatprep.subr.mxu0 0.0
        %1560 = vmatpush1.msra.mxu0 %v1362
        %1561 = vmatprep.subr.mxu0 0.0
        %1562 = vmatpush1.msra.mxu0 %v1363
        %1563 = vmatprep.subr.mxu0 0.0
        %1564 = vmatpush1.msra.mxu0 %v1364
        %1565 = vmatprep.subr.mxu0 0.0
        %1566 = vmatpush1.msra.mxu0 %v1365
        %1567 = vmatprep.subr.mxu0 0.0
        %1568 = vmatpush1.msra.mxu0 %v1366
        %1569 = vmatprep.subr.mxu0 0.0
        %1570 = vmatpush1.msra.mxu0 %v1367
        %1571 = vmatprep.subr.mxu0 0.0
        %1572 = vmatpush1.msra.mxu0 %v1368
        %1573 = vmatprep.subr.mxu0 0.0
        %1574 = vmatpush1.msra.mxu0 %v1369
        %1575 = vmatprep.subr.mxu0 0.0
        %1576 = vmatpush1.msra.mxu0 %v1370
        %1577 = vmatprep.subr.mxu0 0.0
        %1578 = vmatpush1.msra.mxu0 %v1371
        %1579 = vmatprep.subr.mxu0 0.0
        %1580 = vmatpush1.msra.mxu0 %v1372
        %1581 = vmatprep.subr.mxu0 0.0
        %1582 = vmatpush1.msra.mxu0 %v1373
        %1583 = vmatprep.subr.mxu0 0.0
        %1584 = vmatpush1.msra.mxu0 %v1374
        %1585 = vmatprep.subr.mxu0 0.0
        %1586 = vmatpush1.msra.mxu0 %v1375
        %1587 = vmatprep.subr.mxu0 0.0
        %1588 = vmatpush1.msra.mxu0 %v1376
        %1589 = vmatprep.subr.mxu0 0.0
        %1590 = vmatpush1.msra.mxu0 %v1377
        %1591 = vmatprep.subr.mxu0 0.0
        %1592 = vmatpush1.msra.mxu0 %v1378
        %1593 = vmatprep.subr.mxu0 0.0
        %1594 = vmatpush1.msra.mxu0 %v1379
        %1595 = vmatprep.subr.mxu0 0.0
        %1596 = vmatpush1.msra.mxu0 %v1380
        %1597 = vmatprep.subr.mxu0 0.0
        %1598 = vmatpush1.msra.mxu0 %v1381
        %1599 = vmatprep.subr.mxu0 0.0
        %1600 = vmatpush1.msra.mxu0 %v1382
        %1601 = vmatprep.subr.mxu0 0.0
        %1602 = vmatpush1.msra.mxu0 %v1383
        %1603 = vmatprep.subr.mxu0 0.0
        %1604 = vmatpush1.msra.mxu0 %v1384
        %1605 = vmatprep.subr.mxu0 0.0
        %1606 = vmatpush1.msra.mxu0 %v1385
        %1607 = vmatprep.subr.mxu0 0.0
        %1608 = vmatpush1.msra.mxu0 %v1386
        %1609 = vmatprep.subr.mxu0 0.0
        %1610 = vmatpush1.msra.mxu0 %v1387
        %1611 = vmatprep.subr.mxu0 0.0
        %1612 = vmatpush1.msra.mxu0 %v1388
        %1613 = vmatprep.subr.mxu0 0.0
        %1614 = vmatpush1.msra.mxu0 %v1389
        %1615 = vmatprep.subr.mxu0 0.0
        %1616 = vmatpush1.msra.mxu0 %v1390
        %1617 = vmatprep.subr.mxu0 0.0
        %1618 = vmatpush1.msra.mxu0 %v1391
        %1619 = vmatprep.mubr.f32.mxu0 %v1294
        %1620 = vmatmul.mubr.f32.gmra.mrb[0].mxu0 %v1293
        %v1621 = vpop.f32.mrb[0].mxu0
        %v1622 = vadd.f32 %v1552, %v1621
        %v1623 = vpop.f32.mrb[0].mxu0
        %1624 = vdwg.mxu0
        %1625 = vmatprep.subr.mxu0 0.0
        %1626 = vmatpush1.msra.mxu0 %v1392
        %1627 = vmatprep.subr.mxu0 0.0
        %1628 = vmatpush1.msra.mxu0 %v1393
        %1629 = vmatprep.subr.mxu0 0.0
        %1630 = vmatpush1.msra.mxu0 %v1394
        %1631 = vmatprep.subr.mxu0 0.0
        %1632 = vmatpush1.msra.mxu0 %v1395
        %1633 = vmatprep.subr.mxu0 0.0
        %1634 = vmatpush1.msra.mxu0 %v1396
        %1635 = vmatprep.subr.mxu0 0.0
        %1636 = vmatpush1.msra.mxu0 %v1397
        %1637 = vmatprep.subr.mxu0 0.0
        %1638 = vmatpush1.msra.mxu0 %v1398
        %1639 = vmatprep.subr.mxu0 0.0
        %1640 = vmatpush1.msra.mxu0 %v1399
        %1641 = vmatprep.subr.mxu0 0.0
        %1642 = vmatpush1.msra.mxu0 %v1400
        %1643 = vmatprep.subr.mxu0 0.0
        %1644 = vmatpush1.msra.mxu0 %v1401
        %1645 = vmatprep.subr.mxu0 0.0
        %1646 = vmatpush1.msra.mxu0 %v1402
        %1647 = vmatprep.subr.mxu0 0.0
        %1648 = vmatpush1.msra.mxu0 %v1403
        %1649 = vmatprep.subr.mxu0 0.0
        %1650 = vmatpush1.msra.mxu0 %v1404
        %1651 = vmatprep.subr.mxu0 0.0
        %1652 = vmatpush1.msra.mxu0 %v1405
        %1653 = vmatprep.subr.mxu0 0.0
        %1654 = vmatpush1.msra.mxu0 %v1406
        %1655 = vmatprep.subr.mxu0 0.0
        %1656 = vmatpush1.msra.mxu0 %v1407
        %1657 = vmatprep.subr.mxu0 0.0
        %1658 = vmatpush1.msra.mxu0 0.0
        %1659 = vmatprep.subr.mxu0 0.0
        %1660 = vmatpush1.msra.mxu0 0.0
        %1661 = vmatprep.subr.mxu0 0.0
        %1662 = vmatpush1.msra.mxu0 0.0
        %1663 = vmatprep.subr.mxu0 0.0
        %1664 = vmatpush1.msra.mxu0 0.0
        %1665 = vmatprep.subr.mxu0 0.0
        %1666 = vmatpush1.msra.mxu0 0.0
        %1667 = vmatprep.subr.mxu0 0.0
        %1668 = vmatpush1.msra.mxu0 0.0
        %1669 = vmatprep.subr.mxu0 0.0
        %1670 = vmatpush1.msra.mxu0 0.0
        %1671 = vmatprep.subr.mxu0 0.0
        %1672 = vmatpush1.msra.mxu0 0.0
        %1673 = vmatprep.subr.mxu0 0.0
        %1674 = vmatpush1.msra.mxu0 0.0
        %1675 = vmatprep.subr.mxu0 0.0
        %1676 = vmatpush1.msra.mxu0 0.0
        %1677 = vmatprep.subr.mxu0 0.0
        %1678 = vmatpush1.msra.mxu0 0.0
        %1679 = vmatprep.subr.mxu0 0.0
        %1680 = vmatpush1.msra.mxu0 0.0
        %1681 = vmatprep.subr.mxu0 0.0
        %1682 = vmatpush1.msra.mxu0 0.0
        %1683 = vmatprep.subr.mxu0 0.0
        %1684 = vmatpush1.msra.mxu0 0.0
        %1685 = vmatprep.subr.mxu0 0.0
        %1686 = vmatpush1.msra.mxu0 0.0
        %1687 = vmatprep.subr.mxu0 0.0
        %1688 = vmatpush1.msra.mxu0 0.0
        %1689 = vmatprep.mubr.f32.mxu0 0.0
        %1690 = vmatmul.mubr.f32.gmra.mrb[0].mxu0 %v1295
        %v1691 = vpop.f32.mrb[0].mxu0
        %v1692 = vadd.f32 %v1622, %v1691
        %v1693 = vpop.f32.mrb[0].mxu0
        %1694 = vdwg.mxu0
        %v1695 = vmax.f32 %v1692, 0.0
        %v1696 = vpack.c.bf16 %v1695, %v1695
        %v1697 = vld [vmem:[#allocation10] sm:$0xf]
        %v1698 = vld [vmem:[#allocation10 + $0x4] sm:$0xf]
        %v1699 = vld [vmem:[#allocation10 + $0x8] sm:$0xf]
        %v1700 = vld [vmem:[#allocation10 + $0xc] sm:$0xf]
        %v1701 = vld [vmem:[#allocation10 + $0x10] sm:$0xf]
        %v1702 = vld [vmem:[#allocation10 + $0x14] sm:$0xf]
        %v1703 = vld [vmem:[#allocation10 + $0x18] sm:$0xf]
        %v1704 = vld [vmem:[#allocation10 + $0x1c] sm:$0xf]
        %v1705 = vld [vmem:[#allocation10 + $0x20] sm:$0xf]
        %v1706 = vld [vmem:[#allocation10 + $0x24] sm:$0xf]
        %v1707 = vld [vmem:[#allocation10 + $0x28] sm:$0xf]
        %v1708 = vld [vmem:[#allocation10 + $0x2c] sm:$0xf]
        %v1709 = vld [vmem:[#allocation10 + $0x30] sm:$0xf]
        %v1710 = vld [vmem:[#allocation10 + $0x34] sm:$0xf]
        %v1711 = vld [vmem:[#allocation10 + $0x38] sm:$0xf]
        %v1712 = vld [vmem:[#allocation10 + $0x3c] sm:$0xf]
        %v1713 = vld [vmem:[%s11] sm:$0x1]
        %v1715 = vlaneseq
        %v1716 = vshrl.u32 %v1715, 7
        %v1717 = vsub.s32 0, %v1716
        %v1718 = vrot.slane %v1713, %v1717
        %v1736 = vunpack.c.l.b16 %v1697
        %v1737 = vunpack.c.l.b16 %v1698
        %v1738 = vunpack.c.l.b16 %v1699
        %v1739 = vunpack.c.l.b16 %v1700
        %v1740 = vunpack.c.l.b16 %v1701
        %v1741 = vunpack.c.l.b16 %v1702
        %v1742 = vunpack.c.l.b16 %v1703
        %v1743 = vunpack.c.l.b16 %v1704
        %v1744 = vunpack.c.l.b16 %v1705
        %v1745 = vunpack.c.l.b16 %v1706
        %v1746 = vunpack.c.l.b16 %v1707
        %v1747 = vunpack.c.l.b16 %v1708
        %v1748 = vunpack.c.l.b16 %v1709
        %v1749 = vunpack.c.l.b16 %v1710
        %v1750 = vunpack.c.l.b16 %v1711
        %v1751 = vunpack.c.l.b16 %v1712
        %v1752 = vpack.c.b16 %v1737, %v1736
        %v1753 = vpack.c.b16 %v1739, %v1738
        %v1754 = vpack.c.b16 %v1741, %v1740
        %v1755 = vpack.c.b16 %v1743, %v1742
        %v1756 = vpack.c.b16 %v1745, %v1744
        %v1757 = vpack.c.b16 %v1747, %v1746
        %v1758 = vpack.c.b16 %v1749, %v1748
        %v1759 = vpack.c.b16 %v1751, %v1750
        %1768 = vmatprep.subr.bf16.mxu0 0
        %1769 = vmatpush1.bf16.msra.mxu0 %v1752
        %1770 = vmatprep.subr.bf16.mxu0 0
        %1771 = vmatpush1.bf16.msra.mxu0 %v1753
        %1772 = vmatprep.subr.bf16.mxu0 0
        %1773 = vmatpush1.bf16.msra.mxu0 %v1754
        %1774 = vmatprep.subr.bf16.mxu0 0
        %1775 = vmatpush1.bf16.msra.mxu0 %v1755
        %1776 = vmatprep.subr.bf16.mxu0 0
        %1777 = vmatpush1.bf16.msra.mxu0 %v1756
        %1778 = vmatprep.subr.bf16.mxu0 0
        %1779 = vmatpush1.bf16.msra.mxu0 %v1757
        %1780 = vmatprep.subr.bf16.mxu0 0
        %1781 = vmatpush1.bf16.msra.mxu0 %v1758
        %1782 = vmatprep.subr.bf16.mxu0 0
        %1783 = vmatpush1.bf16.msra.mxu0 %v1759
        %1784 = vmatprep.subr.bf16.mxu0 0
        %1785 = vmatpush1.bf16.msra.mxu0 0
        %1786 = vmatprep.subr.bf16.mxu0 0
        %1787 = vmatpush1.bf16.msra.mxu0 0
        %1788 = vmatprep.subr.bf16.mxu0 0
        %1789 = vmatpush1.bf16.msra.mxu0 0
        %1790 = vmatprep.subr.bf16.mxu0 0
        %1791 = vmatpush1.bf16.msra.mxu0 0
        %1792 = vmatprep.subr.bf16.mxu0 0
        %1793 = vmatpush1.bf16.msra.mxu0 0
        %1794 = vmatprep.subr.bf16.mxu0 0
        %1795 = vmatpush1.bf16.msra.mxu0 0
        %1796 = vmatprep.subr.bf16.mxu0 0
        %1797 = vmatpush1.bf16.msra.mxu0 0
        %1798 = vmatprep.subr.bf16.mxu0 0
        %1799 = vmatpush1.bf16.msra.mxu0 0
        %1800 = vmatprep.mubr.bf16.mxu0 0
        %1801 = vmatmul.mubr.bf16.gmra.mrb[0].mxu0 %v1696
        %v1802 = vpop.f32.mrb[0].mxu0
        %v1803 = vadd.f32 %v1718, %v1802
        %v1804 = vpop.f32.mrb[0].mxu0
        %v1805 = vpop.f32.mrb[0].mxu0
        %v1806 = vpop.f32.mrb[0].mxu0
        %1807 = vdwg.mxu0
        %v1808 = vmax.f32 %v1803, 0.0
        %v1809 = vpack.c.bf16 %v1808, %v1808
        %v1810 = vld [vmem:[#allocation11] sm:$0xf]
        %v1811 = vld [vmem:[#allocation11 + $0x4] sm:$0xf]
        %v1812 = vld [vmem:[#allocation11 + $0x8] sm:$0xf]
        %v1813 = vld [vmem:[#allocation11 + $0xc] sm:$0xf]
        %v1814 = vld [vmem:[#allocation11 + $0x10] sm:$0xf]
        %v1815 = vld [vmem:[#allocation11 + $0x14] sm:$0xf]
        %v1816 = vld [vmem:[#allocation11 + $0x18] sm:$0xf]
        %v1817 = vld [vmem:[#allocation11 + $0x1c] sm:$0xf]
        %v1818 = vld [vmem:[#allocation11 + $0x20] sm:$0xf]
        %v1819 = vld [vmem:[#allocation11 + $0x24] sm:$0xf]
        %v1820 = vld [vmem:[#allocation11 + $0x28] sm:$0xf]
        %v1821 = vld [vmem:[#allocation11 + $0x2c] sm:$0xf]
        %v1822 = vld [vmem:[#allocation11 + $0x30] sm:$0xf]
        %v1823 = vld [vmem:[#allocation11 + $0x34] sm:$0xf]
        %v1824 = vld [vmem:[#allocation11 + $0x38] sm:$0xf]
        %v1825 = vld [vmem:[#allocation11 + $0x3c] sm:$0xf]
        %v1826 = vld [vmem:[%s12] sm:$0x1]
        %v1828 = vlaneseq
        %v1829 = vshrl.u32 %v1828, 7
        %v1830 = vsub.s32 0, %v1829
        %v1831 = vrot.slane %v1826, %v1830
        %v1849 = vunpack.c.l.b16 %v1810
        %v1850 = vunpack.c.l.b16 %v1811
        %v1851 = vunpack.c.l.b16 %v1812
        %v1852 = vunpack.c.l.b16 %v1813
        %v1853 = vunpack.c.l.b16 %v1814
        %v1854 = vunpack.c.l.b16 %v1815
        %v1855 = vunpack.c.l.b16 %v1816
        %v1856 = vunpack.c.l.b16 %v1817
        %v1857 = vunpack.c.l.b16 %v1818
        %v1858 = vunpack.c.l.b16 %v1819
        %v1859 = vunpack.c.l.b16 %v1820
        %v1860 = vunpack.c.l.b16 %v1821
        %v1861 = vunpack.c.l.b16 %v1822
        %v1862 = vunpack.c.l.b16 %v1823
        %v1863 = vunpack.c.l.b16 %v1824
        %v1864 = vunpack.c.l.b16 %v1825
        %v1865 = vpack.c.b16 %v1850, %v1849
        %v1866 = vpack.c.b16 %v1852, %v1851
        %v1867 = vpack.c.b16 %v1854, %v1853
        %v1868 = vpack.c.b16 %v1856, %v1855
        %v1869 = vpack.c.b16 %v1858, %v1857
        %v1870 = vpack.c.b16 %v1860, %v1859
        %v1871 = vpack.c.b16 %v1862, %v1861
        %v1872 = vpack.c.b16 %v1864, %v1863
        %1881 = vmatprep.subr.bf16.mxu0 0
        %1882 = vmatpush1.bf16.msra.mxu0 %v1865
        %1883 = vmatprep.subr.bf16.mxu0 0
        %1884 = vmatpush1.bf16.msra.mxu0 %v1866
        %1885 = vmatprep.subr.bf16.mxu0 0
        %1886 = vmatpush1.bf16.msra.mxu0 %v1867
        %1887 = vmatprep.subr.bf16.mxu0 0
        %1888 = vmatpush1.bf16.msra.mxu0 %v1868
        %1889 = vmatprep.subr.bf16.mxu0 0
        %1890 = vmatpush1.bf16.msra.mxu0 %v1869
        %1891 = vmatprep.subr.bf16.mxu0 0
        %1892 = vmatpush1.bf16.msra.mxu0 %v1870
        %1893 = vmatprep.subr.bf16.mxu0 0
        %1894 = vmatpush1.bf16.msra.mxu0 %v1871
        %1895 = vmatprep.subr.bf16.mxu0 0
        %1896 = vmatpush1.bf16.msra.mxu0 %v1872
        %1897 = vmatprep.subr.bf16.mxu0 0
        %1898 = vmatpush1.bf16.msra.mxu0 0
        %1899 = vmatprep.subr.bf16.mxu0 0
        %1900 = vmatpush1.bf16.msra.mxu0 0
        %1901 = vmatprep.subr.bf16.mxu0 0
        %1902 = vmatpush1.bf16.msra.mxu0 0
        %1903 = vmatprep.subr.bf16.mxu0 0
        %1904 = vmatpush1.bf16.msra.mxu0 0
        %1905 = vmatprep.subr.bf16.mxu0 0
        %1906 = vmatpush1.bf16.msra.mxu0 0
        %1907 = vmatprep.subr.bf16.mxu0 0
        %1908 = vmatpush1.bf16.msra.mxu0 0
        %1909 = vmatprep.subr.bf16.mxu0 0
        %1910 = vmatpush1.bf16.msra.mxu0 0
        %1911 = vmatprep.subr.bf16.mxu0 0
        %1912 = vmatpush1.bf16.msra.mxu0 0
        %1913 = vmatprep.mubr.bf16.mxu0 0
        %1914 = vmatmul.mubr.bf16.gmra.mrb[0].mxu0 %v1809
        %v1915 = vpop.f32.mrb[0].mxu0
        %v1916 = vadd.f32 %v1831, %v1915
        %v1917 = vpop.f32.mrb[0].mxu0
        %v1918 = vpop.f32.mrb[0].mxu0
        %v1919 = vpop.f32.mrb[0].mxu0
        %1920 = vdwg.mxu0
        %v1921 = vxor.u32 %v1916, 2147483648
        %v1922 = vmul.f32 %v1921, 1.442695
        %v1923 = vpow.pop %v1922
        %v1924 = vadd.f32 %v1923, 1.0
        %v1925 = vrcp.pop %v1924
        %v1926 = vmul.f32 1.0, %v1925
        %1927 = vst [vmem:[%s532] sm:$0xff] %v1926
        %s1928 = sand.u32 %s322, 1
        %s1929 = scalar_lea.sflag [#allocation4], %s1928
        %s1930 = sand.u32 %s322, 1
        %s1931 = smul.addr %s1930, 8
        %s1932 = scalar_lea.vmem [#allocation13], %s1931
        // Predicated region
        $region97: #{tpu_custom_call.1} parent=71 // pred_check
          %p1933 = pneg %p332
        $region98: #{tpu_custom_call.1} parent=71 // pred_check_branch
          %1935 = sbr.rel (%p1933) target = $region100
        $region99: #{tpu_custom_call.1} parent=71 // pred_region
          %s1937 = ssub.s32 128, 128
          %1938 = vsyncadd %s1929, %s1937
          %s1939 = smul.addr %s31, 128
          %s1940 = scalar_lea.hbm %s13, %s1939
          %s1942 = sshll.u32 %s1932, 4
          %s1943 = int_to_ptr.vmem [resolvable:$true] %s1942
          %1945 = dma.vmem_to_hbm [thread:$0]  %s1943, 128, %s1940, %s1929
        $region100: #{tpu_custom_call.1} parent=71 // pred_fallthru
          _
      $region72: #{tpu_custom_call.1} parent=5 // pred_fallthru
        _
      %p1946 = scmp.le.s32.totalorder 2, %s26
      // Predicated region
      $region101: #{tpu_custom_call.1} parent=5 // pred_check
        %p1947 = pneg %p1946
      $region102: #{tpu_custom_call.1} parent=5 // pred_check_branch
        %1949 = sbr.rel (%p1947) target = $region104
      $region103: #{tpu_custom_call.1} parent=5 // pred_region
        %s1950 = ssub.s32 %s26, 2
        // Predicated region
        $region105: #{tpu_custom_call.1} parent=103 // pred_check
          %p1951 = pneg %p338
        $region106: #{tpu_custom_call.1} parent=103 // pred_check_branch
          %1953 = sbr.rel (%p1951) target = $region108
        $region107: #{tpu_custom_call.1} parent=103 // pred_region
          %s1954 = sand.u32 %s323, 1
          %s1955 = scalar_lea.sflag [#allocation4], %s1954
          %s1956 = sand.u32 %s323, 1
          %s1957 = smul.addr %s1956, 8
          %s1958 = scalar_lea.vmem [#allocation13], %s1957
          %1959 = dma.done %s1955, 128
        $region108: #{tpu_custom_call.1} parent=103 // pred_fallthru
          _
      $region104: #{tpu_custom_call.1} parent=5 // pred_fallthru
        _
    $region6: #{tpu_custom_call.1} parent=1 // loop_footer
      %s30 = sadd.s32 1, %s26
    $region7: #{tpu_custom_call.1} parent=1 // loop_footer_branch
      %25 = sbr.rel target = $region3
    $region8: #{tpu_custom_call.1} parent=1 // loop_exit
      _
    %1960 = vsyncpa [#allocation3], 1
    %s1961 = scalar_lea.sflag [#allocation3], 1
    %1962 = vsyncpa %s1961, 1
    %1963 = vsyncpa [#allocation6], 1
    %1964 = vsyncpa [#allocation9], 1
    %1965 = vsyncpa [#allocation12], 1
    %1966 = vsyncpa [#allocation4], 1
    %s1967 = scalar_lea.sflag [#allocation4], 1
    %1968 = vsyncpa %s1967, 1

</llo_original>
